<compile_context>
chip_gen: v5e
topology: v5e:2x2
jax: 0.10.0
libtpu: 0.0.40
codegen_flags: <defaults>
</compile_context>

<pallas_src>
import functools

import jax
import jax.numpy as jnp
from jax.experimental import pallas as pl
from jax.experimental.pallas import tpu as pltpu

N_FILTERS = 16          # fixed by the module spec
NEG_SLOPE = 0.01        # PyTorch nn.LeakyReLU default negative_slope
B_BLK_MAX = 16          # max batch elements packed onto the lane axis per block


def _lrelu(x):
    return jnp.where(x > 0, x, NEG_SLOPE * x)


# ------------------------------ fused Pallas kernel ------------------------------ #

def _decoder_kernel(x_ref, gb_ref, w_ref, mask_ref, sel_ref, o_ref, cols_ref,
                    *, n_layers, width):
    """Whole decoder for one block of B_blk batch elements (one grid step).

    Ref shapes (N = B_blk * H * W lanes, kdim = 9F + 8):
      x_ref    : (1, F, N)        input anatomical factors (channels zero-padded to F)
      gb_ref   : (2L, F, k_sel)   per-block FiLM gamma/beta (layer i -> rows 2i, 2i+1)
      w_ref    : (2L+1, F, kdim)  im2col conv weights (bias folded into col 9F), bf16
      mask_ref : (9, N)           0/1 border masks per 3x3 tap (per-image, tiled)
      sel_ref  : (k_sel, N)       0/1 block selector: sel[j, lane] = (lane // HW == j)
      o_ref    : (1, 1, N)        reconstructed image(s), lane-dense
      cols_ref : (kdim, N) bf16   reused im2col RHS scratch
    """
    f = x_ref.shape[1]
    n = x_ref.shape[2]
    k9 = 9 * f
    kdim = cols_ref.shape[0]

    # Bias row (ones) + zero alignment-pad rows of the im2col buffer, once per step.
    pad = kdim - k9
    row = jax.lax.broadcasted_iota(jnp.int32, (pad, n), 0)
    cols_ref[k9:, :] = (row == 0).astype(jnp.bfloat16)

    sel = sel_ref[...]                                   # (k_sel, N)

    def im2col(a):
        # a: (F, N) f32 -> cols_ref[:9F] = 9 masked spatial shifts, bf16, tap-major.
        for di in range(3):
            for dj in range(3):
                t = di * 3 + dj
                s = (di - 1) * width + (dj - 1)          # flat spatial shift of this tap
                piece = a if s == 0 else pltpu.roll(a, (-s) % n, axis=1)
                if t != 4:                               # center tap needs no mask
                    piece = piece * mask_ref[t:t + 1, :]  # zero cross-border/cross-image taps
                cols_ref[t * f:(t + 1) * f, :] = piece.astype(jnp.bfloat16)

    def conv3x3(a, w2d):
        # one bf16 MXU matmul per conv: (Cout, kdim) @ (kdim, N); bias folded in.
        im2col(a)
        return jnp.dot(w2d, cols_ref[...], preferred_element_type=jnp.float32)

    act = x_ref[0]                                       # (F, N) f32
    for i in range(n_layers):
        l1 = _lrelu(conv3x3(act, w_ref[2 * i]))
        l2 = _lrelu(conv3x3(l1, w_ref[2 * i + 1]))
        # FiLM: expand per-(batch, channel) gamma/beta across each image's lanes.
        gamma = jnp.dot(gb_ref[2 * i], sel, preferred_element_type=jnp.float32)
        beta = jnp.dot(gb_ref[2 * i + 1], sel, preferred_element_type=jnp.float32)
        act = gamma * l2 + beta + l1                     # FiLM + residual

    y = conv3x3(act, w_ref[2 * n_layers])[0:1, :]        # recon conv (row 0), (1, N)
    o_ref[...] = jnp.tanh(y).reshape(1, 1, n)


# ----------------------------------- wrapper ----------------------------------- #

def _conv_w_im2col(w, f_total):
    """(Cout, Cin, 3, 3) conv weight -> (Cout, 9*f_total) im2col weight,
    tap-major (kh, kw), channel-minor, input channels zero-padded to f_total."""
    cout, cin = w.shape[0], w.shape[1]
    w = jnp.transpose(w, (0, 2, 3, 1))                   # (Cout, 3, 3, Cin)
    if cin < f_total:
        w = jnp.pad(w, ((0, 0), (0, 0), (0, 0), (0, f_total - cin)))
    return w.reshape(cout, 9 * f_total)


def _conv_w_ext(w, b, f_total):
    """im2col weight with the bias folded into column 9F (+7 zero pad cols),
    output channels zero-padded to f_total rows -> (F, 9F + 8)."""
    w2d = _conv_w_im2col(w, f_total).astype(jnp.float32)
    cout = w2d.shape[0]
    ext = jnp.concatenate(
        [w2d, b.reshape(cout, 1).astype(jnp.float32), jnp.zeros((cout, 7), jnp.float32)],
        axis=1)
    if cout < f_total:
        ext = jnp.pad(ext, ((0, f_total - cout), (0, 0)))
    return ext


def _tap_masks(h_sp, w_sp, b_blk):
    """(9, b_blk*H*W) 0/1 masks: for each 3x3 tap, 0 where the shifted source falls
    outside the (per-image) zero-padding border."""
    hw = h_sp * w_sp
    pos = jnp.arange(hw)
    hh = pos // w_sp
    ww = pos % w_sp
    rows = []
    for di in range(3):
        for dj in range(3):
            m = jnp.ones((hw,), jnp.bool_)
            if di == 0:
                m = m & (hh >= 1)
            if di == 2:
                m = m & (hh <= h_sp - 2)
            if dj == 0:
                m = m & (ww >= 1)
            if dj == 2:
                m = m & (ww <= w_sp - 2)
            rows.append(m)
    mask9 = jnp.stack(rows, axis=0).astype(jnp.float32)   # (9, HW)
    return jnp.tile(mask9, (1, b_blk))                    # (9, b_blk*HW)


def _film_params(layer, z):
    """gamma/beta = LeakyReLU(Linear(z)) — shared by kernel wrapper & reference."""
    hi = jax.lax.Precision.HIGHEST
    gamma = _lrelu(jnp.dot(z, layer["wg"], precision=hi) + layer["bg"])
    beta = _lrelu(jnp.dot(z, layer["wb"], precision=hi) + layer["bb"])
    return gamma, beta


@jax.jit
def decoder_forward(params, anatomical_factors, modalities):
    """anatomical_factors: (B, C, H, W) NCHW; modalities: (B, n_latent) -> (B, 1, H, W)."""
    f = N_FILTERS
    b_sz, cin, h_sp, w_sp = anatomical_factors.shape
    assert cin <= f
    hw = h_sp * w_sp
    n_layers = len(params["film_layers"])
    n2 = 2 * n_layers
    kdim = 9 * f + 8                                      # bias row + sublane-alignment pad

    # ---- block / lane-packing geometry ----
    n_blocks = min(b_sz, 2)                               # up to 2 blocks: one per v7x TC
    b_blk = pl.cdiv(b_sz, n_blocks)
    if b_blk > B_BLK_MAX:
        b_blk = B_BLK_MAX
        n_blocks = pl.cdiv(b_sz, b_blk)
    b_pad = n_blocks * b_blk
    n_lanes = b_blk * hw
    k_sel = max(b_blk, 8)

    # ---- activations: (B, C, H, W) -> (n_blocks, F, b_blk*HW), lane-dense ----
    x = anatomical_factors.astype(jnp.float32)
    if cin < f:
        x = jnp.pad(x, ((0, 0), (0, f - cin), (0, 0), (0, 0)))
    x = x.reshape(b_sz, f, hw)
    if b_pad > b_sz:
        x = jnp.pad(x, ((0, b_pad - b_sz), (0, 0), (0, 0)))
    x_in = (x.reshape(n_blocks, b_blk, f, hw)
             .transpose(0, 2, 1, 3)
             .reshape(n_blocks, f, n_lanes))

    z = modalities.astype(jnp.float32)

    # ---- FiLM gamma/beta hoisted; conv weights -> im2col + folded bias, bf16 ----
    gb_rows, w_rows = [], []
    for layer in params["film_layers"]:
        gamma, beta = _film_params(layer, z)              # each (B, F)
        gb_rows += [gamma, beta]
        w_rows += [_conv_w_ext(layer["w1"], layer["b1"], f),
                   _conv_w_ext(layer["w2"], layer["b2"], f)]
    w_rows.append(_conv_w_ext(params["w_rec"], params["b_rec"], f))
    w_all = jnp.stack(w_rows, axis=0).astype(jnp.bfloat16)          # (2L+1, F, kdim)

    gb = jnp.stack(gb_rows, axis=1)                                  # (B, 2L, F)
    if b_pad > b_sz:
        gb = jnp.pad(gb, ((0, b_pad - b_sz), (0, 0), (0, 0)))
    gb = gb.reshape(n_blocks, b_blk, n2, f).transpose(0, 2, 3, 1)    # (n_blocks, 2L, F, b_blk)
    gb = jnp.pad(gb, ((0, 0), (0, 0), (0, 0), (0, k_sel - b_blk)))
    gb = gb.reshape(n_blocks * n2, f, k_sel)

    # grid-resident: per-image tap masks and the lane->image block selector
    mask9 = _tap_masks(h_sp, w_sp, b_blk)                            # (9, n_lanes)
    lane_img = jnp.arange(n_lanes) // hw
    sel = (jnp.arange(k_sel)[:, None] == lane_img[None, :]).astype(jnp.float32)

    kernel = functools.partial(_decoder_kernel, n_layers=n_layers, width=w_sp)
    out = pl.pallas_call(
        kernel,
        out_shape=jax.ShapeDtypeStruct((n_blocks, 1, n_lanes), jnp.float32),
        grid=(n_blocks,),
        in_specs=[
            pl.BlockSpec((1, f, n_lanes), lambda b: (b, 0, 0)),       # activations
            pl.BlockSpec((n2, f, k_sel), lambda b: (b, 0, 0)),        # per-block gamma/beta
            pl.BlockSpec((n2 + 1, f, kdim), lambda b: (0, 0, 0)),     # conv weights (resident)
            pl.BlockSpec((9, n_lanes), lambda b: (0, 0)),             # tap masks (resident)
            pl.BlockSpec((k_sel, n_lanes), lambda b: (0, 0)),         # block selector (resident)
        ],
        out_specs=pl.BlockSpec((1, 1, n_lanes), lambda b: (b, 0, 0)),
        scratch_shapes=[pltpu.VMEM((kdim, n_lanes), jnp.bfloat16)],   # reused im2col RHS
        compiler_params=pltpu.CompilerParams(
            dimension_semantics=("parallel",)),                       # v7x: one block per TC
    )(x_in, gb, w_all, mask9, sel)

    return out.reshape(b_pad, 1, h_sp, w_sp)[:b_sz]                   # back to NCHW


# ------------------------------ pure-JAX reference ------------------------------ #

def _ref_conv3x3(x, w, b):
    y = jax.lax.conv_general_dilated(
        x, w, window_strides=(1, 1), padding=((1, 1), (1, 1)),
        dimension_numbers=("NCHW", "OIHW", "NCHW"),
        precision=jax.lax.Precision.HIGHEST)
    return y + b[None, :, None, None]


def decoder_reference(params, anatomical_factors, modalities):
    x = anatomical_factors.astype(jnp.float32)
    z = modalities.astype(jnp.float32)
    for layer in params["film_layers"]:
        l1 = _lrelu(_ref_conv3x3(x, layer["w1"], layer["b1"]))
        l2 = _lrelu(_ref_conv3x3(l1, layer["w2"], layer["b2"]))
        gamma, beta = _film_params(layer, z)
        x = gamma[:, :, None, None] * l2 + beta[:, :, None, None] + l1
    y = _ref_conv3x3(x, params["w_rec"], params["b_rec"])
    return jnp.tanh(y)


# --------------------------------- parameters ---------------------------------- #

def init_decoder_params(key, n_anatomical_factors, n_latent, n_filters=N_FILTERS):
    """PyTorch-style shapes/init: Conv2d weight (Cout, Cin, 3, 3), bias (Cout,);
    Linear stored as (in, out) so gamma = lrelu(z @ w + b)."""
    def conv_init(k, cin, cout):
        bound = 1.0 / jnp.sqrt(cin * 9.0)
        kw, kb = jax.random.split(k)
        w = jax.random.uniform(kw, (cout, cin, 3, 3), jnp.float32, -bound, bound)
        b = jax.random.uniform(kb, (cout,), jnp.float32, -bound, bound)
        return w, b

    def lin_init(k, din, dout):
        bound = 1.0 / jnp.sqrt(float(din))
        kw, kb = jax.random.split(k)
        w = jax.random.uniform(kw, (din, dout), jnp.float32, -bound, bound)
        b = jax.random.uniform(kb, (dout,), jnp.float32, -bound, bound)
        return w, b

    film_layers = []
    in_ch = n_anatomical_factors
    for _ in range(4):
        key, k1, k2, k3, k4 = jax.random.split(key, 5)
        w1, b1 = conv_init(k1, in_ch, n_filters)
        w2, b2 = conv_init(k2, n_filters, n_filters)
        wg, bg = lin_init(k3, n_latent, n_filters)
        wb, bb = lin_init(k4, n_latent, n_filters)
        film_layers.append(dict(w1=w1, b1=b1, w2=w2, b2=b2,
                                wg=wg, bg=bg, wb=wb, bb=bb))
        in_ch = n_filters

    key, kr = jax.random.split(key)
    w_rec, b_rec = conv_init(kr, n_filters, 1)
    return dict(film_layers=film_layers, w_rec=w_rec, b_rec=b_rec)


# ------------------------------------ main -------------------------------------- #

if __name__ == "__main__":
    B, H, W = 2, 16, 16
    n_anatomical_factors = 4
    n_latent = 8

    key = jax.random.PRNGKey(0)
    key, kx, kz, kp = jax.random.split(key, 4)

    anatomical_factors = jax.random.normal(
        kx, (B, n_anatomical_factors, H, W), jnp.float32)        # NCHW
    modalities = jax.random.normal(kz, (B, n_latent), jnp.float32)
    params = init_decoder_params(kp, n_anatomical_factors, n_latent)

    out = decoder_forward(params, anatomical_factors, modalities)
    out = jax.block_until_ready(out)
    assert out.shape == (B, 1, H, W), out.shape
    assert bool(jnp.all(jnp.isfinite(out)))

    # correctness vs a pure-JAX (HIGHEST-precision XLA conv) reference.
    # Kernel matmuls use bf16 operands with f32 accumulation -> 5e-2 tolerance.
    ref = jax.block_until_ready(
        jax.jit(decoder_reference)(params, anatomical_factors, modalities))
    max_diff = float(jnp.max(jnp.abs(out - ref)))
    assert jnp.allclose(out, ref, atol=5e-2, rtol=5e-2), max_diff

    # also exercise the lane-packed path (several batch elements per grid block)
    B2 = 8
    key, kx2, kz2 = jax.random.split(key, 3)
    x2 = jax.random.normal(kx2, (B2, n_anatomical_factors, H, W), jnp.float32)
    z2 = jax.random.normal(kz2, (B2, n_latent), jnp.float32)
    out2 = jax.block_until_ready(decoder_forward(params, x2, z2))
    assert out2.shape == (B2, 1, H, W), out2.shape
    ref2 = jax.block_until_ready(jax.jit(decoder_reference)(params, x2, z2))
    max_diff2 = float(jnp.max(jnp.abs(out2 - ref2)))
    assert jnp.allclose(out2, ref2, atol=5e-2, rtol=5e-2), max_diff2

    print("KERNEL_OK")
</pallas_src>

<mosaic_0001>
module attributes {stable_mosaic.version = 11 : i64} {
  func.func @_decoder_kernel(%arg0: i32, %arg1: memref<1x16x256xf32, #tpu.memory_space<vmem>>, %arg2: memref<8x16x8xf32, #tpu.memory_space<vmem>>, %arg3: memref<9x16x152xbf16, #tpu.memory_space<vmem>>, %arg4: memref<9x256xf32, #tpu.memory_space<vmem>>, %arg5: memref<8x256xf32, #tpu.memory_space<vmem>>, %arg6: memref<1x1x256xf32, #tpu.memory_space<vmem>>, %arg7: memref<152x256xbf16, #tpu.memory_space<vmem>>) attributes {dimension_semantics = [#tpu.dimension_semantics<parallel>], iteration_bounds = array<i64: 2>, scalar_prefetch = 0 : i64, scratch_operands = 1 : i64, tpu.core_type = #tpu.core_type<tc>, window_params = [{transform_indices = @transform_0, window_bounds = array<i64: 1, 16, 256>}, {transform_indices = @transform_1, window_bounds = array<i64: 8, 16, 8>}, {pipeline_mode = #tpu.pipeline_mode<synchronous>, transform_indices = @transform_2, window_bounds = array<i64: 9, 16, 152>}, {pipeline_mode = #tpu.pipeline_mode<synchronous>, transform_indices = @transform_3, window_bounds = array<i64: 9, 256>}, {pipeline_mode = #tpu.pipeline_mode<synchronous>, transform_indices = @transform_4, window_bounds = array<i64: 8, 256>}, {transform_indices = @transform_5, window_bounds = array<i64: 1, 1, 256>}]} {
    %0 = tpu.iota {dimensions = array<i32: 0>} : vector<8x256xi32>
    %c0_i32 = arith.constant 0 : i32
    %1 = vector.broadcast %c0_i32 : i32 to vector<8x256xi32>
    %2 = arith.cmpi eq, %0, %1 : vector<8x256xi32>
    %3 = arith.extui %2 : vector<8x256xi1> to vector<8x256xi32>
    %4 = arith.sitofp %3 : vector<8x256xi32> to vector<8x256xf32>
    %5 = arith.truncf %4 : vector<8x256xf32> to vector<8x256xbf16>
    %c144 = arith.constant 144 : index
    %c0 = arith.constant 0 : index
    %6 = vector.load %arg7[%c144, %c0] : memref<152x256xbf16, #tpu.memory_space<vmem>>, vector<8x256xbf16>
    tpu.vector_store %arg7[%c144, %c0], %5 {strides = array<i32>} : memref<152x256xbf16, #tpu.memory_space<vmem>>, vector<8x256xbf16>,
    %c0_0 = arith.constant 0 : index
    %c0_1 = arith.constant 0 : index
    %7 = vector.load %arg5[%c0_0, %c0_1] : memref<8x256xf32, #tpu.memory_space<vmem>>, vector<8x256xf32>
    %c0_2 = arith.constant 0 : index
    %c0_3 = arith.constant 0 : index
    %c0_4 = arith.constant 0 : index
    %8 = vector.load %arg1[%c0_2, %c0_3, %c0_4] : memref<1x16x256xf32, #tpu.memory_space<vmem>>, vector<1x16x256xf32>
    %9 = vector.shape_cast %8 : vector<1x16x256xf32> to vector<16x256xf32>
    %c0_5 = arith.constant 0 : index
    %c0_6 = arith.constant 0 : index
    %c0_7 = arith.constant 0 : index
    %10 = vector.load %arg3[%c0_5, %c0_6, %c0_7] : memref<9x16x152xbf16, #tpu.memory_space<vmem>>, vector<1x16x152xbf16>
    %11 = vector.shape_cast %10 : vector<1x16x152xbf16> to vector<16x152xbf16>
    %c17_i32 = arith.constant 17 : i32
    %12 = tpu.dynamic_rotate %9 by %c17_i32 dim 1 : vector<16x256xf32>, i32 -> vector<16x256xf32>
    %c0_8 = arith.constant 0 : index
    %c0_9 = arith.constant 0 : index
    %13 = vector.load %arg4[%c0_8, %c0_9] : memref<9x256xf32, #tpu.memory_space<vmem>>, vector<1x256xf32>
    %14 = vector.broadcast %13 : vector<1x256xf32> to vector<16x256xf32>
    %15 = arith.mulf %12, %14 : vector<16x256xf32>
    %16 = arith.truncf %15 : vector<16x256xf32> to vector<16x256xbf16>
    %c0_10 = arith.constant 0 : index
    %c0_11 = arith.constant 0 : index
    %17 = vector.load %arg7[%c0_10, %c0_11] : memref<152x256xbf16, #tpu.memory_space<vmem>>, vector<16x256xbf16>
    tpu.vector_store %arg7[%c0_10, %c0_11], %16 {strides = array<i32>} : memref<152x256xbf16, #tpu.memory_space<vmem>>, vector<16x256xbf16>,
    %c16_i32 = arith.constant 16 : i32
    %18 = tpu.dynamic_rotate %9 by %c16_i32 dim 1 : vector<16x256xf32>, i32 -> vector<16x256xf32>
    %c1 = arith.constant 1 : index
    %c0_12 = arith.constant 0 : index
    %19 = vector.load %arg4[%c1, %c0_12] : memref<9x256xf32, #tpu.memory_space<vmem>>, vector<1x256xf32>
    %20 = vector.broadcast %19 : vector<1x256xf32> to vector<16x256xf32>
    %21 = arith.mulf %18, %20 : vector<16x256xf32>
    %22 = arith.truncf %21 : vector<16x256xf32> to vector<16x256xbf16>
    %c16 = arith.constant 16 : index
    %c0_13 = arith.constant 0 : index
    %23 = vector.load %arg7[%c16, %c0_13] : memref<152x256xbf16, #tpu.memory_space<vmem>>, vector<16x256xbf16>
    tpu.vector_store %arg7[%c16, %c0_13], %22 {strides = array<i32>} : memref<152x256xbf16, #tpu.memory_space<vmem>>, vector<16x256xbf16>,
    %c15_i32 = arith.constant 15 : i32
    %24 = tpu.dynamic_rotate %9 by %c15_i32 dim 1 : vector<16x256xf32>, i32 -> vector<16x256xf32>
    %c2 = arith.constant 2 : index
    %c0_14 = arith.constant 0 : index
    %25 = vector.load %arg4[%c2, %c0_14] : memref<9x256xf32, #tpu.memory_space<vmem>>, vector<1x256xf32>
    %26 = vector.broadcast %25 : vector<1x256xf32> to vector<16x256xf32>
    %27 = arith.mulf %24, %26 : vector<16x256xf32>
    %28 = arith.truncf %27 : vector<16x256xf32> to vector<16x256xbf16>
    %c32 = arith.constant 32 : index
    %c0_15 = arith.constant 0 : index
    %29 = vector.load %arg7[%c32, %c0_15] : memref<152x256xbf16, #tpu.memory_space<vmem>>, vector<16x256xbf16>
    tpu.vector_store %arg7[%c32, %c0_15], %28 {strides = array<i32>} : memref<152x256xbf16, #tpu.memory_space<vmem>>, vector<16x256xbf16>,
    %c1_i32 = arith.constant 1 : i32
    %30 = tpu.dynamic_rotate %9 by %c1_i32 dim 1 : vector<16x256xf32>, i32 -> vector<16x256xf32>
    %c3 = arith.constant 3 : index
    %c0_16 = arith.constant 0 : index
    %31 = vector.load %arg4[%c3, %c0_16] : memref<9x256xf32, #tpu.memory_space<vmem>>, vector<1x256xf32>
    %32 = vector.broadcast %31 : vector<1x256xf32> to vector<16x256xf32>
    %33 = arith.mulf %30, %32 : vector<16x256xf32>
    %34 = arith.truncf %33 : vector<16x256xf32> to vector<16x256xbf16>
    %c48 = arith.constant 48 : index
    %c0_17 = arith.constant 0 : index
    %35 = vector.load %arg7[%c48, %c0_17] : memref<152x256xbf16, #tpu.memory_space<vmem>>, vector<16x256xbf16>
    tpu.vector_store %arg7[%c48, %c0_17], %34 {strides = array<i32>} : memref<152x256xbf16, #tpu.memory_space<vmem>>, vector<16x256xbf16>,
    %36 = arith.truncf %9 : vector<16x256xf32> to vector<16x256xbf16>
    %c64 = arith.constant 64 : index
    %c0_18 = arith.constant 0 : index
    %37 = vector.load %arg7[%c64, %c0_18] : memref<152x256xbf16, #tpu.memory_space<vmem>>, vector<16x256xbf16>
    tpu.vector_store %arg7[%c64, %c0_18], %36 {strides = array<i32>} : memref<152x256xbf16, #tpu.memory_space<vmem>>, vector<16x256xbf16>,
    %c255_i32 = arith.constant 255 : i32
    %38 = tpu.dynamic_rotate %9 by %c255_i32 dim 1 : vector<16x256xf32>, i32 -> vector<16x256xf32>
    %c5 = arith.constant 5 : index
    %c0_19 = arith.constant 0 : index
    %39 = vector.load %arg4[%c5, %c0_19] : memref<9x256xf32, #tpu.memory_space<vmem>>, vector<1x256xf32>
    %40 = vector.broadcast %39 : vector<1x256xf32> to vector<16x256xf32>
    %41 = arith.mulf %38, %40 : vector<16x256xf32>
    %42 = arith.truncf %41 : vector<16x256xf32> to vector<16x256xbf16>
    %c80 = arith.constant 80 : index
    %c0_20 = arith.constant 0 : index
    %43 = vector.load %arg7[%c80, %c0_20] : memref<152x256xbf16, #tpu.memory_space<vmem>>, vector<16x256xbf16>
    tpu.vector_store %arg7[%c80, %c0_20], %42 {strides = array<i32>} : memref<152x256xbf16, #tpu.memory_space<vmem>>, vector<16x256xbf16>,
    %c241_i32 = arith.constant 241 : i32
    %44 = tpu.dynamic_rotate %9 by %c241_i32 dim 1 : vector<16x256xf32>, i32 -> vector<16x256xf32>
    %c6 = arith.constant 6 : index
    %c0_21 = arith.constant 0 : index
    %45 = vector.load %arg4[%c6, %c0_21] : memref<9x256xf32, #tpu.memory_space<vmem>>, vector<1x256xf32>
    %46 = vector.broadcast %45 : vector<1x256xf32> to vector<16x256xf32>
    %47 = arith.mulf %44, %46 : vector<16x256xf32>
    %48 = arith.truncf %47 : vector<16x256xf32> to vector<16x256xbf16>
    %c96 = arith.constant 96 : index
    %c0_22 = arith.constant 0 : index
    %49 = vector.load %arg7[%c96, %c0_22] : memref<152x256xbf16, #tpu.memory_space<vmem>>, vector<16x256xbf16>
    tpu.vector_store %arg7[%c96, %c0_22], %48 {strides = array<i32>} : memref<152x256xbf16, #tpu.memory_space<vmem>>, vector<16x256xbf16>,
    %c240_i32 = arith.constant 240 : i32
    %50 = tpu.dynamic_rotate %9 by %c240_i32 dim 1 : vector<16x256xf32>, i32 -> vector<16x256xf32>
    %c7 = arith.constant 7 : index
    %c0_23 = arith.constant 0 : index
    %51 = vector.load %arg4[%c7, %c0_23] : memref<9x256xf32, #tpu.memory_space<vmem>>, vector<1x256xf32>
    %52 = vector.broadcast %51 : vector<1x256xf32> to vector<16x256xf32>
    %53 = arith.mulf %50, %52 : vector<16x256xf32>
    %54 = arith.truncf %53 : vector<16x256xf32> to vector<16x256xbf16>
    %c112 = arith.constant 112 : index
    %c0_24 = arith.constant 0 : index
    %55 = vector.load %arg7[%c112, %c0_24] : memref<152x256xbf16, #tpu.memory_space<vmem>>, vector<16x256xbf16>
    tpu.vector_store %arg7[%c112, %c0_24], %54 {strides = array<i32>} : memref<152x256xbf16, #tpu.memory_space<vmem>>, vector<16x256xbf16>,
    %c239_i32 = arith.constant 239 : i32
    %56 = tpu.dynamic_rotate %9 by %c239_i32 dim 1 : vector<16x256xf32>, i32 -> vector<16x256xf32>
    %c8 = arith.constant 8 : index
    %c0_25 = arith.constant 0 : index
    %57 = vector.load %arg4[%c8, %c0_25] : memref<9x256xf32, #tpu.memory_space<vmem>>, vector<1x256xf32>
    %58 = vector.broadcast %57 : vector<1x256xf32> to vector<16x256xf32>
    %59 = arith.mulf %56, %58 : vector<16x256xf32>
    %60 = arith.truncf %59 : vector<16x256xf32> to vector<16x256xbf16>
    %c128 = arith.constant 128 : index
    %c0_26 = arith.constant 0 : index
    %61 = vector.load %arg7[%c128, %c0_26] : memref<152x256xbf16, #tpu.memory_space<vmem>>, vector<16x256xbf16>
    tpu.vector_store %arg7[%c128, %c0_26], %60 {strides = array<i32>} : memref<152x256xbf16, #tpu.memory_space<vmem>>, vector<16x256xbf16>,
    %c0_27 = arith.constant 0 : index
    %c0_28 = arith.constant 0 : index
    %62 = vector.load %arg7[%c0_27, %c0_28] : memref<152x256xbf16, #tpu.memory_space<vmem>>, vector<152x256xbf16>
    %cst = arith.constant dense<0.000000e+00> : vector<16x256xf32>
    %63 = tpu.matmul %11, %62, %cst {dimension_numbers = #tpu.dot_dimension_numbers<[1], [0], [0], [1], [0, 0, 1, 1], [], []>} : vector<16x152xbf16>, vector<152x256xbf16>, vector<16x256xf32> -> vector<16x256xf32>
    %cst_29 = arith.constant 0.000000e+00 : f32
    %64 = vector.broadcast %cst_29 : f32 to vector<16x256xf32>
    %65 = arith.cmpf ogt, %63, %64 : vector<16x256xf32>
    %cst_30 = arith.constant 0.00999999977 : f32
    %66 = vector.broadcast %cst_30 : f32 to vector<16x256xf32>
    %67 = arith.mulf %66, %63 : vector<16x256xf32>
    %68 = arith.select %65, %63, %67 : vector<16x256xi1>, vector<16x256xf32>
    %c1_31 = arith.constant 1 : index
    %c0_32 = arith.constant 0 : index
    %c0_33 = arith.constant 0 : index
    %69 = vector.load %arg3[%c1_31, %c0_32, %c0_33] : memref<9x16x152xbf16, #tpu.memory_space<vmem>>, vector<1x16x152xbf16>
    %70 = vector.shape_cast %69 : vector<1x16x152xbf16> to vector<16x152xbf16>
    %c17_i32_34 = arith.constant 17 : i32
    %71 = tpu.dynamic_rotate %68 by %c17_i32_34 dim 1 : vector<16x256xf32>, i32 -> vector<16x256xf32>
    %c0_35 = arith.constant 0 : index
    %c0_36 = arith.constant 0 : index
    %72 = vector.load %arg4[%c0_35, %c0_36] : memref<9x256xf32, #tpu.memory_space<vmem>>, vector<1x256xf32>
    %73 = vector.broadcast %72 : vector<1x256xf32> to vector<16x256xf32>
    %74 = arith.mulf %71, %73 : vector<16x256xf32>
    %75 = arith.truncf %74 : vector<16x256xf32> to vector<16x256xbf16>
    %c0_37 = arith.constant 0 : index
    %c0_38 = arith.constant 0 : index
    %76 = vector.load %arg7[%c0_37, %c0_38] : memref<152x256xbf16, #tpu.memory_space<vmem>>, vector<16x256xbf16>
    tpu.vector_store %arg7[%c0_37, %c0_38], %75 {strides = array<i32>} : memref<152x256xbf16, #tpu.memory_space<vmem>>, vector<16x256xbf16>,
    %c16_i32_39 = arith.constant 16 : i32
    %77 = tpu.dynamic_rotate %68 by %c16_i32_39 dim 1 : vector<16x256xf32>, i32 -> vector<16x256xf32>
    %c1_40 = arith.constant 1 : index
    %c0_41 = arith.constant 0 : index
    %78 = vector.load %arg4[%c1_40, %c0_41] : memref<9x256xf32, #tpu.memory_space<vmem>>, vector<1x256xf32>
    %79 = vector.broadcast %78 : vector<1x256xf32> to vector<16x256xf32>
    %80 = arith.mulf %77, %79 : vector<16x256xf32>
    %81 = arith.truncf %80 : vector<16x256xf32> to vector<16x256xbf16>
    %c16_42 = arith.constant 16 : index
    %c0_43 = arith.constant 0 : index
    %82 = vector.load %arg7[%c16_42, %c0_43] : memref<152x256xbf16, #tpu.memory_space<vmem>>, vector<16x256xbf16>
    tpu.vector_store %arg7[%c16_42, %c0_43], %81 {strides = array<i32>} : memref<152x256xbf16, #tpu.memory_space<vmem>>, vector<16x256xbf16>,
    %c15_i32_44 = arith.constant 15 : i32
    %83 = tpu.dynamic_rotate %68 by %c15_i32_44 dim 1 : vector<16x256xf32>, i32 -> vector<16x256xf32>
    %c2_45 = arith.constant 2 : index
    %c0_46 = arith.constant 0 : index
    %84 = vector.load %arg4[%c2_45, %c0_46] : memref<9x256xf32, #tpu.memory_space<vmem>>, vector<1x256xf32>
    %85 = vector.broadcast %84 : vector<1x256xf32> to vector<16x256xf32>
    %86 = arith.mulf %83, %85 : vector<16x256xf32>
    %87 = arith.truncf %86 : vector<16x256xf32> to vector<16x256xbf16>
    %c32_47 = arith.constant 32 : index
    %c0_48 = arith.constant 0 : index
    %88 = vector.load %arg7[%c32_47, %c0_48] : memref<152x256xbf16, #tpu.memory_space<vmem>>, vector<16x256xbf16>
    tpu.vector_store %arg7[%c32_47, %c0_48], %87 {strides = array<i32>} : memref<152x256xbf16, #tpu.memory_space<vmem>>, vector<16x256xbf16>,
    %c1_i32_49 = arith.constant 1 : i32
    %89 = tpu.dynamic_rotate %68 by %c1_i32_49 dim 1 : vector<16x256xf32>, i32 -> vector<16x256xf32>
    %c3_50 = arith.constant 3 : index
    %c0_51 = arith.constant 0 : index
    %90 = vector.load %arg4[%c3_50, %c0_51] : memref<9x256xf32, #tpu.memory_space<vmem>>, vector<1x256xf32>
    %91 = vector.broadcast %90 : vector<1x256xf32> to vector<16x256xf32>
    %92 = arith.mulf %89, %91 : vector<16x256xf32>
    %93 = arith.truncf %92 : vector<16x256xf32> to vector<16x256xbf16>
    %c48_52 = arith.constant 48 : index
    %c0_53 = arith.constant 0 : index
    %94 = vector.load %arg7[%c48_52, %c0_53] : memref<152x256xbf16, #tpu.memory_space<vmem>>, vector<16x256xbf16>
    tpu.vector_store %arg7[%c48_52, %c0_53], %93 {strides = array<i32>} : memref<152x256xbf16, #tpu.memory_space<vmem>>, vector<16x256xbf16>,
    %95 = arith.truncf %68 : vector<16x256xf32> to vector<16x256xbf16>
    %c64_54 = arith.constant 64 : index
    %c0_55 = arith.constant 0 : index
    %96 = vector.load %arg7[%c64_54, %c0_55] : memref<152x256xbf16, #tpu.memory_space<vmem>>, vector<16x256xbf16>
    tpu.vector_store %arg7[%c64_54, %c0_55], %95 {strides = array<i32>} : memref<152x256xbf16, #tpu.memory_space<vmem>>, vector<16x256xbf16>,
    %c255_i32_56 = arith.constant 255 : i32
    %97 = tpu.dynamic_rotate %68 by %c255_i32_56 dim 1 : vector<16x256xf32>, i32 -> vector<16x256xf32>
    %c5_57 = arith.constant 5 : index
    %c0_58 = arith.constant 0 : index
    %98 = vector.load %arg4[%c5_57, %c0_58] : memref<9x256xf32, #tpu.memory_space<vmem>>, vector<1x256xf32>
    %99 = vector.broadcast %98 : vector<1x256xf32> to vector<16x256xf32>
    %100 = arith.mulf %97, %99 : vector<16x256xf32>
    %101 = arith.truncf %100 : vector<16x256xf32> to vector<16x256xbf16>
    %c80_59 = arith.constant 80 : index
    %c0_60 = arith.constant 0 : index
    %102 = vector.load %arg7[%c80_59, %c0_60] : memref<152x256xbf16, #tpu.memory_space<vmem>>, vector<16x256xbf16>
    tpu.vector_store %arg7[%c80_59, %c0_60], %101 {strides = array<i32>} : memref<152x256xbf16, #tpu.memory_space<vmem>>, vector<16x256xbf16>,
    %c241_i32_61 = arith.constant 241 : i32
    %103 = tpu.dynamic_rotate %68 by %c241_i32_61 dim 1 : vector<16x256xf32>, i32 -> vector<16x256xf32>
    %c6_62 = arith.constant 6 : index
    %c0_63 = arith.constant 0 : index
    %104 = vector.load %arg4[%c6_62, %c0_63] : memref<9x256xf32, #tpu.memory_space<vmem>>, vector<1x256xf32>
    %105 = vector.broadcast %104 : vector<1x256xf32> to vector<16x256xf32>
    %106 = arith.mulf %103, %105 : vector<16x256xf32>
    %107 = arith.truncf %106 : vector<16x256xf32> to vector<16x256xbf16>
    %c96_64 = arith.constant 96 : index
    %c0_65 = arith.constant 0 : index
    %108 = vector.load %arg7[%c96_64, %c0_65] : memref<152x256xbf16, #tpu.memory_space<vmem>>, vector<16x256xbf16>
    tpu.vector_store %arg7[%c96_64, %c0_65], %107 {strides = array<i32>} : memref<152x256xbf16, #tpu.memory_space<vmem>>, vector<16x256xbf16>,
    %c240_i32_66 = arith.constant 240 : i32
    %109 = tpu.dynamic_rotate %68 by %c240_i32_66 dim 1 : vector<16x256xf32>, i32 -> vector<16x256xf32>
    %c7_67 = arith.constant 7 : index
    %c0_68 = arith.constant 0 : index
    %110 = vector.load %arg4[%c7_67, %c0_68] : memref<9x256xf32, #tpu.memory_space<vmem>>, vector<1x256xf32>
    %111 = vector.broadcast %110 : vector<1x256xf32> to vector<16x256xf32>
    %112 = arith.mulf %109, %111 : vector<16x256xf32>
    %113 = arith.truncf %112 : vector<16x256xf32> to vector<16x256xbf16>
    %c112_69 = arith.constant 112 : index
    %c0_70 = arith.constant 0 : index
    %114 = vector.load %arg7[%c112_69, %c0_70] : memref<152x256xbf16, #tpu.memory_space<vmem>>, vector<16x256xbf16>
    tpu.vector_store %arg7[%c112_69, %c0_70], %113 {strides = array<i32>} : memref<152x256xbf16, #tpu.memory_space<vmem>>, vector<16x256xbf16>,
    %c239_i32_71 = arith.constant 239 : i32
    %115 = tpu.dynamic_rotate %68 by %c239_i32_71 dim 1 : vector<16x256xf32>, i32 -> vector<16x256xf32>
    %c8_72 = arith.constant 8 : index
    %c0_73 = arith.constant 0 : index
    %116 = vector.load %arg4[%c8_72, %c0_73] : memref<9x256xf32, #tpu.memory_space<vmem>>, vector<1x256xf32>
    %117 = vector.broadcast %116 : vector<1x256xf32> to vector<16x256xf32>
    %118 = arith.mulf %115, %117 : vector<16x256xf32>
    %119 = arith.truncf %118 : vector<16x256xf32> to vector<16x256xbf16>
    %c128_74 = arith.constant 128 : index
    %c0_75 = arith.constant 0 : index
    %120 = vector.load %arg7[%c128_74, %c0_75] : memref<152x256xbf16, #tpu.memory_space<vmem>>, vector<16x256xbf16>
    tpu.vector_store %arg7[%c128_74, %c0_75], %119 {strides = array<i32>} : memref<152x256xbf16, #tpu.memory_space<vmem>>, vector<16x256xbf16>,
    %c0_76 = arith.constant 0 : index
    %c0_77 = arith.constant 0 : index
    %121 = vector.load %arg7[%c0_76, %c0_77] : memref<152x256xbf16, #tpu.memory_space<vmem>>, vector<152x256xbf16>
    %cst_78 = arith.constant dense<0.000000e+00> : vector<16x256xf32>
    %122 = tpu.matmul %70, %121, %cst_78 {dimension_numbers = #tpu.dot_dimension_numbers<[1], [0], [0], [1], [0, 0, 1, 1], [], []>} : vector<16x152xbf16>, vector<152x256xbf16>, vector<16x256xf32> -> vector<16x256xf32>
    %cst_79 = arith.constant 0.000000e+00 : f32
    %123 = vector.broadcast %cst_79 : f32 to vector<16x256xf32>
    %124 = arith.cmpf ogt, %122, %123 : vector<16x256xf32>
    %cst_80 = arith.constant 0.00999999977 : f32
    %125 = vector.broadcast %cst_80 : f32 to vector<16x256xf32>
    %126 = arith.mulf %125, %122 : vector<16x256xf32>
    %127 = arith.select %124, %122, %126 : vector<16x256xi1>, vector<16x256xf32>
    %c0_81 = arith.constant 0 : index
    %c0_82 = arith.constant 0 : index
    %c0_83 = arith.constant 0 : index
    %128 = vector.load %arg2[%c0_81, %c0_82, %c0_83] : memref<8x16x8xf32, #tpu.memory_space<vmem>>, vector<1x16x8xf32>
    %129 = vector.shape_cast %128 : vector<1x16x8xf32> to vector<16x8xf32>
    %cst_84 = arith.constant dense<0.000000e+00> : vector<16x256xf32>
    %130 = tpu.matmul %129, %7, %cst_84 {dimension_numbers = #tpu.dot_dimension_numbers<[1], [0], [0], [1], [0, 0, 1, 1], [], []>} : vector<16x8xf32>, vector<8x256xf32>, vector<16x256xf32> -> vector<16x256xf32>
    %c1_85 = arith.constant 1 : index
    %c0_86 = arith.constant 0 : index
    %c0_87 = arith.constant 0 : index
    %131 = vector.load %arg2[%c1_85, %c0_86, %c0_87] : memref<8x16x8xf32, #tpu.memory_space<vmem>>, vector<1x16x8xf32>
    %132 = vector.shape_cast %131 : vector<1x16x8xf32> to vector<16x8xf32>
    %cst_88 = arith.constant dense<0.000000e+00> : vector<16x256xf32>
    %133 = tpu.matmul %132, %7, %cst_88 {dimension_numbers = #tpu.dot_dimension_numbers<[1], [0], [0], [1], [0, 0, 1, 1], [], []>} : vector<16x8xf32>, vector<8x256xf32>, vector<16x256xf32> -> vector<16x256xf32>
    %134 = arith.mulf %130, %127 : vector<16x256xf32>
    %135 = arith.addf %134, %133 : vector<16x256xf32>
    %136 = arith.addf %135, %68 : vector<16x256xf32>
    %c2_89 = arith.constant 2 : index
    %c0_90 = arith.constant 0 : index
    %c0_91 = arith.constant 0 : index
    %137 = vector.load %arg3[%c2_89, %c0_90, %c0_91] : memref<9x16x152xbf16, #tpu.memory_space<vmem>>, vector<1x16x152xbf16>
    %138 = vector.shape_cast %137 : vector<1x16x152xbf16> to vector<16x152xbf16>
    %c17_i32_92 = arith.constant 17 : i32
    %139 = tpu.dynamic_rotate %136 by %c17_i32_92 dim 1 : vector<16x256xf32>, i32 -> vector<16x256xf32>
    %c0_93 = arith.constant 0 : index
    %c0_94 = arith.constant 0 : index
    %140 = vector.load %arg4[%c0_93, %c0_94] : memref<9x256xf32, #tpu.memory_space<vmem>>, vector<1x256xf32>
    %141 = vector.broadcast %140 : vector<1x256xf32> to vector<16x256xf32>
    %142 = arith.mulf %139, %141 : vector<16x256xf32>
    %143 = arith.truncf %142 : vector<16x256xf32> to vector<16x256xbf16>
    %c0_95 = arith.constant 0 : index
    %c0_96 = arith.constant 0 : index
    %144 = vector.load %arg7[%c0_95, %c0_96] : memref<152x256xbf16, #tpu.memory_space<vmem>>, vector<16x256xbf16>
    tpu.vector_store %arg7[%c0_95, %c0_96], %143 {strides = array<i32>} : memref<152x256xbf16, #tpu.memory_space<vmem>>, vector<16x256xbf16>,
    %c16_i32_97 = arith.constant 16 : i32
    %145 = tpu.dynamic_rotate %136 by %c16_i32_97 dim 1 : vector<16x256xf32>, i32 -> vector<16x256xf32>
    %c1_98 = arith.constant 1 : index
    %c0_99 = arith.constant 0 : index
    %146 = vector.load %arg4[%c1_98, %c0_99] : memref<9x256xf32, #tpu.memory_space<vmem>>, vector<1x256xf32>
    %147 = vector.broadcast %146 : vector<1x256xf32> to vector<16x256xf32>
    %148 = arith.mulf %145, %147 : vector<16x256xf32>
    %149 = arith.truncf %148 : vector<16x256xf32> to vector<16x256xbf16>
    %c16_100 = arith.constant 16 : index
    %c0_101 = arith.constant 0 : index
    %150 = vector.load %arg7[%c16_100, %c0_101] : memref<152x256xbf16, #tpu.memory_space<vmem>>, vector<16x256xbf16>
    tpu.vector_store %arg7[%c16_100, %c0_101], %149 {strides = array<i32>} : memref<152x256xbf16, #tpu.memory_space<vmem>>, vector<16x256xbf16>,
    %c15_i32_102 = arith.constant 15 : i32
    %151 = tpu.dynamic_rotate %136 by %c15_i32_102 dim 1 : vector<16x256xf32>, i32 -> vector<16x256xf32>
    %c2_103 = arith.constant 2 : index
    %c0_104 = arith.constant 0 : index
    %152 = vector.load %arg4[%c2_103, %c0_104] : memref<9x256xf32, #tpu.memory_space<vmem>>, vector<1x256xf32>
    %153 = vector.broadcast %152 : vector<1x256xf32> to vector<16x256xf32>
    %154 = arith.mulf %151, %153 : vector<16x256xf32>
    %155 = arith.truncf %154 : vector<16x256xf32> to vector<16x256xbf16>
    %c32_105 = arith.constant 32 : index
    %c0_106 = arith.constant 0 : index
    %156 = vector.load %arg7[%c32_105, %c0_106] : memref<152x256xbf16, #tpu.memory_space<vmem>>, vector<16x256xbf16>
    tpu.vector_store %arg7[%c32_105, %c0_106], %155 {strides = array<i32>} : memref<152x256xbf16, #tpu.memory_space<vmem>>, vector<16x256xbf16>,
    %c1_i32_107 = arith.constant 1 : i32
    %157 = tpu.dynamic_rotate %136 by %c1_i32_107 dim 1 : vector<16x256xf32>, i32 -> vector<16x256xf32>
    %c3_108 = arith.constant 3 : index
    %c0_109 = arith.constant 0 : index
    %158 = vector.load %arg4[%c3_108, %c0_109] : memref<9x256xf32, #tpu.memory_space<vmem>>, vector<1x256xf32>
    %159 = vector.broadcast %158 : vector<1x256xf32> to vector<16x256xf32>
    %160 = arith.mulf %157, %159 : vector<16x256xf32>
    %161 = arith.truncf %160 : vector<16x256xf32> to vector<16x256xbf16>
    %c48_110 = arith.constant 48 : index
    %c0_111 = arith.constant 0 : index
    %162 = vector.load %arg7[%c48_110, %c0_111] : memref<152x256xbf16, #tpu.memory_space<vmem>>, vector<16x256xbf16>
    tpu.vector_store %arg7[%c48_110, %c0_111], %161 {strides = array<i32>} : memref<152x256xbf16, #tpu.memory_space<vmem>>, vector<16x256xbf16>,
    %163 = arith.truncf %136 : vector<16x256xf32> to vector<16x256xbf16>
    %c64_112 = arith.constant 64 : index
    %c0_113 = arith.constant 0 : index
    %164 = vector.load %arg7[%c64_112, %c0_113] : memref<152x256xbf16, #tpu.memory_space<vmem>>, vector<16x256xbf16>
    tpu.vector_store %arg7[%c64_112, %c0_113], %163 {strides = array<i32>} : memref<152x256xbf16, #tpu.memory_space<vmem>>, vector<16x256xbf16>,
    %c255_i32_114 = arith.constant 255 : i32
    %165 = tpu.dynamic_rotate %136 by %c255_i32_114 dim 1 : vector<16x256xf32>, i32 -> vector<16x256xf32>
    %c5_115 = arith.constant 5 : index
    %c0_116 = arith.constant 0 : index
    %166 = vector.load %arg4[%c5_115, %c0_116] : memref<9x256xf32, #tpu.memory_space<vmem>>, vector<1x256xf32>
    %167 = vector.broadcast %166 : vector<1x256xf32> to vector<16x256xf32>
    %168 = arith.mulf %165, %167 : vector<16x256xf32>
    %169 = arith.truncf %168 : vector<16x256xf32> to vector<16x256xbf16>
    %c80_117 = arith.constant 80 : index
    %c0_118 = arith.constant 0 : index
    %170 = vector.load %arg7[%c80_117, %c0_118] : memref<152x256xbf16, #tpu.memory_space<vmem>>, vector<16x256xbf16>
    tpu.vector_store %arg7[%c80_117, %c0_118], %169 {strides = array<i32>} : memref<152x256xbf16, #tpu.memory_space<vmem>>, vector<16x256xbf16>,
    %c241_i32_119 = arith.constant 241 : i32
    %171 = tpu.dynamic_rotate %136 by %c241_i32_119 dim 1 : vector<16x256xf32>, i32 -> vector<16x256xf32>
    %c6_120 = arith.constant 6 : index
    %c0_121 = arith.constant 0 : index
    %172 = vector.load %arg4[%c6_120, %c0_121] : memref<9x256xf32, #tpu.memory_space<vmem>>, vector<1x256xf32>
    %173 = vector.broadcast %172 : vector<1x256xf32> to vector<16x256xf32>
    %174 = arith.mulf %171, %173 : vector<16x256xf32>
    %175 = arith.truncf %174 : vector<16x256xf32> to vector<16x256xbf16>
    %c96_122 = arith.constant 96 : index
    %c0_123 = arith.constant 0 : index
    %176 = vector.load %arg7[%c96_122, %c0_123] : memref<152x256xbf16, #tpu.memory_space<vmem>>, vector<16x256xbf16>
    tpu.vector_store %arg7[%c96_122, %c0_123], %175 {strides = array<i32>} : memref<152x256xbf16, #tpu.memory_space<vmem>>, vector<16x256xbf16>,
    %c240_i32_124 = arith.constant 240 : i32
    %177 = tpu.dynamic_rotate %136 by %c240_i32_124 dim 1 : vector<16x256xf32>, i32 -> vector<16x256xf32>
    %c7_125 = arith.constant 7 : index
    %c0_126 = arith.constant 0 : index
    %178 = vector.load %arg4[%c7_125, %c0_126] : memref<9x256xf32, #tpu.memory_space<vmem>>, vector<1x256xf32>
    %179 = vector.broadcast %178 : vector<1x256xf32> to vector<16x256xf32>
    %180 = arith.mulf %177, %179 : vector<16x256xf32>
    %181 = arith.truncf %180 : vector<16x256xf32> to vector<16x256xbf16>
    %c112_127 = arith.constant 112 : index
    %c0_128 = arith.constant 0 : index
    %182 = vector.load %arg7[%c112_127, %c0_128] : memref<152x256xbf16, #tpu.memory_space<vmem>>, vector<16x256xbf16>
    tpu.vector_store %arg7[%c112_127, %c0_128], %181 {strides = array<i32>} : memref<152x256xbf16, #tpu.memory_space<vmem>>, vector<16x256xbf16>,
    %c239_i32_129 = arith.constant 239 : i32
    %183 = tpu.dynamic_rotate %136 by %c239_i32_129 dim 1 : vector<16x256xf32>, i32 -> vector<16x256xf32>
    %c8_130 = arith.constant 8 : index
    %c0_131 = arith.constant 0 : index
    %184 = vector.load %arg4[%c8_130, %c0_131] : memref<9x256xf32, #tpu.memory_space<vmem>>, vector<1x256xf32>
    %185 = vector.broadcast %184 : vector<1x256xf32> to vector<16x256xf32>
    %186 = arith.mulf %183, %185 : vector<16x256xf32>
    %187 = arith.truncf %186 : vector<16x256xf32> to vector<16x256xbf16>
    %c128_132 = arith.constant 128 : index
    %c0_133 = arith.constant 0 : index
    %188 = vector.load %arg7[%c128_132, %c0_133] : memref<152x256xbf16, #tpu.memory_space<vmem>>, vector<16x256xbf16>
    tpu.vector_store %arg7[%c128_132, %c0_133], %187 {strides = array<i32>} : memref<152x256xbf16, #tpu.memory_space<vmem>>, vector<16x256xbf16>,
    %c0_134 = arith.constant 0 : index
    %c0_135 = arith.constant 0 : index
    %189 = vector.load %arg7[%c0_134, %c0_135] : memref<152x256xbf16, #tpu.memory_space<vmem>>, vector<152x256xbf16>
    %cst_136 = arith.constant dense<0.000000e+00> : vector<16x256xf32>
    %190 = tpu.matmul %138, %189, %cst_136 {dimension_numbers = #tpu.dot_dimension_numbers<[1], [0], [0], [1], [0, 0, 1, 1], [], []>} : vector<16x152xbf16>, vector<152x256xbf16>, vector<16x256xf32> -> vector<16x256xf32>
    %cst_137 = arith.constant 0.000000e+00 : f32
    %191 = vector.broadcast %cst_137 : f32 to vector<16x256xf32>
    %192 = arith.cmpf ogt, %190, %191 : vector<16x256xf32>
    %cst_138 = arith.constant 0.00999999977 : f32
    %193 = vector.broadcast %cst_138 : f32 to vector<16x256xf32>
    %194 = arith.mulf %193, %190 : vector<16x256xf32>
    %195 = arith.select %192, %190, %194 : vector<16x256xi1>, vector<16x256xf32>
    %c3_139 = arith.constant 3 : index
    %c0_140 = arith.constant 0 : index
    %c0_141 = arith.constant 0 : index
    %196 = vector.load %arg3[%c3_139, %c0_140, %c0_141] : memref<9x16x152xbf16, #tpu.memory_space<vmem>>, vector<1x16x152xbf16>
    %197 = vector.shape_cast %196 : vector<1x16x152xbf16> to vector<16x152xbf16>
    %c17_i32_142 = arith.constant 17 : i32
    %198 = tpu.dynamic_rotate %195 by %c17_i32_142 dim 1 : vector<16x256xf32>, i32 -> vector<16x256xf32>
    %c0_143 = arith.constant 0 : index
    %c0_144 = arith.constant 0 : index
    %199 = vector.load %arg4[%c0_143, %c0_144] : memref<9x256xf32, #tpu.memory_space<vmem>>, vector<1x256xf32>
    %200 = vector.broadcast %199 : vector<1x256xf32> to vector<16x256xf32>
    %201 = arith.mulf %198, %200 : vector<16x256xf32>
    %202 = arith.truncf %201 : vector<16x256xf32> to vector<16x256xbf16>
    %c0_145 = arith.constant 0 : index
    %c0_146 = arith.constant 0 : index
    %203 = vector.load %arg7[%c0_145, %c0_146] : memref<152x256xbf16, #tpu.memory_space<vmem>>, vector<16x256xbf16>
    tpu.vector_store %arg7[%c0_145, %c0_146], %202 {strides = array<i32>} : memref<152x256xbf16, #tpu.memory_space<vmem>>, vector<16x256xbf16>,
    %c16_i32_147 = arith.constant 16 : i32
    %204 = tpu.dynamic_rotate %195 by %c16_i32_147 dim 1 : vector<16x256xf32>, i32 -> vector<16x256xf32>
    %c1_148 = arith.constant 1 : index
    %c0_149 = arith.constant 0 : index
    %205 = vector.load %arg4[%c1_148, %c0_149] : memref<9x256xf32, #tpu.memory_space<vmem>>, vector<1x256xf32>
    %206 = vector.broadcast %205 : vector<1x256xf32> to vector<16x256xf32>
    %207 = arith.mulf %204, %206 : vector<16x256xf32>
    %208 = arith.truncf %207 : vector<16x256xf32> to vector<16x256xbf16>
    %c16_150 = arith.constant 16 : index
    %c0_151 = arith.constant 0 : index
    %209 = vector.load %arg7[%c16_150, %c0_151] : memref<152x256xbf16, #tpu.memory_space<vmem>>, vector<16x256xbf16>
    tpu.vector_store %arg7[%c16_150, %c0_151], %208 {strides = array<i32>} : memref<152x256xbf16, #tpu.memory_space<vmem>>, vector<16x256xbf16>,
    %c15_i32_152 = arith.constant 15 : i32
    %210 = tpu.dynamic_rotate %195 by %c15_i32_152 dim 1 : vector<16x256xf32>, i32 -> vector<16x256xf32>
    %c2_153 = arith.constant 2 : index
    %c0_154 = arith.constant 0 : index
    %211 = vector.load %arg4[%c2_153, %c0_154] : memref<9x256xf32, #tpu.memory_space<vmem>>, vector<1x256xf32>
    %212 = vector.broadcast %211 : vector<1x256xf32> to vector<16x256xf32>
    %213 = arith.mulf %210, %212 : vector<16x256xf32>
    %214 = arith.truncf %213 : vector<16x256xf32> to vector<16x256xbf16>
    %c32_155 = arith.constant 32 : index
    %c0_156 = arith.constant 0 : index
    %215 = vector.load %arg7[%c32_155, %c0_156] : memref<152x256xbf16, #tpu.memory_space<vmem>>, vector<16x256xbf16>
    tpu.vector_store %arg7[%c32_155, %c0_156], %214 {strides = array<i32>} : memref<152x256xbf16, #tpu.memory_space<vmem>>, vector<16x256xbf16>,
    %c1_i32_157 = arith.constant 1 : i32
    %216 = tpu.dynamic_rotate %195 by %c1_i32_157 dim 1 : vector<16x256xf32>, i32 -> vector<16x256xf32>
    %c3_158 = arith.constant 3 : index
    %c0_159 = arith.constant 0 : index
    %217 = vector.load %arg4[%c3_158, %c0_159] : memref<9x256xf32, #tpu.memory_space<vmem>>, vector<1x256xf32>
    %218 = vector.broadcast %217 : vector<1x256xf32> to vector<16x256xf32>
    %219 = arith.mulf %216, %218 : vector<16x256xf32>
    %220 = arith.truncf %219 : vector<16x256xf32> to vector<16x256xbf16>
    %c48_160 = arith.constant 48 : index
    %c0_161 = arith.constant 0 : index
    %221 = vector.load %arg7[%c48_160, %c0_161] : memref<152x256xbf16, #tpu.memory_space<vmem>>, vector<16x256xbf16>
    tpu.vector_store %arg7[%c48_160, %c0_161], %220 {strides = array<i32>} : memref<152x256xbf16, #tpu.memory_space<vmem>>, vector<16x256xbf16>,
    %222 = arith.truncf %195 : vector<16x256xf32> to vector<16x256xbf16>
    %c64_162 = arith.constant 64 : index
    %c0_163 = arith.constant 0 : index
    %223 = vector.load %arg7[%c64_162, %c0_163] : memref<152x256xbf16, #tpu.memory_space<vmem>>, vector<16x256xbf16>
    tpu.vector_store %arg7[%c64_162, %c0_163], %222 {strides = array<i32>} : memref<152x256xbf16, #tpu.memory_space<vmem>>, vector<16x256xbf16>,
    %c255_i32_164 = arith.constant 255 : i32
    %224 = tpu.dynamic_rotate %195 by %c255_i32_164 dim 1 : vector<16x256xf32>, i32 -> vector<16x256xf32>
    %c5_165 = arith.constant 5 : index
    %c0_166 = arith.constant 0 : index
    %225 = vector.load %arg4[%c5_165, %c0_166] : memref<9x256xf32, #tpu.memory_space<vmem>>, vector<1x256xf32>
    %226 = vector.broadcast %225 : vector<1x256xf32> to vector<16x256xf32>
    %227 = arith.mulf %224, %226 : vector<16x256xf32>
    %228 = arith.truncf %227 : vector<16x256xf32> to vector<16x256xbf16>
    %c80_167 = arith.constant 80 : index
    %c0_168 = arith.constant 0 : index
    %229 = vector.load %arg7[%c80_167, %c0_168] : memref<152x256xbf16, #tpu.memory_space<vmem>>, vector<16x256xbf16>
    tpu.vector_store %arg7[%c80_167, %c0_168], %228 {strides = array<i32>} : memref<152x256xbf16, #tpu.memory_space<vmem>>, vector<16x256xbf16>,
    %c241_i32_169 = arith.constant 241 : i32
    %230 = tpu.dynamic_rotate %195 by %c241_i32_169 dim 1 : vector<16x256xf32>, i32 -> vector<16x256xf32>
    %c6_170 = arith.constant 6 : index
    %c0_171 = arith.constant 0 : index
    %231 = vector.load %arg4[%c6_170, %c0_171] : memref<9x256xf32, #tpu.memory_space<vmem>>, vector<1x256xf32>
    %232 = vector.broadcast %231 : vector<1x256xf32> to vector<16x256xf32>
    %233 = arith.mulf %230, %232 : vector<16x256xf32>
    %234 = arith.truncf %233 : vector<16x256xf32> to vector<16x256xbf16>
    %c96_172 = arith.constant 96 : index
    %c0_173 = arith.constant 0 : index
    %235 = vector.load %arg7[%c96_172, %c0_173] : memref<152x256xbf16, #tpu.memory_space<vmem>>, vector<16x256xbf16>
    tpu.vector_store %arg7[%c96_172, %c0_173], %234 {strides = array<i32>} : memref<152x256xbf16, #tpu.memory_space<vmem>>, vector<16x256xbf16>,
    %c240_i32_174 = arith.constant 240 : i32
    %236 = tpu.dynamic_rotate %195 by %c240_i32_174 dim 1 : vector<16x256xf32>, i32 -> vector<16x256xf32>
    %c7_175 = arith.constant 7 : index
    %c0_176 = arith.constant 0 : index
    %237 = vector.load %arg4[%c7_175, %c0_176] : memref<9x256xf32, #tpu.memory_space<vmem>>, vector<1x256xf32>
    %238 = vector.broadcast %237 : vector<1x256xf32> to vector<16x256xf32>
    %239 = arith.mulf %236, %238 : vector<16x256xf32>
    %240 = arith.truncf %239 : vector<16x256xf32> to vector<16x256xbf16>
    %c112_177 = arith.constant 112 : index
    %c0_178 = arith.constant 0 : index
    %241 = vector.load %arg7[%c112_177, %c0_178] : memref<152x256xbf16, #tpu.memory_space<vmem>>, vector<16x256xbf16>
    tpu.vector_store %arg7[%c112_177, %c0_178], %240 {strides = array<i32>} : memref<152x256xbf16, #tpu.memory_space<vmem>>, vector<16x256xbf16>,
    %c239_i32_179 = arith.constant 239 : i32
    %242 = tpu.dynamic_rotate %195 by %c239_i32_179 dim 1 : vector<16x256xf32>, i32 -> vector<16x256xf32>
    %c8_180 = arith.constant 8 : index
    %c0_181 = arith.constant 0 : index
    %243 = vector.load %arg4[%c8_180, %c0_181] : memref<9x256xf32, #tpu.memory_space<vmem>>, vector<1x256xf32>
    %244 = vector.broadcast %243 : vector<1x256xf32> to vector<16x256xf32>
    %245 = arith.mulf %242, %244 : vector<16x256xf32>
    %246 = arith.truncf %245 : vector<16x256xf32> to vector<16x256xbf16>
    %c128_182 = arith.constant 128 : index
    %c0_183 = arith.constant 0 : index
    %247 = vector.load %arg7[%c128_182, %c0_183] : memref<152x256xbf16, #tpu.memory_space<vmem>>, vector<16x256xbf16>
    tpu.vector_store %arg7[%c128_182, %c0_183], %246 {strides = array<i32>} : memref<152x256xbf16, #tpu.memory_space<vmem>>, vector<16x256xbf16>,
    %c0_184 = arith.constant 0 : index
    %c0_185 = arith.constant 0 : index
    %248 = vector.load %arg7[%c0_184, %c0_185] : memref<152x256xbf16, #tpu.memory_space<vmem>>, vector<152x256xbf16>
    %cst_186 = arith.constant dense<0.000000e+00> : vector<16x256xf32>
    %249 = tpu.matmul %197, %248, %cst_186 {dimension_numbers = #tpu.dot_dimension_numbers<[1], [0], [0], [1], [0, 0, 1, 1], [], []>} : vector<16x152xbf16>, vector<152x256xbf16>, vector<16x256xf32> -> vector<16x256xf32>
    %cst_187 = arith.constant 0.000000e+00 : f32
    %250 = vector.broadcast %cst_187 : f32 to vector<16x256xf32>
    %251 = arith.cmpf ogt, %249, %250 : vector<16x256xf32>
    %cst_188 = arith.constant 0.00999999977 : f32
    %252 = vector.broadcast %cst_188 : f32 to vector<16x256xf32>
    %253 = arith.mulf %252, %249 : vector<16x256xf32>
    %254 = arith.select %251, %249, %253 : vector<16x256xi1>, vector<16x256xf32>
    %c2_189 = arith.constant 2 : index
    %c0_190 = arith.constant 0 : index
    %c0_191 = arith.constant 0 : index
    %255 = vector.load %arg2[%c2_189, %c0_190, %c0_191] : memref<8x16x8xf32, #tpu.memory_space<vmem>>, vector<1x16x8xf32>
    %256 = vector.shape_cast %255 : vector<1x16x8xf32> to vector<16x8xf32>
    %cst_192 = arith.constant dense<0.000000e+00> : vector<16x256xf32>
    %257 = tpu.matmul %256, %7, %cst_192 {dimension_numbers = #tpu.dot_dimension_numbers<[1], [0], [0], [1], [0, 0, 1, 1], [], []>} : vector<16x8xf32>, vector<8x256xf32>, vector<16x256xf32> -> vector<16x256xf32>
    %c3_193 = arith.constant 3 : index
    %c0_194 = arith.constant 0 : index
    %c0_195 = arith.constant 0 : index
    %258 = vector.load %arg2[%c3_193, %c0_194, %c0_195] : memref<8x16x8xf32, #tpu.memory_space<vmem>>, vector<1x16x8xf32>
    %259 = vector.shape_cast %258 : vector<1x16x8xf32> to vector<16x8xf32>
    %cst_196 = arith.constant dense<0.000000e+00> : vector<16x256xf32>
    %260 = tpu.matmul %259, %7, %cst_196 {dimension_numbers = #tpu.dot_dimension_numbers<[1], [0], [0], [1], [0, 0, 1, 1], [], []>} : vector<16x8xf32>, vector<8x256xf32>, vector<16x256xf32> -> vector<16x256xf32>
    %261 = arith.mulf %257, %254 : vector<16x256xf32>
    %262 = arith.addf %261, %260 : vector<16x256xf32>
    %263 = arith.addf %262, %195 : vector<16x256xf32>
    %c4 = arith.constant 4 : index
    %c0_197 = arith.constant 0 : index
    %c0_198 = arith.constant 0 : index
    %264 = vector.load %arg3[%c4, %c0_197, %c0_198] : memref<9x16x152xbf16, #tpu.memory_space<vmem>>, vector<1x16x152xbf16>
    %265 = vector.shape_cast %264 : vector<1x16x152xbf16> to vector<16x152xbf16>
    %c17_i32_199 = arith.constant 17 : i32
    %266 = tpu.dynamic_rotate %263 by %c17_i32_199 dim 1 : vector<16x256xf32>, i32 -> vector<16x256xf32>
    %c0_200 = arith.constant 0 : index
    %c0_201 = arith.constant 0 : index
    %267 = vector.load %arg4[%c0_200, %c0_201] : memref<9x256xf32, #tpu.memory_space<vmem>>, vector<1x256xf32>
    %268 = vector.broadcast %267 : vector<1x256xf32> to vector<16x256xf32>
    %269 = arith.mulf %266, %268 : vector<16x256xf32>
    %270 = arith.truncf %269 : vector<16x256xf32> to vector<16x256xbf16>
    %c0_202 = arith.constant 0 : index
    %c0_203 = arith.constant 0 : index
    %271 = vector.load %arg7[%c0_202, %c0_203] : memref<152x256xbf16, #tpu.memory_space<vmem>>, vector<16x256xbf16>
    tpu.vector_store %arg7[%c0_202, %c0_203], %270 {strides = array<i32>} : memref<152x256xbf16, #tpu.memory_space<vmem>>, vector<16x256xbf16>,
    %c16_i32_204 = arith.constant 16 : i32
    %272 = tpu.dynamic_rotate %263 by %c16_i32_204 dim 1 : vector<16x256xf32>, i32 -> vector<16x256xf32>
    %c1_205 = arith.constant 1 : index
    %c0_206 = arith.constant 0 : index
    %273 = vector.load %arg4[%c1_205, %c0_206] : memref<9x256xf32, #tpu.memory_space<vmem>>, vector<1x256xf32>
    %274 = vector.broadcast %273 : vector<1x256xf32> to vector<16x256xf32>
    %275 = arith.mulf %272, %274 : vector<16x256xf32>
    %276 = arith.truncf %275 : vector<16x256xf32> to vector<16x256xbf16>
    %c16_207 = arith.constant 16 : index
    %c0_208 = arith.constant 0 : index
    %277 = vector.load %arg7[%c16_207, %c0_208] : memref<152x256xbf16, #tpu.memory_space<vmem>>, vector<16x256xbf16>
    tpu.vector_store %arg7[%c16_207, %c0_208], %276 {strides = array<i32>} : memref<152x256xbf16, #tpu.memory_space<vmem>>, vector<16x256xbf16>,
    %c15_i32_209 = arith.constant 15 : i32
    %278 = tpu.dynamic_rotate %263 by %c15_i32_209 dim 1 : vector<16x256xf32>, i32 -> vector<16x256xf32>
    %c2_210 = arith.constant 2 : index
    %c0_211 = arith.constant 0 : index
    %279 = vector.load %arg4[%c2_210, %c0_211] : memref<9x256xf32, #tpu.memory_space<vmem>>, vector<1x256xf32>
    %280 = vector.broadcast %279 : vector<1x256xf32> to vector<16x256xf32>
    %281 = arith.mulf %278, %280 : vector<16x256xf32>
    %282 = arith.truncf %281 : vector<16x256xf32> to vector<16x256xbf16>
    %c32_212 = arith.constant 32 : index
    %c0_213 = arith.constant 0 : index
    %283 = vector.load %arg7[%c32_212, %c0_213] : memref<152x256xbf16, #tpu.memory_space<vmem>>, vector<16x256xbf16>
    tpu.vector_store %arg7[%c32_212, %c0_213], %282 {strides = array<i32>} : memref<152x256xbf16, #tpu.memory_space<vmem>>, vector<16x256xbf16>,
    %c1_i32_214 = arith.constant 1 : i32
    %284 = tpu.dynamic_rotate %263 by %c1_i32_214 dim 1 : vector<16x256xf32>, i32 -> vector<16x256xf32>
    %c3_215 = arith.constant 3 : index
    %c0_216 = arith.constant 0 : index
    %285 = vector.load %arg4[%c3_215, %c0_216] : memref<9x256xf32, #tpu.memory_space<vmem>>, vector<1x256xf32>
    %286 = vector.broadcast %285 : vector<1x256xf32> to vector<16x256xf32>
    %287 = arith.mulf %284, %286 : vector<16x256xf32>
    %288 = arith.truncf %287 : vector<16x256xf32> to vector<16x256xbf16>
    %c48_217 = arith.constant 48 : index
    %c0_218 = arith.constant 0 : index
    %289 = vector.load %arg7[%c48_217, %c0_218] : memref<152x256xbf16, #tpu.memory_space<vmem>>, vector<16x256xbf16>
    tpu.vector_store %arg7[%c48_217, %c0_218], %288 {strides = array<i32>} : memref<152x256xbf16, #tpu.memory_space<vmem>>, vector<16x256xbf16>,
    %290 = arith.truncf %263 : vector<16x256xf32> to vector<16x256xbf16>
    %c64_219 = arith.constant 64 : index
    %c0_220 = arith.constant 0 : index
    %291 = vector.load %arg7[%c64_219, %c0_220] : memref<152x256xbf16, #tpu.memory_space<vmem>>, vector<16x256xbf16>
    tpu.vector_store %arg7[%c64_219, %c0_220], %290 {strides = array<i32>} : memref<152x256xbf16, #tpu.memory_space<vmem>>, vector<16x256xbf16>,
    %c255_i32_221 = arith.constant 255 : i32
    %292 = tpu.dynamic_rotate %263 by %c255_i32_221 dim 1 : vector<16x256xf32>, i32 -> vector<16x256xf32>
    %c5_222 = arith.constant 5 : index
    %c0_223 = arith.constant 0 : index
    %293 = vector.load %arg4[%c5_222, %c0_223] : memref<9x256xf32, #tpu.memory_space<vmem>>, vector<1x256xf32>
    %294 = vector.broadcast %293 : vector<1x256xf32> to vector<16x256xf32>
    %295 = arith.mulf %292, %294 : vector<16x256xf32>
    %296 = arith.truncf %295 : vector<16x256xf32> to vector<16x256xbf16>
    %c80_224 = arith.constant 80 : index
    %c0_225 = arith.constant 0 : index
    %297 = vector.load %arg7[%c80_224, %c0_225] : memref<152x256xbf16, #tpu.memory_space<vmem>>, vector<16x256xbf16>
    tpu.vector_store %arg7[%c80_224, %c0_225], %296 {strides = array<i32>} : memref<152x256xbf16, #tpu.memory_space<vmem>>, vector<16x256xbf16>,
    %c241_i32_226 = arith.constant 241 : i32
    %298 = tpu.dynamic_rotate %263 by %c241_i32_226 dim 1 : vector<16x256xf32>, i32 -> vector<16x256xf32>
    %c6_227 = arith.constant 6 : index
    %c0_228 = arith.constant 0 : index
    %299 = vector.load %arg4[%c6_227, %c0_228] : memref<9x256xf32, #tpu.memory_space<vmem>>, vector<1x256xf32>
    %300 = vector.broadcast %299 : vector<1x256xf32> to vector<16x256xf32>
    %301 = arith.mulf %298, %300 : vector<16x256xf32>
    %302 = arith.truncf %301 : vector<16x256xf32> to vector<16x256xbf16>
    %c96_229 = arith.constant 96 : index
    %c0_230 = arith.constant 0 : index
    %303 = vector.load %arg7[%c96_229, %c0_230] : memref<152x256xbf16, #tpu.memory_space<vmem>>, vector<16x256xbf16>
    tpu.vector_store %arg7[%c96_229, %c0_230], %302 {strides = array<i32>} : memref<152x256xbf16, #tpu.memory_space<vmem>>, vector<16x256xbf16>,
    %c240_i32_231 = arith.constant 240 : i32
    %304 = tpu.dynamic_rotate %263 by %c240_i32_231 dim 1 : vector<16x256xf32>, i32 -> vector<16x256xf32>
    %c7_232 = arith.constant 7 : index
    %c0_233 = arith.constant 0 : index
    %305 = vector.load %arg4[%c7_232, %c0_233] : memref<9x256xf32, #tpu.memory_space<vmem>>, vector<1x256xf32>
    %306 = vector.broadcast %305 : vector<1x256xf32> to vector<16x256xf32>
    %307 = arith.mulf %304, %306 : vector<16x256xf32>
    %308 = arith.truncf %307 : vector<16x256xf32> to vector<16x256xbf16>
    %c112_234 = arith.constant 112 : index
    %c0_235 = arith.constant 0 : index
    %309 = vector.load %arg7[%c112_234, %c0_235] : memref<152x256xbf16, #tpu.memory_space<vmem>>, vector<16x256xbf16>
    tpu.vector_store %arg7[%c112_234, %c0_235], %308 {strides = array<i32>} : memref<152x256xbf16, #tpu.memory_space<vmem>>, vector<16x256xbf16>,
    %c239_i32_236 = arith.constant 239 : i32
    %310 = tpu.dynamic_rotate %263 by %c239_i32_236 dim 1 : vector<16x256xf32>, i32 -> vector<16x256xf32>
    %c8_237 = arith.constant 8 : index
    %c0_238 = arith.constant 0 : index
    %311 = vector.load %arg4[%c8_237, %c0_238] : memref<9x256xf32, #tpu.memory_space<vmem>>, vector<1x256xf32>
    %312 = vector.broadcast %311 : vector<1x256xf32> to vector<16x256xf32>
    %313 = arith.mulf %310, %312 : vector<16x256xf32>
    %314 = arith.truncf %313 : vector<16x256xf32> to vector<16x256xbf16>
    %c128_239 = arith.constant 128 : index
    %c0_240 = arith.constant 0 : index
    %315 = vector.load %arg7[%c128_239, %c0_240] : memref<152x256xbf16, #tpu.memory_space<vmem>>, vector<16x256xbf16>
    tpu.vector_store %arg7[%c128_239, %c0_240], %314 {strides = array<i32>} : memref<152x256xbf16, #tpu.memory_space<vmem>>, vector<16x256xbf16>,
    %c0_241 = arith.constant 0 : index
    %c0_242 = arith.constant 0 : index
    %316 = vector.load %arg7[%c0_241, %c0_242] : memref<152x256xbf16, #tpu.memory_space<vmem>>, vector<152x256xbf16>
    %cst_243 = arith.constant dense<0.000000e+00> : vector<16x256xf32>
    %317 = tpu.matmul %265, %316, %cst_243 {dimension_numbers = #tpu.dot_dimension_numbers<[1], [0], [0], [1], [0, 0, 1, 1], [], []>} : vector<16x152xbf16>, vector<152x256xbf16>, vector<16x256xf32> -> vector<16x256xf32>
    %cst_244 = arith.constant 0.000000e+00 : f32
    %318 = vector.broadcast %cst_244 : f32 to vector<16x256xf32>
    %319 = arith.cmpf ogt, %317, %318 : vector<16x256xf32>
    %cst_245 = arith.constant 0.00999999977 : f32
    %320 = vector.broadcast %cst_245 : f32 to vector<16x256xf32>
    %321 = arith.mulf %320, %317 : vector<16x256xf32>
    %322 = arith.select %319, %317, %321 : vector<16x256xi1>, vector<16x256xf32>
    %c5_246 = arith.constant 5 : index
    %c0_247 = arith.constant 0 : index
    %c0_248 = arith.constant 0 : index
    %323 = vector.load %arg3[%c5_246, %c0_247, %c0_248] : memref<9x16x152xbf16, #tpu.memory_space<vmem>>, vector<1x16x152xbf16>
    %324 = vector.shape_cast %323 : vector<1x16x152xbf16> to vector<16x152xbf16>
    %c17_i32_249 = arith.constant 17 : i32
    %325 = tpu.dynamic_rotate %322 by %c17_i32_249 dim 1 : vector<16x256xf32>, i32 -> vector<16x256xf32>
    %c0_250 = arith.constant 0 : index
    %c0_251 = arith.constant 0 : index
    %326 = vector.load %arg4[%c0_250, %c0_251] : memref<9x256xf32, #tpu.memory_space<vmem>>, vector<1x256xf32>
    %327 = vector.broadcast %326 : vector<1x256xf32> to vector<16x256xf32>
    %328 = arith.mulf %325, %327 : vector<16x256xf32>
    %329 = arith.truncf %328 : vector<16x256xf32> to vector<16x256xbf16>
    %c0_252 = arith.constant 0 : index
    %c0_253 = arith.constant 0 : index
    %330 = vector.load %arg7[%c0_252, %c0_253] : memref<152x256xbf16, #tpu.memory_space<vmem>>, vector<16x256xbf16>
    tpu.vector_store %arg7[%c0_252, %c0_253], %329 {strides = array<i32>} : memref<152x256xbf16, #tpu.memory_space<vmem>>, vector<16x256xbf16>,
    %c16_i32_254 = arith.constant 16 : i32
    %331 = tpu.dynamic_rotate %322 by %c16_i32_254 dim 1 : vector<16x256xf32>, i32 -> vector<16x256xf32>
    %c1_255 = arith.constant 1 : index
    %c0_256 = arith.constant 0 : index
    %332 = vector.load %arg4[%c1_255, %c0_256] : memref<9x256xf32, #tpu.memory_space<vmem>>, vector<1x256xf32>
    %333 = vector.broadcast %332 : vector<1x256xf32> to vector<16x256xf32>
    %334 = arith.mulf %331, %333 : vector<16x256xf32>
    %335 = arith.truncf %334 : vector<16x256xf32> to vector<16x256xbf16>
    %c16_257 = arith.constant 16 : index
    %c0_258 = arith.constant 0 : index
    %336 = vector.load %arg7[%c16_257, %c0_258] : memref<152x256xbf16, #tpu.memory_space<vmem>>, vector<16x256xbf16>
    tpu.vector_store %arg7[%c16_257, %c0_258], %335 {strides = array<i32>} : memref<152x256xbf16, #tpu.memory_space<vmem>>, vector<16x256xbf16>,
    %c15_i32_259 = arith.constant 15 : i32
    %337 = tpu.dynamic_rotate %322 by %c15_i32_259 dim 1 : vector<16x256xf32>, i32 -> vector<16x256xf32>
    %c2_260 = arith.constant 2 : index
    %c0_261 = arith.constant 0 : index
    %338 = vector.load %arg4[%c2_260, %c0_261] : memref<9x256xf32, #tpu.memory_space<vmem>>, vector<1x256xf32>
    %339 = vector.broadcast %338 : vector<1x256xf32> to vector<16x256xf32>
    %340 = arith.mulf %337, %339 : vector<16x256xf32>
    %341 = arith.truncf %340 : vector<16x256xf32> to vector<16x256xbf16>
    %c32_262 = arith.constant 32 : index
    %c0_263 = arith.constant 0 : index
    %342 = vector.load %arg7[%c32_262, %c0_263] : memref<152x256xbf16, #tpu.memory_space<vmem>>, vector<16x256xbf16>
    tpu.vector_store %arg7[%c32_262, %c0_263], %341 {strides = array<i32>} : memref<152x256xbf16, #tpu.memory_space<vmem>>, vector<16x256xbf16>,
    %c1_i32_264 = arith.constant 1 : i32
    %343 = tpu.dynamic_rotate %322 by %c1_i32_264 dim 1 : vector<16x256xf32>, i32 -> vector<16x256xf32>
    %c3_265 = arith.constant 3 : index
    %c0_266 = arith.constant 0 : index
    %344 = vector.load %arg4[%c3_265, %c0_266] : memref<9x256xf32, #tpu.memory_space<vmem>>, vector<1x256xf32>
    %345 = vector.broadcast %344 : vector<1x256xf32> to vector<16x256xf32>
    %346 = arith.mulf %343, %345 : vector<16x256xf32>
    %347 = arith.truncf %346 : vector<16x256xf32> to vector<16x256xbf16>
    %c48_267 = arith.constant 48 : index
    %c0_268 = arith.constant 0 : index
    %348 = vector.load %arg7[%c48_267, %c0_268] : memref<152x256xbf16, #tpu.memory_space<vmem>>, vector<16x256xbf16>
    tpu.vector_store %arg7[%c48_267, %c0_268], %347 {strides = array<i32>} : memref<152x256xbf16, #tpu.memory_space<vmem>>, vector<16x256xbf16>,
    %349 = arith.truncf %322 : vector<16x256xf32> to vector<16x256xbf16>
    %c64_269 = arith.constant 64 : index
    %c0_270 = arith.constant 0 : index
    %350 = vector.load %arg7[%c64_269, %c0_270] : memref<152x256xbf16, #tpu.memory_space<vmem>>, vector<16x256xbf16>
    tpu.vector_store %arg7[%c64_269, %c0_270], %349 {strides = array<i32>} : memref<152x256xbf16, #tpu.memory_space<vmem>>, vector<16x256xbf16>,
    %c255_i32_271 = arith.constant 255 : i32
    %351 = tpu.dynamic_rotate %322 by %c255_i32_271 dim 1 : vector<16x256xf32>, i32 -> vector<16x256xf32>
    %c5_272 = arith.constant 5 : index
    %c0_273 = arith.constant 0 : index
    %352 = vector.load %arg4[%c5_272, %c0_273] : memref<9x256xf32, #tpu.memory_space<vmem>>, vector<1x256xf32>
    %353 = vector.broadcast %352 : vector<1x256xf32> to vector<16x256xf32>
    %354 = arith.mulf %351, %353 : vector<16x256xf32>
    %355 = arith.truncf %354 : vector<16x256xf32> to vector<16x256xbf16>
    %c80_274 = arith.constant 80 : index
    %c0_275 = arith.constant 0 : index
    %356 = vector.load %arg7[%c80_274, %c0_275] : memref<152x256xbf16, #tpu.memory_space<vmem>>, vector<16x256xbf16>
    tpu.vector_store %arg7[%c80_274, %c0_275], %355 {strides = array<i32>} : memref<152x256xbf16, #tpu.memory_space<vmem>>, vector<16x256xbf16>,
    %c241_i32_276 = arith.constant 241 : i32
    %357 = tpu.dynamic_rotate %322 by %c241_i32_276 dim 1 : vector<16x256xf32>, i32 -> vector<16x256xf32>
    %c6_277 = arith.constant 6 : index
    %c0_278 = arith.constant 0 : index
    %358 = vector.load %arg4[%c6_277, %c0_278] : memref<9x256xf32, #tpu.memory_space<vmem>>, vector<1x256xf32>
    %359 = vector.broadcast %358 : vector<1x256xf32> to vector<16x256xf32>
    %360 = arith.mulf %357, %359 : vector<16x256xf32>
    %361 = arith.truncf %360 : vector<16x256xf32> to vector<16x256xbf16>
    %c96_279 = arith.constant 96 : index
    %c0_280 = arith.constant 0 : index
    %362 = vector.load %arg7[%c96_279, %c0_280] : memref<152x256xbf16, #tpu.memory_space<vmem>>, vector<16x256xbf16>
    tpu.vector_store %arg7[%c96_279, %c0_280], %361 {strides = array<i32>} : memref<152x256xbf16, #tpu.memory_space<vmem>>, vector<16x256xbf16>,
    %c240_i32_281 = arith.constant 240 : i32
    %363 = tpu.dynamic_rotate %322 by %c240_i32_281 dim 1 : vector<16x256xf32>, i32 -> vector<16x256xf32>
    %c7_282 = arith.constant 7 : index
    %c0_283 = arith.constant 0 : index
    %364 = vector.load %arg4[%c7_282, %c0_283] : memref<9x256xf32, #tpu.memory_space<vmem>>, vector<1x256xf32>
    %365 = vector.broadcast %364 : vector<1x256xf32> to vector<16x256xf32>
    %366 = arith.mulf %363, %365 : vector<16x256xf32>
    %367 = arith.truncf %366 : vector<16x256xf32> to vector<16x256xbf16>
    %c112_284 = arith.constant 112 : index
    %c0_285 = arith.constant 0 : index
    %368 = vector.load %arg7[%c112_284, %c0_285] : memref<152x256xbf16, #tpu.memory_space<vmem>>, vector<16x256xbf16>
    tpu.vector_store %arg7[%c112_284, %c0_285], %367 {strides = array<i32>} : memref<152x256xbf16, #tpu.memory_space<vmem>>, vector<16x256xbf16>,
    %c239_i32_286 = arith.constant 239 : i32
    %369 = tpu.dynamic_rotate %322 by %c239_i32_286 dim 1 : vector<16x256xf32>, i32 -> vector<16x256xf32>
    %c8_287 = arith.constant 8 : index
    %c0_288 = arith.constant 0 : index
    %370 = vector.load %arg4[%c8_287, %c0_288] : memref<9x256xf32, #tpu.memory_space<vmem>>, vector<1x256xf32>
    %371 = vector.broadcast %370 : vector<1x256xf32> to vector<16x256xf32>
    %372 = arith.mulf %369, %371 : vector<16x256xf32>
    %373 = arith.truncf %372 : vector<16x256xf32> to vector<16x256xbf16>
    %c128_289 = arith.constant 128 : index
    %c0_290 = arith.constant 0 : index
    %374 = vector.load %arg7[%c128_289, %c0_290] : memref<152x256xbf16, #tpu.memory_space<vmem>>, vector<16x256xbf16>
    tpu.vector_store %arg7[%c128_289, %c0_290], %373 {strides = array<i32>} : memref<152x256xbf16, #tpu.memory_space<vmem>>, vector<16x256xbf16>,
    %c0_291 = arith.constant 0 : index
    %c0_292 = arith.constant 0 : index
    %375 = vector.load %arg7[%c0_291, %c0_292] : memref<152x256xbf16, #tpu.memory_space<vmem>>, vector<152x256xbf16>
    %cst_293 = arith.constant dense<0.000000e+00> : vector<16x256xf32>
    %376 = tpu.matmul %324, %375, %cst_293 {dimension_numbers = #tpu.dot_dimension_numbers<[1], [0], [0], [1], [0, 0, 1, 1], [], []>} : vector<16x152xbf16>, vector<152x256xbf16>, vector<16x256xf32> -> vector<16x256xf32>
    %cst_294 = arith.constant 0.000000e+00 : f32
    %377 = vector.broadcast %cst_294 : f32 to vector<16x256xf32>
    %378 = arith.cmpf ogt, %376, %377 : vector<16x256xf32>
    %cst_295 = arith.constant 0.00999999977 : f32
    %379 = vector.broadcast %cst_295 : f32 to vector<16x256xf32>
    %380 = arith.mulf %379, %376 : vector<16x256xf32>
    %381 = arith.select %378, %376, %380 : vector<16x256xi1>, vector<16x256xf32>
    %c4_296 = arith.constant 4 : index
    %c0_297 = arith.constant 0 : index
    %c0_298 = arith.constant 0 : index
    %382 = vector.load %arg2[%c4_296, %c0_297, %c0_298] : memref<8x16x8xf32, #tpu.memory_space<vmem>>, vector<1x16x8xf32>
    %383 = vector.shape_cast %382 : vector<1x16x8xf32> to vector<16x8xf32>
    %cst_299 = arith.constant dense<0.000000e+00> : vector<16x256xf32>
    %384 = tpu.matmul %383, %7, %cst_299 {dimension_numbers = #tpu.dot_dimension_numbers<[1], [0], [0], [1], [0, 0, 1, 1], [], []>} : vector<16x8xf32>, vector<8x256xf32>, vector<16x256xf32> -> vector<16x256xf32>
    %c5_300 = arith.constant 5 : index
    %c0_301 = arith.constant 0 : index
    %c0_302 = arith.constant 0 : index
    %385 = vector.load %arg2[%c5_300, %c0_301, %c0_302] : memref<8x16x8xf32, #tpu.memory_space<vmem>>, vector<1x16x8xf32>
    %386 = vector.shape_cast %385 : vector<1x16x8xf32> to vector<16x8xf32>
    %cst_303 = arith.constant dense<0.000000e+00> : vector<16x256xf32>
    %387 = tpu.matmul %386, %7, %cst_303 {dimension_numbers = #tpu.dot_dimension_numbers<[1], [0], [0], [1], [0, 0, 1, 1], [], []>} : vector<16x8xf32>, vector<8x256xf32>, vector<16x256xf32> -> vector<16x256xf32>
    %388 = arith.mulf %384, %381 : vector<16x256xf32>
    %389 = arith.addf %388, %387 : vector<16x256xf32>
    %390 = arith.addf %389, %322 : vector<16x256xf32>
    %c6_304 = arith.constant 6 : index
    %c0_305 = arith.constant 0 : index
    %c0_306 = arith.constant 0 : index
    %391 = vector.load %arg3[%c6_304, %c0_305, %c0_306] : memref<9x16x152xbf16, #tpu.memory_space<vmem>>, vector<1x16x152xbf16>
    %392 = vector.shape_cast %391 : vector<1x16x152xbf16> to vector<16x152xbf16>
    %c17_i32_307 = arith.constant 17 : i32
    %393 = tpu.dynamic_rotate %390 by %c17_i32_307 dim 1 : vector<16x256xf32>, i32 -> vector<16x256xf32>
    %c0_308 = arith.constant 0 : index
    %c0_309 = arith.constant 0 : index
    %394 = vector.load %arg4[%c0_308, %c0_309] : memref<9x256xf32, #tpu.memory_space<vmem>>, vector<1x256xf32>
    %395 = vector.broadcast %394 : vector<1x256xf32> to vector<16x256xf32>
    %396 = arith.mulf %393, %395 : vector<16x256xf32>
    %397 = arith.truncf %396 : vector<16x256xf32> to vector<16x256xbf16>
    %c0_310 = arith.constant 0 : index
    %c0_311 = arith.constant 0 : index
    %398 = vector.load %arg7[%c0_310, %c0_311] : memref<152x256xbf16, #tpu.memory_space<vmem>>, vector<16x256xbf16>
    tpu.vector_store %arg7[%c0_310, %c0_311], %397 {strides = array<i32>} : memref<152x256xbf16, #tpu.memory_space<vmem>>, vector<16x256xbf16>,
    %c16_i32_312 = arith.constant 16 : i32
    %399 = tpu.dynamic_rotate %390 by %c16_i32_312 dim 1 : vector<16x256xf32>, i32 -> vector<16x256xf32>
    %c1_313 = arith.constant 1 : index
    %c0_314 = arith.constant 0 : index
    %400 = vector.load %arg4[%c1_313, %c0_314] : memref<9x256xf32, #tpu.memory_space<vmem>>, vector<1x256xf32>
    %401 = vector.broadcast %400 : vector<1x256xf32> to vector<16x256xf32>
    %402 = arith.mulf %399, %401 : vector<16x256xf32>
    %403 = arith.truncf %402 : vector<16x256xf32> to vector<16x256xbf16>
    %c16_315 = arith.constant 16 : index
    %c0_316 = arith.constant 0 : index
    %404 = vector.load %arg7[%c16_315, %c0_316] : memref<152x256xbf16, #tpu.memory_space<vmem>>, vector<16x256xbf16>
    tpu.vector_store %arg7[%c16_315, %c0_316], %403 {strides = array<i32>} : memref<152x256xbf16, #tpu.memory_space<vmem>>, vector<16x256xbf16>,
    %c15_i32_317 = arith.constant 15 : i32
    %405 = tpu.dynamic_rotate %390 by %c15_i32_317 dim 1 : vector<16x256xf32>, i32 -> vector<16x256xf32>
    %c2_318 = arith.constant 2 : index
    %c0_319 = arith.constant 0 : index
    %406 = vector.load %arg4[%c2_318, %c0_319] : memref<9x256xf32, #tpu.memory_space<vmem>>, vector<1x256xf32>
    %407 = vector.broadcast %406 : vector<1x256xf32> to vector<16x256xf32>
    %408 = arith.mulf %405, %407 : vector<16x256xf32>
    %409 = arith.truncf %408 : vector<16x256xf32> to vector<16x256xbf16>
    %c32_320 = arith.constant 32 : index
    %c0_321 = arith.constant 0 : index
    %410 = vector.load %arg7[%c32_320, %c0_321] : memref<152x256xbf16, #tpu.memory_space<vmem>>, vector<16x256xbf16>
    tpu.vector_store %arg7[%c32_320, %c0_321], %409 {strides = array<i32>} : memref<152x256xbf16, #tpu.memory_space<vmem>>, vector<16x256xbf16>,
    %c1_i32_322 = arith.constant 1 : i32
    %411 = tpu.dynamic_rotate %390 by %c1_i32_322 dim 1 : vector<16x256xf32>, i32 -> vector<16x256xf32>
    %c3_323 = arith.constant 3 : index
    %c0_324 = arith.constant 0 : index
    %412 = vector.load %arg4[%c3_323, %c0_324] : memref<9x256xf32, #tpu.memory_space<vmem>>, vector<1x256xf32>
    %413 = vector.broadcast %412 : vector<1x256xf32> to vector<16x256xf32>
    %414 = arith.mulf %411, %413 : vector<16x256xf32>
    %415 = arith.truncf %414 : vector<16x256xf32> to vector<16x256xbf16>
    %c48_325 = arith.constant 48 : index
    %c0_326 = arith.constant 0 : index
    %416 = vector.load %arg7[%c48_325, %c0_326] : memref<152x256xbf16, #tpu.memory_space<vmem>>, vector<16x256xbf16>
    tpu.vector_store %arg7[%c48_325, %c0_326], %415 {strides = array<i32>} : memref<152x256xbf16, #tpu.memory_space<vmem>>, vector<16x256xbf16>,
    %417 = arith.truncf %390 : vector<16x256xf32> to vector<16x256xbf16>
    %c64_327 = arith.constant 64 : index
    %c0_328 = arith.constant 0 : index
    %418 = vector.load %arg7[%c64_327, %c0_328] : memref<152x256xbf16, #tpu.memory_space<vmem>>, vector<16x256xbf16>
    tpu.vector_store %arg7[%c64_327, %c0_328], %417 {strides = array<i32>} : memref<152x256xbf16, #tpu.memory_space<vmem>>, vector<16x256xbf16>,
    %c255_i32_329 = arith.constant 255 : i32
    %419 = tpu.dynamic_rotate %390 by %c255_i32_329 dim 1 : vector<16x256xf32>, i32 -> vector<16x256xf32>
    %c5_330 = arith.constant 5 : index
    %c0_331 = arith.constant 0 : index
    %420 = vector.load %arg4[%c5_330, %c0_331] : memref<9x256xf32, #tpu.memory_space<vmem>>, vector<1x256xf32>
    %421 = vector.broadcast %420 : vector<1x256xf32> to vector<16x256xf32>
    %422 = arith.mulf %419, %421 : vector<16x256xf32>
    %423 = arith.truncf %422 : vector<16x256xf32> to vector<16x256xbf16>
    %c80_332 = arith.constant 80 : index
    %c0_333 = arith.constant 0 : index
    %424 = vector.load %arg7[%c80_332, %c0_333] : memref<152x256xbf16, #tpu.memory_space<vmem>>, vector<16x256xbf16>
    tpu.vector_store %arg7[%c80_332, %c0_333], %423 {strides = array<i32>} : memref<152x256xbf16, #tpu.memory_space<vmem>>, vector<16x256xbf16>,
    %c241_i32_334 = arith.constant 241 : i32
    %425 = tpu.dynamic_rotate %390 by %c241_i32_334 dim 1 : vector<16x256xf32>, i32 -> vector<16x256xf32>
    %c6_335 = arith.constant 6 : index
    %c0_336 = arith.constant 0 : index
    %426 = vector.load %arg4[%c6_335, %c0_336] : memref<9x256xf32, #tpu.memory_space<vmem>>, vector<1x256xf32>
    %427 = vector.broadcast %426 : vector<1x256xf32> to vector<16x256xf32>
    %428 = arith.mulf %425, %427 : vector<16x256xf32>
    %429 = arith.truncf %428 : vector<16x256xf32> to vector<16x256xbf16>
    %c96_337 = arith.constant 96 : index
    %c0_338 = arith.constant 0 : index
    %430 = vector.load %arg7[%c96_337, %c0_338] : memref<152x256xbf16, #tpu.memory_space<vmem>>, vector<16x256xbf16>
    tpu.vector_store %arg7[%c96_337, %c0_338], %429 {strides = array<i32>} : memref<152x256xbf16, #tpu.memory_space<vmem>>, vector<16x256xbf16>,
    %c240_i32_339 = arith.constant 240 : i32
    %431 = tpu.dynamic_rotate %390 by %c240_i32_339 dim 1 : vector<16x256xf32>, i32 -> vector<16x256xf32>
    %c7_340 = arith.constant 7 : index
    %c0_341 = arith.constant 0 : index
    %432 = vector.load %arg4[%c7_340, %c0_341] : memref<9x256xf32, #tpu.memory_space<vmem>>, vector<1x256xf32>
    %433 = vector.broadcast %432 : vector<1x256xf32> to vector<16x256xf32>
    %434 = arith.mulf %431, %433 : vector<16x256xf32>
    %435 = arith.truncf %434 : vector<16x256xf32> to vector<16x256xbf16>
    %c112_342 = arith.constant 112 : index
    %c0_343 = arith.constant 0 : index
    %436 = vector.load %arg7[%c112_342, %c0_343] : memref<152x256xbf16, #tpu.memory_space<vmem>>, vector<16x256xbf16>
    tpu.vector_store %arg7[%c112_342, %c0_343], %435 {strides = array<i32>} : memref<152x256xbf16, #tpu.memory_space<vmem>>, vector<16x256xbf16>,
    %c239_i32_344 = arith.constant 239 : i32
    %437 = tpu.dynamic_rotate %390 by %c239_i32_344 dim 1 : vector<16x256xf32>, i32 -> vector<16x256xf32>
    %c8_345 = arith.constant 8 : index
    %c0_346 = arith.constant 0 : index
    %438 = vector.load %arg4[%c8_345, %c0_346] : memref<9x256xf32, #tpu.memory_space<vmem>>, vector<1x256xf32>
    %439 = vector.broadcast %438 : vector<1x256xf32> to vector<16x256xf32>
    %440 = arith.mulf %437, %439 : vector<16x256xf32>
    %441 = arith.truncf %440 : vector<16x256xf32> to vector<16x256xbf16>
    %c128_347 = arith.constant 128 : index
    %c0_348 = arith.constant 0 : index
    %442 = vector.load %arg7[%c128_347, %c0_348] : memref<152x256xbf16, #tpu.memory_space<vmem>>, vector<16x256xbf16>
    tpu.vector_store %arg7[%c128_347, %c0_348], %441 {strides = array<i32>} : memref<152x256xbf16, #tpu.memory_space<vmem>>, vector<16x256xbf16>,
    %c0_349 = arith.constant 0 : index
    %c0_350 = arith.constant 0 : index
    %443 = vector.load %arg7[%c0_349, %c0_350] : memref<152x256xbf16, #tpu.memory_space<vmem>>, vector<152x256xbf16>
    %cst_351 = arith.constant dense<0.000000e+00> : vector<16x256xf32>
    %444 = tpu.matmul %392, %443, %cst_351 {dimension_numbers = #tpu.dot_dimension_numbers<[1], [0], [0], [1], [0, 0, 1, 1], [], []>} : vector<16x152xbf16>, vector<152x256xbf16>, vector<16x256xf32> -> vector<16x256xf32>
    %cst_352 = arith.constant 0.000000e+00 : f32
    %445 = vector.broadcast %cst_352 : f32 to vector<16x256xf32>
    %446 = arith.cmpf ogt, %444, %445 : vector<16x256xf32>
    %cst_353 = arith.constant 0.00999999977 : f32
    %447 = vector.broadcast %cst_353 : f32 to vector<16x256xf32>
    %448 = arith.mulf %447, %444 : vector<16x256xf32>
    %449 = arith.select %446, %444, %448 : vector<16x256xi1>, vector<16x256xf32>
    %c7_354 = arith.constant 7 : index
    %c0_355 = arith.constant 0 : index
    %c0_356 = arith.constant 0 : index
    %450 = vector.load %arg3[%c7_354, %c0_355, %c0_356] : memref<9x16x152xbf16, #tpu.memory_space<vmem>>, vector<1x16x152xbf16>
    %451 = vector.shape_cast %450 : vector<1x16x152xbf16> to vector<16x152xbf16>
    %c17_i32_357 = arith.constant 17 : i32
    %452 = tpu.dynamic_rotate %449 by %c17_i32_357 dim 1 : vector<16x256xf32>, i32 -> vector<16x256xf32>
    %c0_358 = arith.constant 0 : index
    %c0_359 = arith.constant 0 : index
    %453 = vector.load %arg4[%c0_358, %c0_359] : memref<9x256xf32, #tpu.memory_space<vmem>>, vector<1x256xf32>
    %454 = vector.broadcast %453 : vector<1x256xf32> to vector<16x256xf32>
    %455 = arith.mulf %452, %454 : vector<16x256xf32>
    %456 = arith.truncf %455 : vector<16x256xf32> to vector<16x256xbf16>
    %c0_360 = arith.constant 0 : index
    %c0_361 = arith.constant 0 : index
    %457 = vector.load %arg7[%c0_360, %c0_361] : memref<152x256xbf16, #tpu.memory_space<vmem>>, vector<16x256xbf16>
    tpu.vector_store %arg7[%c0_360, %c0_361], %456 {strides = array<i32>} : memref<152x256xbf16, #tpu.memory_space<vmem>>, vector<16x256xbf16>,
    %c16_i32_362 = arith.constant 16 : i32
    %458 = tpu.dynamic_rotate %449 by %c16_i32_362 dim 1 : vector<16x256xf32>, i32 -> vector<16x256xf32>
    %c1_363 = arith.constant 1 : index
    %c0_364 = arith.constant 0 : index
    %459 = vector.load %arg4[%c1_363, %c0_364] : memref<9x256xf32, #tpu.memory_space<vmem>>, vector<1x256xf32>
    %460 = vector.broadcast %459 : vector<1x256xf32> to vector<16x256xf32>
    %461 = arith.mulf %458, %460 : vector<16x256xf32>
    %462 = arith.truncf %461 : vector<16x256xf32> to vector<16x256xbf16>
    %c16_365 = arith.constant 16 : index
    %c0_366 = arith.constant 0 : index
    %463 = vector.load %arg7[%c16_365, %c0_366] : memref<152x256xbf16, #tpu.memory_space<vmem>>, vector<16x256xbf16>
    tpu.vector_store %arg7[%c16_365, %c0_366], %462 {strides = array<i32>} : memref<152x256xbf16, #tpu.memory_space<vmem>>, vector<16x256xbf16>,
    %c15_i32_367 = arith.constant 15 : i32
    %464 = tpu.dynamic_rotate %449 by %c15_i32_367 dim 1 : vector<16x256xf32>, i32 -> vector<16x256xf32>
    %c2_368 = arith.constant 2 : index
    %c0_369 = arith.constant 0 : index
    %465 = vector.load %arg4[%c2_368, %c0_369] : memref<9x256xf32, #tpu.memory_space<vmem>>, vector<1x256xf32>
    %466 = vector.broadcast %465 : vector<1x256xf32> to vector<16x256xf32>
    %467 = arith.mulf %464, %466 : vector<16x256xf32>
    %468 = arith.truncf %467 : vector<16x256xf32> to vector<16x256xbf16>
    %c32_370 = arith.constant 32 : index
    %c0_371 = arith.constant 0 : index
    %469 = vector.load %arg7[%c32_370, %c0_371] : memref<152x256xbf16, #tpu.memory_space<vmem>>, vector<16x256xbf16>
    tpu.vector_store %arg7[%c32_370, %c0_371], %468 {strides = array<i32>} : memref<152x256xbf16, #tpu.memory_space<vmem>>, vector<16x256xbf16>,
    %c1_i32_372 = arith.constant 1 : i32
    %470 = tpu.dynamic_rotate %449 by %c1_i32_372 dim 1 : vector<16x256xf32>, i32 -> vector<16x256xf32>
    %c3_373 = arith.constant 3 : index
    %c0_374 = arith.constant 0 : index
    %471 = vector.load %arg4[%c3_373, %c0_374] : memref<9x256xf32, #tpu.memory_space<vmem>>, vector<1x256xf32>
    %472 = vector.broadcast %471 : vector<1x256xf32> to vector<16x256xf32>
    %473 = arith.mulf %470, %472 : vector<16x256xf32>
    %474 = arith.truncf %473 : vector<16x256xf32> to vector<16x256xbf16>
    %c48_375 = arith.constant 48 : index
    %c0_376 = arith.constant 0 : index
    %475 = vector.load %arg7[%c48_375, %c0_376] : memref<152x256xbf16, #tpu.memory_space<vmem>>, vector<16x256xbf16>
    tpu.vector_store %arg7[%c48_375, %c0_376], %474 {strides = array<i32>} : memref<152x256xbf16, #tpu.memory_space<vmem>>, vector<16x256xbf16>,
    %476 = arith.truncf %449 : vector<16x256xf32> to vector<16x256xbf16>
    %c64_377 = arith.constant 64 : index
    %c0_378 = arith.constant 0 : index
    %477 = vector.load %arg7[%c64_377, %c0_378] : memref<152x256xbf16, #tpu.memory_space<vmem>>, vector<16x256xbf16>
    tpu.vector_store %arg7[%c64_377, %c0_378], %476 {strides = array<i32>} : memref<152x256xbf16, #tpu.memory_space<vmem>>, vector<16x256xbf16>,
    %c255_i32_379 = arith.constant 255 : i32
    %478 = tpu.dynamic_rotate %449 by %c255_i32_379 dim 1 : vector<16x256xf32>, i32 -> vector<16x256xf32>
    %c5_380 = arith.constant 5 : index
    %c0_381 = arith.constant 0 : index
    %479 = vector.load %arg4[%c5_380, %c0_381] : memref<9x256xf32, #tpu.memory_space<vmem>>, vector<1x256xf32>
    %480 = vector.broadcast %479 : vector<1x256xf32> to vector<16x256xf32>
    %481 = arith.mulf %478, %480 : vector<16x256xf32>
    %482 = arith.truncf %481 : vector<16x256xf32> to vector<16x256xbf16>
    %c80_382 = arith.constant 80 : index
    %c0_383 = arith.constant 0 : index
    %483 = vector.load %arg7[%c80_382, %c0_383] : memref<152x256xbf16, #tpu.memory_space<vmem>>, vector<16x256xbf16>
    tpu.vector_store %arg7[%c80_382, %c0_383], %482 {strides = array<i32>} : memref<152x256xbf16, #tpu.memory_space<vmem>>, vector<16x256xbf16>,
    %c241_i32_384 = arith.constant 241 : i32
    %484 = tpu.dynamic_rotate %449 by %c241_i32_384 dim 1 : vector<16x256xf32>, i32 -> vector<16x256xf32>
    %c6_385 = arith.constant 6 : index
    %c0_386 = arith.constant 0 : index
    %485 = vector.load %arg4[%c6_385, %c0_386] : memref<9x256xf32, #tpu.memory_space<vmem>>, vector<1x256xf32>
    %486 = vector.broadcast %485 : vector<1x256xf32> to vector<16x256xf32>
    %487 = arith.mulf %484, %486 : vector<16x256xf32>
    %488 = arith.truncf %487 : vector<16x256xf32> to vector<16x256xbf16>
    %c96_387 = arith.constant 96 : index
    %c0_388 = arith.constant 0 : index
    %489 = vector.load %arg7[%c96_387, %c0_388] : memref<152x256xbf16, #tpu.memory_space<vmem>>, vector<16x256xbf16>
    tpu.vector_store %arg7[%c96_387, %c0_388], %488 {strides = array<i32>} : memref<152x256xbf16, #tpu.memory_space<vmem>>, vector<16x256xbf16>,
    %c240_i32_389 = arith.constant 240 : i32
    %490 = tpu.dynamic_rotate %449 by %c240_i32_389 dim 1 : vector<16x256xf32>, i32 -> vector<16x256xf32>
    %c7_390 = arith.constant 7 : index
    %c0_391 = arith.constant 0 : index
    %491 = vector.load %arg4[%c7_390, %c0_391] : memref<9x256xf32, #tpu.memory_space<vmem>>, vector<1x256xf32>
    %492 = vector.broadcast %491 : vector<1x256xf32> to vector<16x256xf32>
    %493 = arith.mulf %490, %492 : vector<16x256xf32>
    %494 = arith.truncf %493 : vector<16x256xf32> to vector<16x256xbf16>
    %c112_392 = arith.constant 112 : index
    %c0_393 = arith.constant 0 : index
    %495 = vector.load %arg7[%c112_392, %c0_393] : memref<152x256xbf16, #tpu.memory_space<vmem>>, vector<16x256xbf16>
    tpu.vector_store %arg7[%c112_392, %c0_393], %494 {strides = array<i32>} : memref<152x256xbf16, #tpu.memory_space<vmem>>, vector<16x256xbf16>,
    %c239_i32_394 = arith.constant 239 : i32
    %496 = tpu.dynamic_rotate %449 by %c239_i32_394 dim 1 : vector<16x256xf32>, i32 -> vector<16x256xf32>
    %c8_395 = arith.constant 8 : index
    %c0_396 = arith.constant 0 : index
    %497 = vector.load %arg4[%c8_395, %c0_396] : memref<9x256xf32, #tpu.memory_space<vmem>>, vector<1x256xf32>
    %498 = vector.broadcast %497 : vector<1x256xf32> to vector<16x256xf32>
    %499 = arith.mulf %496, %498 : vector<16x256xf32>
    %500 = arith.truncf %499 : vector<16x256xf32> to vector<16x256xbf16>
    %c128_397 = arith.constant 128 : index
    %c0_398 = arith.constant 0 : index
    %501 = vector.load %arg7[%c128_397, %c0_398] : memref<152x256xbf16, #tpu.memory_space<vmem>>, vector<16x256xbf16>
    tpu.vector_store %arg7[%c128_397, %c0_398], %500 {strides = array<i32>} : memref<152x256xbf16, #tpu.memory_space<vmem>>, vector<16x256xbf16>,
    %c0_399 = arith.constant 0 : index
    %c0_400 = arith.constant 0 : index
    %502 = vector.load %arg7[%c0_399, %c0_400] : memref<152x256xbf16, #tpu.memory_space<vmem>>, vector<152x256xbf16>
    %cst_401 = arith.constant dense<0.000000e+00> : vector<16x256xf32>
    %503 = tpu.matmul %451, %502, %cst_401 {dimension_numbers = #tpu.dot_dimension_numbers<[1], [0], [0], [1], [0, 0, 1, 1], [], []>} : vector<16x152xbf16>, vector<152x256xbf16>, vector<16x256xf32> -> vector<16x256xf32>
    %cst_402 = arith.constant 0.000000e+00 : f32
    %504 = vector.broadcast %cst_402 : f32 to vector<16x256xf32>
    %505 = arith.cmpf ogt, %503, %504 : vector<16x256xf32>
    %cst_403 = arith.constant 0.00999999977 : f32
    %506 = vector.broadcast %cst_403 : f32 to vector<16x256xf32>
    %507 = arith.mulf %506, %503 : vector<16x256xf32>
    %508 = arith.select %505, %503, %507 : vector<16x256xi1>, vector<16x256xf32>
    %c6_404 = arith.constant 6 : index
    %c0_405 = arith.constant 0 : index
    %c0_406 = arith.constant 0 : index
    %509 = vector.load %arg2[%c6_404, %c0_405, %c0_406] : memref<8x16x8xf32, #tpu.memory_space<vmem>>, vector<1x16x8xf32>
    %510 = vector.shape_cast %509 : vector<1x16x8xf32> to vector<16x8xf32>
    %cst_407 = arith.constant dense<0.000000e+00> : vector<16x256xf32>
    %511 = tpu.matmul %510, %7, %cst_407 {dimension_numbers = #tpu.dot_dimension_numbers<[1], [0], [0], [1], [0, 0, 1, 1], [], []>} : vector<16x8xf32>, vector<8x256xf32>, vector<16x256xf32> -> vector<16x256xf32>
    %c7_408 = arith.constant 7 : index
    %c0_409 = arith.constant 0 : index
    %c0_410 = arith.constant 0 : index
    %512 = vector.load %arg2[%c7_408, %c0_409, %c0_410] : memref<8x16x8xf32, #tpu.memory_space<vmem>>, vector<1x16x8xf32>
    %513 = vector.shape_cast %512 : vector<1x16x8xf32> to vector<16x8xf32>
    %cst_411 = arith.constant dense<0.000000e+00> : vector<16x256xf32>
    %514 = tpu.matmul %513, %7, %cst_411 {dimension_numbers = #tpu.dot_dimension_numbers<[1], [0], [0], [1], [0, 0, 1, 1], [], []>} : vector<16x8xf32>, vector<8x256xf32>, vector<16x256xf32> -> vector<16x256xf32>
    %515 = arith.mulf %511, %508 : vector<16x256xf32>
    %516 = arith.addf %515, %514 : vector<16x256xf32>
    %517 = arith.addf %516, %449 : vector<16x256xf32>
    %c8_412 = arith.constant 8 : index
    %c0_413 = arith.constant 0 : index
    %c0_414 = arith.constant 0 : index
    %518 = vector.load %arg3[%c8_412, %c0_413, %c0_414] : memref<9x16x152xbf16, #tpu.memory_space<vmem>>, vector<1x16x152xbf16>
    %519 = vector.shape_cast %518 : vector<1x16x152xbf16> to vector<16x152xbf16>
    %c17_i32_415 = arith.constant 17 : i32
    %520 = tpu.dynamic_rotate %517 by %c17_i32_415 dim 1 : vector<16x256xf32>, i32 -> vector<16x256xf32>
    %c0_416 = arith.constant 0 : index
    %c0_417 = arith.constant 0 : index
    %521 = vector.load %arg4[%c0_416, %c0_417] : memref<9x256xf32, #tpu.memory_space<vmem>>, vector<1x256xf32>
    %522 = vector.broadcast %521 : vector<1x256xf32> to vector<16x256xf32>
    %523 = arith.mulf %520, %522 : vector<16x256xf32>
    %524 = arith.truncf %523 : vector<16x256xf32> to vector<16x256xbf16>
    %c0_418 = arith.constant 0 : index
    %c0_419 = arith.constant 0 : index
    %525 = vector.load %arg7[%c0_418, %c0_419] : memref<152x256xbf16, #tpu.memory_space<vmem>>, vector<16x256xbf16>
    tpu.vector_store %arg7[%c0_418, %c0_419], %524 {strides = array<i32>} : memref<152x256xbf16, #tpu.memory_space<vmem>>, vector<16x256xbf16>,
    %c16_i32_420 = arith.constant 16 : i32
    %526 = tpu.dynamic_rotate %517 by %c16_i32_420 dim 1 : vector<16x256xf32>, i32 -> vector<16x256xf32>
    %c1_421 = arith.constant 1 : index
    %c0_422 = arith.constant 0 : index
    %527 = vector.load %arg4[%c1_421, %c0_422] : memref<9x256xf32, #tpu.memory_space<vmem>>, vector<1x256xf32>
    %528 = vector.broadcast %527 : vector<1x256xf32> to vector<16x256xf32>
    %529 = arith.mulf %526, %528 : vector<16x256xf32>
    %530 = arith.truncf %529 : vector<16x256xf32> to vector<16x256xbf16>
    %c16_423 = arith.constant 16 : index
    %c0_424 = arith.constant 0 : index
    %531 = vector.load %arg7[%c16_423, %c0_424] : memref<152x256xbf16, #tpu.memory_space<vmem>>, vector<16x256xbf16>
    tpu.vector_store %arg7[%c16_423, %c0_424], %530 {strides = array<i32>} : memref<152x256xbf16, #tpu.memory_space<vmem>>, vector<16x256xbf16>,
    %c15_i32_425 = arith.constant 15 : i32
    %532 = tpu.dynamic_rotate %517 by %c15_i32_425 dim 1 : vector<16x256xf32>, i32 -> vector<16x256xf32>
    %c2_426 = arith.constant 2 : index
    %c0_427 = arith.constant 0 : index
    %533 = vector.load %arg4[%c2_426, %c0_427] : memref<9x256xf32, #tpu.memory_space<vmem>>, vector<1x256xf32>
    %534 = vector.broadcast %533 : vector<1x256xf32> to vector<16x256xf32>
    %535 = arith.mulf %532, %534 : vector<16x256xf32>
    %536 = arith.truncf %535 : vector<16x256xf32> to vector<16x256xbf16>
    %c32_428 = arith.constant 32 : index
    %c0_429 = arith.constant 0 : index
    %537 = vector.load %arg7[%c32_428, %c0_429] : memref<152x256xbf16, #tpu.memory_space<vmem>>, vector<16x256xbf16>
    tpu.vector_store %arg7[%c32_428, %c0_429], %536 {strides = array<i32>} : memref<152x256xbf16, #tpu.memory_space<vmem>>, vector<16x256xbf16>,
    %c1_i32_430 = arith.constant 1 : i32
    %538 = tpu.dynamic_rotate %517 by %c1_i32_430 dim 1 : vector<16x256xf32>, i32 -> vector<16x256xf32>
    %c3_431 = arith.constant 3 : index
    %c0_432 = arith.constant 0 : index
    %539 = vector.load %arg4[%c3_431, %c0_432] : memref<9x256xf32, #tpu.memory_space<vmem>>, vector<1x256xf32>
    %540 = vector.broadcast %539 : vector<1x256xf32> to vector<16x256xf32>
    %541 = arith.mulf %538, %540 : vector<16x256xf32>
    %542 = arith.truncf %541 : vector<16x256xf32> to vector<16x256xbf16>
    %c48_433 = arith.constant 48 : index
    %c0_434 = arith.constant 0 : index
    %543 = vector.load %arg7[%c48_433, %c0_434] : memref<152x256xbf16, #tpu.memory_space<vmem>>, vector<16x256xbf16>
    tpu.vector_store %arg7[%c48_433, %c0_434], %542 {strides = array<i32>} : memref<152x256xbf16, #tpu.memory_space<vmem>>, vector<16x256xbf16>,
    %544 = arith.truncf %517 : vector<16x256xf32> to vector<16x256xbf16>
    %c64_435 = arith.constant 64 : index
    %c0_436 = arith.constant 0 : index
    %545 = vector.load %arg7[%c64_435, %c0_436] : memref<152x256xbf16, #tpu.memory_space<vmem>>, vector<16x256xbf16>
    tpu.vector_store %arg7[%c64_435, %c0_436], %544 {strides = array<i32>} : memref<152x256xbf16, #tpu.memory_space<vmem>>, vector<16x256xbf16>,
    %c255_i32_437 = arith.constant 255 : i32
    %546 = tpu.dynamic_rotate %517 by %c255_i32_437 dim 1 : vector<16x256xf32>, i32 -> vector<16x256xf32>
    %c5_438 = arith.constant 5 : index
    %c0_439 = arith.constant 0 : index
    %547 = vector.load %arg4[%c5_438, %c0_439] : memref<9x256xf32, #tpu.memory_space<vmem>>, vector<1x256xf32>
    %548 = vector.broadcast %547 : vector<1x256xf32> to vector<16x256xf32>
    %549 = arith.mulf %546, %548 : vector<16x256xf32>
    %550 = arith.truncf %549 : vector<16x256xf32> to vector<16x256xbf16>
    %c80_440 = arith.constant 80 : index
    %c0_441 = arith.constant 0 : index
    %551 = vector.load %arg7[%c80_440, %c0_441] : memref<152x256xbf16, #tpu.memory_space<vmem>>, vector<16x256xbf16>
    tpu.vector_store %arg7[%c80_440, %c0_441], %550 {strides = array<i32>} : memref<152x256xbf16, #tpu.memory_space<vmem>>, vector<16x256xbf16>,
    %c241_i32_442 = arith.constant 241 : i32
    %552 = tpu.dynamic_rotate %517 by %c241_i32_442 dim 1 : vector<16x256xf32>, i32 -> vector<16x256xf32>
    %c6_443 = arith.constant 6 : index
    %c0_444 = arith.constant 0 : index
    %553 = vector.load %arg4[%c6_443, %c0_444] : memref<9x256xf32, #tpu.memory_space<vmem>>, vector<1x256xf32>
    %554 = vector.broadcast %553 : vector<1x256xf32> to vector<16x256xf32>
    %555 = arith.mulf %552, %554 : vector<16x256xf32>
    %556 = arith.truncf %555 : vector<16x256xf32> to vector<16x256xbf16>
    %c96_445 = arith.constant 96 : index
    %c0_446 = arith.constant 0 : index
    %557 = vector.load %arg7[%c96_445, %c0_446] : memref<152x256xbf16, #tpu.memory_space<vmem>>, vector<16x256xbf16>
    tpu.vector_store %arg7[%c96_445, %c0_446], %556 {strides = array<i32>} : memref<152x256xbf16, #tpu.memory_space<vmem>>, vector<16x256xbf16>,
    %c240_i32_447 = arith.constant 240 : i32
    %558 = tpu.dynamic_rotate %517 by %c240_i32_447 dim 1 : vector<16x256xf32>, i32 -> vector<16x256xf32>
    %c7_448 = arith.constant 7 : index
    %c0_449 = arith.constant 0 : index
    %559 = vector.load %arg4[%c7_448, %c0_449] : memref<9x256xf32, #tpu.memory_space<vmem>>, vector<1x256xf32>
    %560 = vector.broadcast %559 : vector<1x256xf32> to vector<16x256xf32>
    %561 = arith.mulf %558, %560 : vector<16x256xf32>
    %562 = arith.truncf %561 : vector<16x256xf32> to vector<16x256xbf16>
    %c112_450 = arith.constant 112 : index
    %c0_451 = arith.constant 0 : index
    %563 = vector.load %arg7[%c112_450, %c0_451] : memref<152x256xbf16, #tpu.memory_space<vmem>>, vector<16x256xbf16>
    tpu.vector_store %arg7[%c112_450, %c0_451], %562 {strides = array<i32>} : memref<152x256xbf16, #tpu.memory_space<vmem>>, vector<16x256xbf16>,
    %c239_i32_452 = arith.constant 239 : i32
    %564 = tpu.dynamic_rotate %517 by %c239_i32_452 dim 1 : vector<16x256xf32>, i32 -> vector<16x256xf32>
    %c8_453 = arith.constant 8 : index
    %c0_454 = arith.constant 0 : index
    %565 = vector.load %arg4[%c8_453, %c0_454] : memref<9x256xf32, #tpu.memory_space<vmem>>, vector<1x256xf32>
    %566 = vector.broadcast %565 : vector<1x256xf32> to vector<16x256xf32>
    %567 = arith.mulf %564, %566 : vector<16x256xf32>
    %568 = arith.truncf %567 : vector<16x256xf32> to vector<16x256xbf16>
    %c128_455 = arith.constant 128 : index
    %c0_456 = arith.constant 0 : index
    %569 = vector.load %arg7[%c128_455, %c0_456] : memref<152x256xbf16, #tpu.memory_space<vmem>>, vector<16x256xbf16>
    tpu.vector_store %arg7[%c128_455, %c0_456], %568 {strides = array<i32>} : memref<152x256xbf16, #tpu.memory_space<vmem>>, vector<16x256xbf16>,
    %c0_457 = arith.constant 0 : index
    %c0_458 = arith.constant 0 : index
    %570 = vector.load %arg7[%c0_457, %c0_458] : memref<152x256xbf16, #tpu.memory_space<vmem>>, vector<152x256xbf16>
    %cst_459 = arith.constant dense<0.000000e+00> : vector<16x256xf32>
    %571 = tpu.matmul %519, %570, %cst_459 {dimension_numbers = #tpu.dot_dimension_numbers<[1], [0], [0], [1], [0, 0, 1, 1], [], []>} : vector<16x152xbf16>, vector<152x256xbf16>, vector<16x256xf32> -> vector<16x256xf32>
    %572 = vector.extract_strided_slice %571 {offsets = [0, 0], sizes = [1, 256], strides = [1, 1]} : vector<16x256xf32> to vector<1x256xf32>
    %573 = math.tanh %572 : vector<1x256xf32>
    %574 = vector.shape_cast %573 : vector<1x256xf32> to vector<1x1x256xf32>
    %c0_460 = arith.constant 0 : index
    %c0_461 = arith.constant 0 : index
    %c0_462 = arith.constant 0 : index
    %575 = vector.load %arg6[%c0_460, %c0_461, %c0_462] : memref<1x1x256xf32, #tpu.memory_space<vmem>>, vector<1x1x256xf32>
    tpu.vector_store %arg6[%c0_460, %c0_461, %c0_462], %574 {strides = array<i32>} : memref<1x1x256xf32, #tpu.memory_space<vmem>>, vector<1x1x256xf32>,
    return
  }
  func.func @transform_0(%arg0: i32) -> (i32, i32, i32) {
    %c0_i32 = arith.constant 0 : i32
    %c0_i32_0 = arith.constant 0 : i32
    %c0_i32_1 = arith.constant 0 : i32
    return %arg0, %c0_i32, %c0_i32_0 : i32, i32, i32
  }
  func.func @transform_1(%arg0: i32) -> (i32, i32, i32) {
    %c0_i32 = arith.constant 0 : i32
    %c0_i32_0 = arith.constant 0 : i32
    %c0_i32_1 = arith.constant 0 : i32
    return %arg0, %c0_i32, %c0_i32_0 : i32, i32, i32
  }
  func.func @transform_2(%arg0: i32) -> (i32, i32, i32) {
    %c0_i32 = arith.constant 0 : i32
    %c0_i32_0 = arith.constant 0 : i32
    %c0_i32_1 = arith.constant 0 : i32
    %c0_i32_2 = arith.constant 0 : i32
    return %c0_i32, %c0_i32_0, %c0_i32_1 : i32, i32, i32
  }
  func.func @transform_3(%arg0: i32) -> (i32, i32) {
    %c0_i32 = arith.constant 0 : i32
    %c0_i32_0 = arith.constant 0 : i32
    %c0_i32_1 = arith.constant 0 : i32
    return %c0_i32, %c0_i32_0 : i32, i32
  }
  func.func @transform_4(%arg0: i32) -> (i32, i32) {
    %c0_i32 = arith.constant 0 : i32
    %c0_i32_0 = arith.constant 0 : i32
    %c0_i32_1 = arith.constant 0 : i32
    return %c0_i32, %c0_i32_0 : i32, i32
  }
  func.func @transform_5(%arg0: i32) -> (i32, i32, i32) {
    %c0_i32 = arith.constant 0 : i32
    %c0_i32_0 = arith.constant 0 : i32
    %c0_i32_1 = arith.constant 0 : i32
    return %arg0, %c0_i32, %c0_i32_0 : i32, i32, i32
  }
}

</mosaic_0001>

<llo_original>
// kernel: decoder_forward.1
$region0: #{decoder_forward.1}
  #allocation0 [shape = 'u32[]', space=smem, size = 0x4, offset = 0x4, fixed_abs, tag = 'smem constant byte address 0x4 - core index']
  #allocation1 [shape = 'u32[72,128]{1,0:T(1,128)}', space=vmem, size = 0x9000, scoped, tag = 'internal scratch']
  #allocation2 [shape = 'bf16[152,256]{1,0:T(8,128)(2,1)}', space=vmem, size = 0x13000, scoped, tag = 'scratch operand']
  %s0 = inlined_call_operand.vmem [shape: f32[2,16,256], index: 0, kind: input, shape index: {}]
  %s1 = inlined_call_operand.vmem [shape: f32[16,16,8], index: 1, kind: input, shape index: {}]
  %s2 = inlined_call_operand.vmem [shape: bf16[9,16,152], index: 2, kind: input, shape index: {}]
  %s3 = inlined_call_operand.vmem [shape: f32[9,256], index: 3, kind: input, shape index: {}]
  %s4 = inlined_call_operand.vmem [shape: f32[8,256], index: 4, kind: input, shape index: {}]
  %s5 = inlined_call_operand.vmem [shape: f32[2,1,256], index: 5, kind: output, shape index: {}]
  %s6 = sld [smem:[#allocation0]]
  $region53: #{decoder_forward.1} parent=0
    _
  %s8 = ssub.s32 1, %s6
  %s9 = scalar_select 0, %s8, %s6
  loop: start=0, step=1, limit=4
  $region2: #{decoder_forward.1} parent=0 // loop_pre_header
    _
  $region3: #{decoder_forward.1} parent=0 // loop_header
    %s11 = sphi 0, %s15
    %p12 = scmp.ge.s32.totalorder %s11, 4
    %s21 = sphi 0, %s23
    %s24 = sphi 0, %s21
    %s25 = sphi 0, %s24
    %s41 = sphi 0, %s25
    %s47 = sphi 0, %s49
    %s50 = sphi 0, %s47
    %s51 = sphi 0, %s50
    %s67 = sphi 0, %s51
    %s71 = sphi 0, %s71
    %s73 = sphi 0, %s71
    %s74 = sphi 0, %s73
    %s88 = sphi 0, %s74
    %s92 = sphi 0, %s92
    %s94 = sphi 0, %s92
    %s95 = sphi 0, %s94
    %s109 = sphi 0, %s95
    %s113 = sphi 0, %s113
    %s115 = sphi 0, %s113
    %s116 = sphi 0, %s115
    %s130 = sphi 0, %s116
    %s136 = sphi 0, %s138
    %s139 = sphi 0, %s136
    %s140 = sphi 0, %s139
    %s156 = sphi 0, %s140
  $region4: #{decoder_forward.1} parent=0 // loop_header_branch
    %14 = sbr.rel (%p12) target = $region8
  $region5: #{decoder_forward.1} parent=0 // loop_body
    %s16 = ssub.s32 %s11, 1
    %s17 = ssub.s32 %s11, 2
    %s18 = sadd.s32 %s11, 1
    %s19 = ssub.s32 %s11, %s18
    %p20 = scmp.eq.s32.totalorder %s19, 0
    %s22 = sadd.s32 %s21, 1
    %s23 = scalar_select %p20, %s21, %s22
    %p26 = pneg %p20
    %p27 = scmp.eq.s32.totalorder %s11, 1
    %p28 = por %p26, %p27
    %p29 = scmp.ne.s32.totalorder %s21, %s24
    %p30 = scmp.eq.s32.totalorder %s11, 0
    %p31 = por %p29, %p30
    %p32 = scmp.ne.s32.totalorder %s21, %s24
    %p33 = scmp.eq.s32.totalorder %s16, 1
    %p34 = por %p32, %p33
    %p35 = scmp.ne.s32.totalorder %s24, %s25
    %p36 = scmp.eq.s32.totalorder %s16, 0
    %p37 = por %p35, %p36
    %p38 = scmp.ne.s32.totalorder %s24, %s25
    %p39 = scmp.eq.s32.totalorder %s17, 1
    %p40 = por %p38, %p39
    %p42 = scmp.ne.s32.totalorder %s25, %s41
    %p43 = scmp.eq.s32.totalorder %s17, 0
    %p44 = por %p42, %p43
    %s45 = ssub.s32 %s11, %s18
    %p46 = scmp.eq.s32.totalorder %s45, 0
    %s48 = sadd.s32 %s47, 1
    %s49 = scalar_select %p46, %s47, %s48
    %p52 = pneg %p46
    %p53 = scmp.eq.s32.totalorder %s11, 1
    %p54 = por %p52, %p53
    %p55 = scmp.ne.s32.totalorder %s47, %s50
    %p56 = scmp.eq.s32.totalorder %s11, 0
    %p57 = por %p55, %p56
    %p58 = scmp.ne.s32.totalorder %s47, %s50
    %p59 = scmp.eq.s32.totalorder %s16, 1
    %p60 = por %p58, %p59
    %p61 = scmp.ne.s32.totalorder %s50, %s51
    %p62 = scmp.eq.s32.totalorder %s16, 0
    %p63 = por %p61, %p62
    %p64 = scmp.ne.s32.totalorder %s50, %s51
    %p65 = scmp.eq.s32.totalorder %s17, 1
    %p66 = por %p64, %p65
    %p68 = scmp.ne.s32.totalorder %s51, %s67
    %p69 = scmp.eq.s32.totalorder %s17, 0
    %p70 = por %p68, %p69
    %s72 = sadd.s32 %s71, 1
    %p75 = scmp.eq.s32.totalorder %s11, 1
    %p76 = scmp.ne.s32.totalorder %s71, %s73
    %p77 = scmp.eq.s32.totalorder %s11, 0
    %p78 = por %p76, %p77
    %p79 = scmp.ne.s32.totalorder %s71, %s73
    %p80 = scmp.eq.s32.totalorder %s16, 1
    %p81 = por %p79, %p80
    %p82 = scmp.ne.s32.totalorder %s73, %s74
    %p83 = scmp.eq.s32.totalorder %s16, 0
    %p84 = por %p82, %p83
    %p85 = scmp.ne.s32.totalorder %s73, %s74
    %p86 = scmp.eq.s32.totalorder %s17, 1
    %p87 = por %p85, %p86
    %p89 = scmp.ne.s32.totalorder %s74, %s88
    %p90 = scmp.eq.s32.totalorder %s17, 0
    %p91 = por %p89, %p90
    %s93 = sadd.s32 %s92, 1
    %p96 = scmp.eq.s32.totalorder %s11, 1
    %p97 = scmp.ne.s32.totalorder %s92, %s94
    %p98 = scmp.eq.s32.totalorder %s11, 0
    %p99 = por %p97, %p98
    %p100 = scmp.ne.s32.totalorder %s92, %s94
    %p101 = scmp.eq.s32.totalorder %s16, 1
    %p102 = por %p100, %p101
    %p103 = scmp.ne.s32.totalorder %s94, %s95
    %p104 = scmp.eq.s32.totalorder %s16, 0
    %p105 = por %p103, %p104
    %p106 = scmp.ne.s32.totalorder %s94, %s95
    %p107 = scmp.eq.s32.totalorder %s17, 1
    %p108 = por %p106, %p107
    %p110 = scmp.ne.s32.totalorder %s95, %s109
    %p111 = scmp.eq.s32.totalorder %s17, 0
    %p112 = por %p110, %p111
    %s114 = sadd.s32 %s113, 1
    %p117 = scmp.eq.s32.totalorder %s11, 1
    %p118 = scmp.ne.s32.totalorder %s113, %s115
    %p119 = scmp.eq.s32.totalorder %s11, 0
    %p120 = por %p118, %p119
    %p121 = scmp.ne.s32.totalorder %s113, %s115
    %p122 = scmp.eq.s32.totalorder %s16, 1
    %p123 = por %p121, %p122
    %p124 = scmp.ne.s32.totalorder %s115, %s116
    %p125 = scmp.eq.s32.totalorder %s16, 0
    %p126 = por %p124, %p125
    %p127 = scmp.ne.s32.totalorder %s115, %s116
    %p128 = scmp.eq.s32.totalorder %s17, 1
    %p129 = por %p127, %p128
    %p131 = scmp.ne.s32.totalorder %s116, %s130
    %p132 = scmp.eq.s32.totalorder %s17, 0
    %p133 = por %p131, %p132
    %s134 = ssub.s32 %s11, %s18
    %p135 = scmp.eq.s32.totalorder %s134, 0
    %s137 = sadd.s32 %s136, 1
    %s138 = scalar_select %p135, %s136, %s137
    %p141 = pneg %p135
    %p142 = scmp.eq.s32.totalorder %s11, 1
    %p143 = por %p141, %p142
    %p144 = scmp.ne.s32.totalorder %s136, %s139
    %p145 = scmp.eq.s32.totalorder %s11, 0
    %p146 = por %p144, %p145
    %p147 = scmp.ne.s32.totalorder %s136, %s139
    %p148 = scmp.eq.s32.totalorder %s16, 1
    %p149 = por %p147, %p148
    %p150 = scmp.ne.s32.totalorder %s139, %s140
    %p151 = scmp.eq.s32.totalorder %s16, 0
    %p152 = por %p150, %p151
    %p153 = scmp.ne.s32.totalorder %s139, %s140
    %p154 = scmp.eq.s32.totalorder %s17, 1
    %p155 = por %p153, %p154
    %p157 = scmp.ne.s32.totalorder %s140, %s156
    %p158 = scmp.eq.s32.totalorder %s17, 0
    %p159 = por %p157, %p158
    %p160 = scmp.le.s32.totalorder 1, %s11
    %p161 = scmp.lt.s32.totalorder %s11, 3
    %p162 = pnand %p160, %p161
    %p163 = pneg %p162
    // Predicated region
    $region9: #{decoder_forward.1} parent=5 // pred_check
      _
    $region10: #{decoder_forward.1} parent=5 // pred_check_branch
      %165 = sbr.rel (%p162) target = $region12
    $region11: #{decoder_forward.1} parent=5 // pred_region
      %s166 = ssub.s32 %s11, 1
      // Predicated region
      $region13: #{decoder_forward.1} parent=11 // pred_check
        %p167 = pneg %p84
      $region14: #{decoder_forward.1} parent=11 // pred_check_branch
        %169 = sbr.rel (%p167) target = $region16
      $region15: #{decoder_forward.1} parent=11 // pred_region
        _
      $region16: #{decoder_forward.1} parent=11 // pred_fallthru
        _
      // Predicated region
      $region17: #{decoder_forward.1} parent=11 // pred_check
        %p170 = pneg %p105
      $region18: #{decoder_forward.1} parent=11 // pred_check_branch
        %172 = sbr.rel (%p170) target = $region20
      $region19: #{decoder_forward.1} parent=11 // pred_region
        _
      $region20: #{decoder_forward.1} parent=11 // pred_fallthru
        _
      // Predicated region
      $region21: #{decoder_forward.1} parent=11 // pred_check
        %p173 = pneg %p126
      $region22: #{decoder_forward.1} parent=11 // pred_check_branch
        %175 = sbr.rel (%p173) target = $region24
      $region23: #{decoder_forward.1} parent=11 // pred_region
        _
      $region24: #{decoder_forward.1} parent=11 // pred_fallthru
        _
    $region12: #{decoder_forward.1} parent=5 // pred_fallthru
      _
    %p176 = scmp.lt.s32.totalorder %s11, 2
    // Predicated region
    $region25: #{decoder_forward.1} parent=5 // pred_check
      %p177 = pneg %p176
    $region26: #{decoder_forward.1} parent=5 // pred_check_branch
      %179 = sbr.rel (%p177) target = $region28
    $region27: #{decoder_forward.1} parent=5 // pred_region
      // Predicated region
      $region29: #{decoder_forward.1} parent=27 // pred_check
        %p180 = pneg %p31
      $region30: #{decoder_forward.1} parent=27 // pred_check_branch
        %182 = sbr.rel (%p180) target = $region32
      $region31: #{decoder_forward.1} parent=27 // pred_region
        %p183 = scmp.lt.s32.totalorder %s11, 1
        %s184 = scalar_select %p183, %s11, 1
        %s185 = smul.addr %s184, 4
        %s186 = smul.addr %s185, 8
        %s187 = scalar_lea.vmem %s0, %s186
      $region32: #{decoder_forward.1} parent=27 // pred_fallthru
        _
      // Predicated region
      $region33: #{decoder_forward.1} parent=27 // pred_check
        %p188 = pneg %p57
      $region34: #{decoder_forward.1} parent=27 // pred_check_branch
        %190 = sbr.rel (%p188) target = $region36
      $region35: #{decoder_forward.1} parent=27 // pred_region
        %s191 = smul.u32 8, %s11
        %p192 = scmp.lt.s32.totalorder %s191, 15
        %s193 = scalar_select %p192, %s191, 15
        %s194 = smul.addr %s193, 2
        %s195 = smul.addr %s194, 8
        %s196 = scalar_lea.vmem %s1, %s195
        %s197 = smul.u32 8, %s11
      $region36: #{decoder_forward.1} parent=27 // pred_fallthru
        _
    $region28: #{decoder_forward.1} parent=5 // pred_fallthru
      _
    %p198 = scmp.le.s32.totalorder 1, %s11
    %p199 = scmp.lt.s32.totalorder %s11, 3
    %p200 = pnand %p198, %p199
    %p201 = pneg %p200
    // Predicated region
    $region37: #{decoder_forward.1} parent=5 // pred_check
      _
    $region38: #{decoder_forward.1} parent=5 // pred_check_branch
      %203 = sbr.rel (%p200) target = $region40
    $region39: #{decoder_forward.1} parent=5 // pred_region
      %s204 = ssub.s32 %s11, 1
      %p205 = scmp.lt.s32.totalorder %s16, 1
      %s206 = scalar_select %p205, %s16, 1
      %s207 = smul.addr %s206, 4
      %s208 = smul.addr %s207, 8
      %s209 = scalar_lea.vmem %s0, %s208
      %p210 = pneg %p37
      %p211 = pneg %p34
      %s212 = smul.u32 8, %s16
      %p213 = scmp.lt.s32.totalorder %s212, 15
      %s214 = scalar_select %p213, %s212, 15
      %s215 = smul.addr %s214, 2
      %s216 = smul.addr %s215, 8
      %s217 = scalar_lea.vmem %s1, %s216
      %p218 = pneg %p63
      %p219 = pneg %p60
      %p220 = pneg %p84
      %p221 = pneg %p81
      %p222 = pneg %p105
      %p223 = pneg %p102
      %p224 = pneg %p126
      %p225 = pneg %p123
      %p226 = pneg %p152
      %p227 = pneg %p149
      %p228 = scmp.lt.s32.totalorder %s16, 1
      %s229 = scalar_select %p228, %s16, 1
      %s230 = smul.addr %s229, 2
      %s231 = scalar_lea.vmem %s5, %s230
      %p232 = scmp.lt.s32.totalorder %s16, 1
      %s233 = scalar_select %p232, %s16, 1
      %s234 = smul.addr %s233, 4
      %s235 = smul.addr %s234, 8
      %s236 = scalar_lea.vmem %s0, %s235
      %s237 = smul.u32 8, %s16
      %p238 = scmp.lt.s32.totalorder %s237, 15
      %s239 = scalar_select %p238, %s237, 15
      %s240 = smul.addr %s239, 2
      %s241 = smul.addr %s240, 8
      %s242 = scalar_lea.vmem %s1, %s241
      %s243 = smul.u32 8, %s16
      %p244 = scmp.lt.s32.totalorder %s16, 1
      %s245 = scalar_select %p244, %s16, 1
      %s246 = smul.addr %s245, 2
      %s247 = scalar_lea.vmem %s5, %s246
      %v249 = vlaneseq
      %v250 = vshrl.u32 %v249, 7
      %vm251 = vcmp.eq.s32.totalorder %v250, 0
      %v252 = vsel %vm251, 1, 0
      %v253 = vcvt.s32.f32 %v252
      %v254 = vpack.c.bf16 %v253, %v253
      %255 = vst [vmem:[#allocation2 + $0x90] sm:$0xff] %v254
      %v256 = vld [vmem:[%s4] sm:$0xff]
      %v257 = vld [vmem:[%s4 + $0x8] sm:$0xff]
      %v258 = vld [vmem:[%s236] sm:$0xff]
      %v259 = vld [vmem:[%s236 + $0x8] sm:$0xff]
      %v260 = vld [vmem:[%s236 + $0x10] sm:$0xff]
      %v261 = vld [vmem:[%s236 + $0x18] sm:$0xff]
      %v262 = vld [vmem:[%s2] sm:$0xff]
      %v263 = vld [vmem:[%s2 + $0x8] sm:$0xff]
      %264 = vrot.lane.b32.xlu0 %v258, 17
      %v265 = vpop.permute.xlu0 %264
      %266 = vrot.lane.b32.xlu0 %v260, 17
      %v267 = vpop.permute.xlu0 %266
      %268 = vrot.lane.b32.xlu0 %v259, 17
      %v269 = vpop.permute.xlu0 %268
      %270 = vrot.lane.b32.xlu0 %v261, 17
      %v271 = vpop.permute.xlu0 %270
      %v272 = vlaneseq
      %v273 = vand.u32 %v272, 127
      %vm274 = vcmp.lt.s32.totalorder %v273, 17
      %v275 = vsel %vm274, %v265, %v269
      %v276 = vsel %vm274, %v267, %v271
      %v277 = vsel %vm274, %v269, %v265
      %v278 = vsel %vm274, %v271, %v267
      %v279 = vld [vmem:[%s3] ss:$8 sm:$0x3]
      %v281 = vperm.slane %v279, 0
      %v282 = vperm.slane %v279, 1
      %v285 = vmul.f32 %v277, %v281
      %v286 = vmul.f32 %v275, %v282
      %v287 = vmul.f32 %v278, %v281
      %v288 = vmul.f32 %v276, %v282
      %v289 = vpack.c.bf16 %v286, %v285
      %v290 = vpack.c.bf16 %v288, %v287
      %291 = vst [vmem:[#allocation2] sm:$0xff] %v289
      %292 = vst [vmem:[#allocation2 + $0x8] sm:$0xff] %v290
      %293 = vrot.lane.b32.xlu0 %v258, 16
      %v294 = vpop.permute.xlu0 %293
      %295 = vrot.lane.b32.xlu0 %v260, 16
      %v296 = vpop.permute.xlu0 %295
      %297 = vrot.lane.b32.xlu0 %v259, 16
      %v298 = vpop.permute.xlu0 %297
      %299 = vrot.lane.b32.xlu0 %v261, 16
      %v300 = vpop.permute.xlu0 %299
      %vm301 = vcmp.lt.s32.totalorder %v273, 16
      %v302 = vsel %vm301, %v294, %v298
      %v303 = vsel %vm301, %v296, %v300
      %v304 = vsel %vm301, %v298, %v294
      %v305 = vsel %vm301, %v300, %v296
      %s306 = scalar_lea.vmem %s3, 1
      %v307 = vld [vmem:[%s306] ss:$8 sm:$0x3]
      %v309 = vperm.slane %v307, 0
      %v310 = vperm.slane %v307, 1
      %v313 = vmul.f32 %v304, %v309
      %v314 = vmul.f32 %v302, %v310
      %v315 = vmul.f32 %v305, %v309
      %v316 = vmul.f32 %v303, %v310
      %v317 = vpack.c.bf16 %v314, %v313
      %v318 = vpack.c.bf16 %v316, %v315
      %319 = vst [vmem:[#allocation2 + $0x10] sm:$0xff] %v317
      %320 = vst [vmem:[#allocation2 + $0x18] sm:$0xff] %v318
      %321 = vrot.lane.b32.xlu0 %v258, 15
      %v322 = vpop.permute.xlu0 %321
      %323 = vrot.lane.b32.xlu0 %v260, 15
      %v324 = vpop.permute.xlu0 %323
      %325 = vrot.lane.b32.xlu0 %v259, 15
      %v326 = vpop.permute.xlu0 %325
      %327 = vrot.lane.b32.xlu0 %v261, 15
      %v328 = vpop.permute.xlu0 %327
      %vm329 = vcmp.lt.s32.totalorder %v273, 15
      %v330 = vsel %vm329, %v322, %v326
      %v331 = vsel %vm329, %v324, %v328
      %v332 = vsel %vm329, %v326, %v322
      %v333 = vsel %vm329, %v328, %v324
      %s334 = scalar_lea.vmem %s3, 2
      %v335 = vld [vmem:[%s334] ss:$8 sm:$0x3]
      %v337 = vperm.slane %v335, 0
      %v338 = vperm.slane %v335, 1
      %v341 = vmul.f32 %v332, %v337
      %v342 = vmul.f32 %v330, %v338
      %v343 = vmul.f32 %v333, %v337
      %v344 = vmul.f32 %v331, %v338
      %v345 = vpack.c.bf16 %v342, %v341
      %v346 = vpack.c.bf16 %v344, %v343
      %347 = vst [vmem:[#allocation2 + $0x20] sm:$0xff] %v345
      %348 = vst [vmem:[#allocation2 + $0x28] sm:$0xff] %v346
      %349 = vrot.lane.b32.xlu0 %v258, 1
      %v350 = vpop.permute.xlu0 %349
      %351 = vrot.lane.b32.xlu0 %v260, 1
      %v352 = vpop.permute.xlu0 %351
      %353 = vrot.lane.b32.xlu0 %v259, 1
      %v354 = vpop.permute.xlu0 %353
      %355 = vrot.lane.b32.xlu0 %v261, 1
      %v356 = vpop.permute.xlu0 %355
      %vm357 = vcmp.lt.s32.totalorder %v273, 1
      %v358 = vsel %vm357, %v350, %v354
      %v359 = vsel %vm357, %v352, %v356
      %v360 = vsel %vm357, %v354, %v350
      %v361 = vsel %vm357, %v356, %v352
      %s362 = scalar_lea.vmem %s3, 3
      %v363 = vld [vmem:[%s362] ss:$8 sm:$0x3]
      %v365 = vperm.slane %v363, 0
      %v366 = vperm.slane %v363, 1
      %v369 = vmul.f32 %v360, %v365
      %v370 = vmul.f32 %v358, %v366
      %v371 = vmul.f32 %v361, %v365
      %v372 = vmul.f32 %v359, %v366
      %v373 = vpack.c.bf16 %v370, %v369
      %v374 = vpack.c.bf16 %v372, %v371
      %375 = vst [vmem:[#allocation2 + $0x30] sm:$0xff] %v373
      %376 = vst [vmem:[#allocation2 + $0x38] sm:$0xff] %v374
      %v377 = vpack.c.bf16 %v259, %v258
      %v378 = vpack.c.bf16 %v261, %v260
      %379 = vst [vmem:[#allocation2 + $0x40] sm:$0xff] %v377
      %380 = vst [vmem:[#allocation2 + $0x48] sm:$0xff] %v378
      %381 = vrot.lane.b32.xlu0 %v258, 127
      %v382 = vpop.permute.xlu0 %381
      %383 = vrot.lane.b32.xlu0 %v260, 127
      %v384 = vpop.permute.xlu0 %383
      %385 = vrot.lane.b32.xlu0 %v259, 127
      %v386 = vpop.permute.xlu0 %385
      %387 = vrot.lane.b32.xlu0 %v261, 127
      %v388 = vpop.permute.xlu0 %387
      %vm389 = vcmp.lt.s32.totalorder %v273, 127
      %v390 = vsel %vm389, %v382, %v386
      %v391 = vsel %vm389, %v384, %v388
      %v392 = vsel %vm389, %v386, %v382
      %v393 = vsel %vm389, %v388, %v384
      %s394 = scalar_lea.vmem %s3, 5
      %v395 = vld [vmem:[%s394] ss:$8 sm:$0x3]
      %v397 = vperm.slane %v395, 0
      %v398 = vperm.slane %v395, 1
      %v401 = vmul.f32 %v390, %v397
      %v402 = vmul.f32 %v392, %v398
      %v403 = vmul.f32 %v391, %v397
      %v404 = vmul.f32 %v393, %v398
      %v405 = vpack.c.bf16 %v402, %v401
      %v406 = vpack.c.bf16 %v404, %v403
      %407 = vst [vmem:[#allocation2 + $0x50] sm:$0xff] %v405
      %408 = vst [vmem:[#allocation2 + $0x58] sm:$0xff] %v406
      %409 = vrot.lane.b32.xlu0 %v258, 113
      %v410 = vpop.permute.xlu0 %409
      %411 = vrot.lane.b32.xlu0 %v260, 113
      %v412 = vpop.permute.xlu0 %411
      %413 = vrot.lane.b32.xlu0 %v259, 113
      %v414 = vpop.permute.xlu0 %413
      %415 = vrot.lane.b32.xlu0 %v261, 113
      %v416 = vpop.permute.xlu0 %415
      %vm417 = vcmp.lt.s32.totalorder %v273, 113
      %v418 = vsel %vm417, %v410, %v414
      %v419 = vsel %vm417, %v412, %v416
      %v420 = vsel %vm417, %v414, %v410
      %v421 = vsel %vm417, %v416, %v412
      %s422 = scalar_lea.vmem %s3, 6
      %v423 = vld [vmem:[%s422] ss:$8 sm:$0x3]
      %v425 = vperm.slane %v423, 0
      %v426 = vperm.slane %v423, 1
      %v429 = vmul.f32 %v418, %v425
      %v430 = vmul.f32 %v420, %v426
      %v431 = vmul.f32 %v419, %v425
      %v432 = vmul.f32 %v421, %v426
      %v433 = vpack.c.bf16 %v430, %v429
      %v434 = vpack.c.bf16 %v432, %v431
      %435 = vst [vmem:[#allocation2 + $0x60] sm:$0xff] %v433
      %436 = vst [vmem:[#allocation2 + $0x68] sm:$0xff] %v434
      %437 = vrot.lane.b32.xlu0 %v258, 112
      %v438 = vpop.permute.xlu0 %437
      %439 = vrot.lane.b32.xlu0 %v260, 112
      %v440 = vpop.permute.xlu0 %439
      %441 = vrot.lane.b32.xlu0 %v259, 112
      %v442 = vpop.permute.xlu0 %441
      %443 = vrot.lane.b32.xlu0 %v261, 112
      %v444 = vpop.permute.xlu0 %443
      %vm445 = vcmp.lt.s32.totalorder %v273, 112
      %v446 = vsel %vm445, %v438, %v442
      %v447 = vsel %vm445, %v440, %v444
      %v448 = vsel %vm445, %v442, %v438
      %v449 = vsel %vm445, %v444, %v440
      %s450 = scalar_lea.vmem %s3, 7
      %v451 = vld [vmem:[%s450] ss:$8 sm:$0x3]
      %v453 = vperm.slane %v451, 0
      %v454 = vperm.slane %v451, 1
      %v457 = vmul.f32 %v446, %v453
      %v458 = vmul.f32 %v448, %v454
      %v459 = vmul.f32 %v447, %v453
      %v460 = vmul.f32 %v449, %v454
      %v461 = vpack.c.bf16 %v458, %v457
      %v462 = vpack.c.bf16 %v460, %v459
      %463 = vst [vmem:[#allocation2 + $0x70] sm:$0xff] %v461
      %464 = vst [vmem:[#allocation2 + $0x78] sm:$0xff] %v462
      %465 = vrot.lane.b32.xlu0 %v258, 111
      %v466 = vpop.permute.xlu0 %465
      %467 = vrot.lane.b32.xlu0 %v260, 111
      %v468 = vpop.permute.xlu0 %467
      %469 = vrot.lane.b32.xlu0 %v259, 111
      %v470 = vpop.permute.xlu0 %469
      %471 = vrot.lane.b32.xlu0 %v261, 111
      %v472 = vpop.permute.xlu0 %471
      %vm473 = vcmp.lt.s32.totalorder %v273, 111
      %v474 = vsel %vm473, %v466, %v470
      %v475 = vsel %vm473, %v468, %v472
      %v476 = vsel %vm473, %v470, %v466
      %v477 = vsel %vm473, %v472, %v468
      %s478 = scalar_lea.vmem %s3, 16
      %v479 = vld [vmem:[%s478] ss:$8 sm:$0x3]
      %v481 = vperm.slane %v479, 0
      %v482 = vperm.slane %v479, 1
      %v485 = vmul.f32 %v474, %v481
      %v486 = vmul.f32 %v476, %v482
      %v487 = vmul.f32 %v475, %v481
      %v488 = vmul.f32 %v477, %v482
      %v489 = vpack.c.bf16 %v486, %v485
      %v490 = vpack.c.bf16 %v488, %v487
      %491 = vst [vmem:[#allocation2 + $0x80] sm:$0xff] %v489
      %492 = vst [vmem:[#allocation2 + $0x88] sm:$0xff] %v490
      %v493 = vld [vmem:[#allocation2] sm:$0xff]
      %v494 = vld [vmem:[#allocation2 + $0x8] sm:$0xff]
      %v495 = vld [vmem:[#allocation2 + $0x10] sm:$0xff]
      %v496 = vld [vmem:[#allocation2 + $0x18] sm:$0xff]
      %v497 = vld [vmem:[#allocation2 + $0x20] sm:$0xff]
      %v498 = vld [vmem:[#allocation2 + $0x28] sm:$0xff]
      %v499 = vld [vmem:[#allocation2 + $0x30] sm:$0xff]
      %v500 = vld [vmem:[#allocation2 + $0x38] sm:$0xff]
      %v501 = vld [vmem:[#allocation2 + $0x40] sm:$0xff]
      %v502 = vld [vmem:[#allocation2 + $0x48] sm:$0xff]
      %v503 = vld [vmem:[#allocation2 + $0x50] sm:$0xff]
      %v504 = vld [vmem:[#allocation2 + $0x58] sm:$0xff]
      %v505 = vld [vmem:[#allocation2 + $0x60] sm:$0xff]
      %v506 = vld [vmem:[#allocation2 + $0x68] sm:$0xff]
      %v507 = vld [vmem:[#allocation2 + $0x70] sm:$0xff]
      %v508 = vld [vmem:[#allocation2 + $0x78] sm:$0xff]
      %v509 = vld [vmem:[#allocation2 + $0x80] sm:$0xff]
      %v510 = vld [vmem:[#allocation2 + $0x88] sm:$0xff]
      %v511 = vld [vmem:[#allocation2 + $0x90] sm:$0xff]
      %v514 = vunpack.c.l.b16 %v262
      %v515 = vunpack.c.h.b16 %v262
      %v516 = vunpack.c.l.b16 %v263
      %v517 = vunpack.c.h.b16 %v263
      %v518 = vpack.c.b16 %v516, %v514
      %v519 = vpack.c.b16 %v517, %v515
      %v540 = vunpack.c.l.b16 %v493
      %v541 = vunpack.c.h.b16 %v493
      %v542 = vunpack.c.l.b16 %v494
      %v543 = vunpack.c.h.b16 %v494
      %v544 = vunpack.c.l.b16 %v495
      %v545 = vunpack.c.h.b16 %v495
      %v546 = vunpack.c.l.b16 %v496
      %v547 = vunpack.c.h.b16 %v496
      %v548 = vunpack.c.l.b16 %v497
      %v549 = vunpack.c.h.b16 %v497
      %v550 = vunpack.c.l.b16 %v498
      %v551 = vunpack.c.h.b16 %v498
      %v552 = vunpack.c.l.b16 %v499
      %v553 = vunpack.c.h.b16 %v499
      %v554 = vunpack.c.l.b16 %v500
      %v555 = vunpack.c.h.b16 %v500
      %v556 = vunpack.c.l.b16 %v501
      %v557 = vunpack.c.h.b16 %v501
      %v558 = vunpack.c.l.b16 %v502
      %v559 = vunpack.c.h.b16 %v502
      %v560 = vunpack.c.l.b16 %v503
      %v561 = vunpack.c.h.b16 %v503
      %v562 = vunpack.c.l.b16 %v504
      %v563 = vunpack.c.h.b16 %v504
      %v564 = vunpack.c.l.b16 %v505
      %v565 = vunpack.c.h.b16 %v505
      %v566 = vunpack.c.l.b16 %v506
      %v567 = vunpack.c.h.b16 %v506
      %v568 = vunpack.c.l.b16 %v507
      %v569 = vunpack.c.h.b16 %v507
      %v570 = vunpack.c.l.b16 %v508
      %v571 = vunpack.c.h.b16 %v508
      %v572 = vunpack.c.l.b16 %v509
      %v573 = vunpack.c.h.b16 %v509
      %v574 = vunpack.c.l.b16 %v510
      %v575 = vunpack.c.h.b16 %v510
      %v576 = vunpack.c.l.b16 %v511
      %v577 = vunpack.c.h.b16 %v511
      %v578 = vpack.c.b16 %v542, %v540
      %v579 = vpack.c.b16 %v543, %v541
      %v580 = vpack.c.b16 %v546, %v544
      %v581 = vpack.c.b16 %v547, %v545
      %v582 = vpack.c.b16 %v550, %v548
      %v583 = vpack.c.b16 %v551, %v549
      %v584 = vpack.c.b16 %v554, %v552
      %v585 = vpack.c.b16 %v555, %v553
      %v586 = vpack.c.b16 %v558, %v556
      %v587 = vpack.c.b16 %v559, %v557
      %v588 = vpack.c.b16 %v562, %v560
      %v589 = vpack.c.b16 %v563, %v561
      %v590 = vpack.c.b16 %v566, %v564
      %v591 = vpack.c.b16 %v567, %v565
      %v592 = vpack.c.b16 %v570, %v568
      %v593 = vpack.c.b16 %v571, %v569
      %v594 = vpack.c.b16 %v574, %v572
      %v595 = vpack.c.b16 %v575, %v573
      %v596 = vpack.c.b16 %v576, %v576
      %v597 = vpack.c.b16 %v577, %v577
      %vm616 = vcmask 195584
      %v618 = vsel %vm616, %v519, 0
      %vm620 = vcmask 1043456
      %v622 = vsel %vm620, %v596, 0
      %v625 = vsel %vm620, %v597, 0
      %627 = vmatpush.bf16.msra.mxu0 %v592
      %628 = vmatpush.bf16.msra.mxu0 %v590
      %629 = vmatpush.bf16.msra.mxu0 %v588
      %630 = vmatpush.bf16.msra.mxu0 %v586
      %631 = vmatpush.bf16.msra.mxu0 %v584
      %632 = vmatpush.bf16.msra.mxu0 %v582
      %633 = vmatpush.bf16.msra.mxu0 %v580
      %634 = vmatpush.bf16.msra.mxu0 %v578
      %635 = vmatmul.bf16.gmra.mxu0 %v518
      %v636 = vpop.f32.mrf.mxu0
      %v637 = vadd.f32 0.0, %v636
      %v638 = vpop.f32.mrf.mxu0
      %v639 = vadd.f32 0.0, %v638
      %640 = vdwg.mxu0
      %641 = vmatpush.bf16.msra.mxu0 0
      %642 = vmatpush.bf16.msra.mxu0 0
      %643 = vmatpush.bf16.msra.mxu0 0
      %644 = vmatpush.bf16.msra.mxu0 0
      %645 = vmatpush.bf16.msra.mxu0 0
      %646 = vmatpush.bf16.msra.mxu0 0
      %647 = vmatpush.bf16.msra.mxu0 %v622
      %648 = vmatpush.bf16.msra.mxu0 %v594
      %649 = vmatmul.bf16.gmra.mxu0 %v618
      %v650 = vpop.f32.mrf.mxu0
      %v651 = vadd.f32 %v637, %v650
      %v652 = vpop.f32.mrf.mxu0
      %v653 = vadd.f32 %v639, %v652
      %654 = vdwg.mxu0
      %655 = vmatpush.bf16.msra.mxu0 %v593
      %656 = vmatpush.bf16.msra.mxu0 %v591
      %657 = vmatpush.bf16.msra.mxu0 %v589
      %658 = vmatpush.bf16.msra.mxu0 %v587
      %659 = vmatpush.bf16.msra.mxu0 %v585
      %660 = vmatpush.bf16.msra.mxu0 %v583
      %661 = vmatpush.bf16.msra.mxu0 %v581
      %662 = vmatpush.bf16.msra.mxu0 %v579
      %663 = vmatmul.bf16.gmra.mxu0 %v518
      %v664 = vpop.f32.mrf.mxu0
      %v665 = vadd.f32 0.0, %v664
      %v666 = vpop.f32.mrf.mxu0
      %v667 = vadd.f32 0.0, %v666
      %668 = vdwg.mxu0
      %669 = vmatpush.bf16.msra.mxu0 0
      %670 = vmatpush.bf16.msra.mxu0 0
      %671 = vmatpush.bf16.msra.mxu0 0
      %672 = vmatpush.bf16.msra.mxu0 0
      %673 = vmatpush.bf16.msra.mxu0 0
      %674 = vmatpush.bf16.msra.mxu0 0
      %675 = vmatpush.bf16.msra.mxu0 %v625
      %676 = vmatpush.bf16.msra.mxu0 %v595
      %677 = vmatmul.bf16.gmra.mxu0 %v618
      %v678 = vpop.f32.mrf.mxu0
      %v679 = vadd.f32 %v665, %v678
      %v680 = vpop.f32.mrf.mxu0
      %v681 = vadd.f32 %v667, %v680
      %682 = vdwg.mxu0
      %vm683 = vcmp.gt.f32.partialorder %v651, 0.0
      %vm684 = vcmp.gt.f32.partialorder %v679, 0.0
      %vm685 = vcmp.gt.f32.partialorder %v653, 0.0
      %vm686 = vcmp.gt.f32.partialorder %v681, 0.0
      %v687 = vmul.f32 %v651, 0.01
      %v688 = vmul.f32 %v679, 0.01
      %v689 = vmul.f32 %v653, 0.01
      %v690 = vmul.f32 %v681, 0.01
      %v691 = vsel %vm683, %v651, %v687
      %v692 = vsel %vm684, %v679, %v688
      %v693 = vsel %vm685, %v653, %v689
      %v694 = vsel %vm686, %v681, %v690
      %s695 = scalar_lea.vmem %s2, 16
      %v696 = vld [vmem:[%s695] sm:$0xff]
      %v697 = vld [vmem:[%s695 + $0x8] sm:$0xff]
      %698 = vrot.lane.b32.xlu0 %v691, 17
      %v699 = vpop.permute.xlu0 %698
      %700 = vrot.lane.b32.xlu0 %v693, 17
      %v701 = vpop.permute.xlu0 %700
      %702 = vrot.lane.b32.xlu0 %v692, 17
      %v703 = vpop.permute.xlu0 %702
      %704 = vrot.lane.b32.xlu0 %v694, 17
      %v705 = vpop.permute.xlu0 %704
      %v706 = vsel %vm274, %v699, %v703
      %v707 = vsel %vm274, %v701, %v705
      %v708 = vsel %vm274, %v703, %v699
      %v709 = vsel %vm274, %v705, %v701
      %v710 = vld [vmem:[%s3] ss:$8 sm:$0x3]
      %v712 = vperm.slane %v710, 0
      %v713 = vperm.slane %v710, 1
      %v716 = vmul.f32 %v708, %v712
      %v717 = vmul.f32 %v706, %v713
      %v718 = vmul.f32 %v709, %v712
      %v719 = vmul.f32 %v707, %v713
      %v720 = vpack.c.bf16 %v717, %v716
      %v721 = vpack.c.bf16 %v719, %v718
      %722 = vst [vmem:[#allocation2] sm:$0xff] %v720
      %723 = vst [vmem:[#allocation2 + $0x8] sm:$0xff] %v721
      %724 = vrot.lane.b32.xlu0 %v691, 16
      %v725 = vpop.permute.xlu0 %724
      %726 = vrot.lane.b32.xlu0 %v693, 16
      %v727 = vpop.permute.xlu0 %726
      %728 = vrot.lane.b32.xlu0 %v692, 16
      %v729 = vpop.permute.xlu0 %728
      %730 = vrot.lane.b32.xlu0 %v694, 16
      %v731 = vpop.permute.xlu0 %730
      %v732 = vsel %vm301, %v725, %v729
      %v733 = vsel %vm301, %v727, %v731
      %v734 = vsel %vm301, %v729, %v725
      %v735 = vsel %vm301, %v731, %v727
      %v736 = vld [vmem:[%s306] ss:$8 sm:$0x3]
      %v738 = vperm.slane %v736, 0
      %v739 = vperm.slane %v736, 1
      %v742 = vmul.f32 %v734, %v738
      %v743 = vmul.f32 %v732, %v739
      %v744 = vmul.f32 %v735, %v738
      %v745 = vmul.f32 %v733, %v739
      %v746 = vpack.c.bf16 %v743, %v742
      %v747 = vpack.c.bf16 %v745, %v744
      %748 = vst [vmem:[#allocation2 + $0x10] sm:$0xff] %v746
      %749 = vst [vmem:[#allocation2 + $0x18] sm:$0xff] %v747
      %750 = vrot.lane.b32.xlu0 %v691, 15
      %v751 = vpop.permute.xlu0 %750
      %752 = vrot.lane.b32.xlu0 %v693, 15
      %v753 = vpop.permute.xlu0 %752
      %754 = vrot.lane.b32.xlu0 %v692, 15
      %v755 = vpop.permute.xlu0 %754
      %756 = vrot.lane.b32.xlu0 %v694, 15
      %v757 = vpop.permute.xlu0 %756
      %v758 = vsel %vm329, %v751, %v755
      %v759 = vsel %vm329, %v753, %v757
      %v760 = vsel %vm329, %v755, %v751
      %v761 = vsel %vm329, %v757, %v753
      %v762 = vld [vmem:[%s334] ss:$8 sm:$0x3]
      %v764 = vperm.slane %v762, 0
      %v765 = vperm.slane %v762, 1
      %v768 = vmul.f32 %v760, %v764
      %v769 = vmul.f32 %v758, %v765
      %v770 = vmul.f32 %v761, %v764
      %v771 = vmul.f32 %v759, %v765
      %v772 = vpack.c.bf16 %v769, %v768
      %v773 = vpack.c.bf16 %v771, %v770
      %774 = vst [vmem:[#allocation2 + $0x20] sm:$0xff] %v772
      %775 = vst [vmem:[#allocation2 + $0x28] sm:$0xff] %v773
      %776 = vrot.lane.b32.xlu0 %v691, 1
      %v777 = vpop.permute.xlu0 %776
      %778 = vrot.lane.b32.xlu0 %v693, 1
      %v779 = vpop.permute.xlu0 %778
      %780 = vrot.lane.b32.xlu0 %v692, 1
      %v781 = vpop.permute.xlu0 %780
      %782 = vrot.lane.b32.xlu0 %v694, 1
      %v783 = vpop.permute.xlu0 %782
      %v784 = vsel %vm357, %v777, %v781
      %v785 = vsel %vm357, %v779, %v783
      %v786 = vsel %vm357, %v781, %v777
      %v787 = vsel %vm357, %v783, %v779
      %v788 = vld [vmem:[%s362] ss:$8 sm:$0x3]
      %v790 = vperm.slane %v788, 0
      %v791 = vperm.slane %v788, 1
      %v794 = vmul.f32 %v786, %v790
      %v795 = vmul.f32 %v784, %v791
      %v796 = vmul.f32 %v787, %v790
      %v797 = vmul.f32 %v785, %v791
      %v798 = vpack.c.bf16 %v795, %v794
      %v799 = vpack.c.bf16 %v797, %v796
      %800 = vst [vmem:[#allocation2 + $0x30] sm:$0xff] %v798
      %801 = vst [vmem:[#allocation2 + $0x38] sm:$0xff] %v799
      %v802 = vpack.c.bf16 %v692, %v691
      %v803 = vpack.c.bf16 %v694, %v693
      %804 = vst [vmem:[#allocation2 + $0x40] sm:$0xff] %v802
      %805 = vst [vmem:[#allocation2 + $0x48] sm:$0xff] %v803
      %806 = vrot.lane.b32.xlu0 %v691, 127
      %v807 = vpop.permute.xlu0 %806
      %808 = vrot.lane.b32.xlu0 %v693, 127
      %v809 = vpop.permute.xlu0 %808
      %810 = vrot.lane.b32.xlu0 %v692, 127
      %v811 = vpop.permute.xlu0 %810
      %812 = vrot.lane.b32.xlu0 %v694, 127
      %v813 = vpop.permute.xlu0 %812
      %v814 = vsel %vm389, %v807, %v811
      %v815 = vsel %vm389, %v809, %v813
      %v816 = vsel %vm389, %v811, %v807
      %v817 = vsel %vm389, %v813, %v809
      %v818 = vld [vmem:[%s394] ss:$8 sm:$0x3]
      %v820 = vperm.slane %v818, 0
      %v821 = vperm.slane %v818, 1
      %v824 = vmul.f32 %v814, %v820
      %v825 = vmul.f32 %v816, %v821
      %v826 = vmul.f32 %v815, %v820
      %v827 = vmul.f32 %v817, %v821
      %v828 = vpack.c.bf16 %v825, %v824
      %v829 = vpack.c.bf16 %v827, %v826
      %830 = vst [vmem:[#allocation2 + $0x50] sm:$0xff] %v828
      %831 = vst [vmem:[#allocation2 + $0x58] sm:$0xff] %v829
      %832 = vrot.lane.b32.xlu0 %v691, 113
      %v833 = vpop.permute.xlu0 %832
      %834 = vrot.lane.b32.xlu0 %v693, 113
      %v835 = vpop.permute.xlu0 %834
      %836 = vrot.lane.b32.xlu0 %v692, 113
      %v837 = vpop.permute.xlu0 %836
      %838 = vrot.lane.b32.xlu0 %v694, 113
      %v839 = vpop.permute.xlu0 %838
      %v840 = vsel %vm417, %v833, %v837
      %v841 = vsel %vm417, %v835, %v839
      %v842 = vsel %vm417, %v837, %v833
      %v843 = vsel %vm417, %v839, %v835
      %v844 = vld [vmem:[%s422] ss:$8 sm:$0x3]
      %v846 = vperm.slane %v844, 0
      %v847 = vperm.slane %v844, 1
      %v850 = vmul.f32 %v840, %v846
      %v851 = vmul.f32 %v842, %v847
      %v852 = vmul.f32 %v841, %v846
      %v853 = vmul.f32 %v843, %v847
      %v854 = vpack.c.bf16 %v851, %v850
      %v855 = vpack.c.bf16 %v853, %v852
      %856 = vst [vmem:[#allocation2 + $0x60] sm:$0xff] %v854
      %857 = vst [vmem:[#allocation2 + $0x68] sm:$0xff] %v855
      %858 = vrot.lane.b32.xlu0 %v691, 112
      %v859 = vpop.permute.xlu0 %858
      %860 = vrot.lane.b32.xlu0 %v693, 112
      %v861 = vpop.permute.xlu0 %860
      %862 = vrot.lane.b32.xlu0 %v692, 112
      %v863 = vpop.permute.xlu0 %862
      %864 = vrot.lane.b32.xlu0 %v694, 112
      %v865 = vpop.permute.xlu0 %864
      %v866 = vsel %vm445, %v859, %v863
      %v867 = vsel %vm445, %v861, %v865
      %v868 = vsel %vm445, %v863, %v859
      %v869 = vsel %vm445, %v865, %v861
      %v870 = vld [vmem:[%s450] ss:$8 sm:$0x3]
      %v872 = vperm.slane %v870, 0
      %v873 = vperm.slane %v870, 1
      %v876 = vmul.f32 %v866, %v872
      %v877 = vmul.f32 %v868, %v873
      %v878 = vmul.f32 %v867, %v872
      %v879 = vmul.f32 %v869, %v873
      %v880 = vpack.c.bf16 %v877, %v876
      %v881 = vpack.c.bf16 %v879, %v878
      %882 = vst [vmem:[#allocation2 + $0x70] sm:$0xff] %v880
      %883 = vst [vmem:[#allocation2 + $0x78] sm:$0xff] %v881
      %884 = vrot.lane.b32.xlu0 %v691, 111
      %v885 = vpop.permute.xlu0 %884
      %886 = vrot.lane.b32.xlu0 %v693, 111
      %v887 = vpop.permute.xlu0 %886
      %888 = vrot.lane.b32.xlu0 %v692, 111
      %v889 = vpop.permute.xlu0 %888
      %890 = vrot.lane.b32.xlu0 %v694, 111
      %v891 = vpop.permute.xlu0 %890
      %v892 = vsel %vm473, %v885, %v889
      %v893 = vsel %vm473, %v887, %v891
      %v894 = vsel %vm473, %v889, %v885
      %v895 = vsel %vm473, %v891, %v887
      %v896 = vld [vmem:[%s478] ss:$8 sm:$0x3]
      %v898 = vperm.slane %v896, 0
      %v899 = vperm.slane %v896, 1
      %v902 = vmul.f32 %v892, %v898
      %v903 = vmul.f32 %v894, %v899
      %v904 = vmul.f32 %v893, %v898
      %v905 = vmul.f32 %v895, %v899
      %v906 = vpack.c.bf16 %v903, %v902
      %v907 = vpack.c.bf16 %v905, %v904
      %908 = vst [vmem:[#allocation2 + $0x80] sm:$0xff] %v906
      %909 = vst [vmem:[#allocation2 + $0x88] sm:$0xff] %v907
      %v910 = vld [vmem:[#allocation2] sm:$0xff]
      %v911 = vld [vmem:[#allocation2 + $0x8] sm:$0xff]
      %v912 = vld [vmem:[#allocation2 + $0x10] sm:$0xff]
      %v913 = vld [vmem:[#allocation2 + $0x18] sm:$0xff]
      %v914 = vld [vmem:[#allocation2 + $0x20] sm:$0xff]
      %v915 = vld [vmem:[#allocation2 + $0x28] sm:$0xff]
      %v916 = vld [vmem:[#allocation2 + $0x30] sm:$0xff]
      %v917 = vld [vmem:[#allocation2 + $0x38] sm:$0xff]
      %v918 = vld [vmem:[#allocation2 + $0x40] sm:$0xff]
      %v919 = vld [vmem:[#allocation2 + $0x48] sm:$0xff]
      %v920 = vld [vmem:[#allocation2 + $0x50] sm:$0xff]
      %v921 = vld [vmem:[#allocation2 + $0x58] sm:$0xff]
      %v922 = vld [vmem:[#allocation2 + $0x60] sm:$0xff]
      %v923 = vld [vmem:[#allocation2 + $0x68] sm:$0xff]
      %v924 = vld [vmem:[#allocation2 + $0x70] sm:$0xff]
      %v925 = vld [vmem:[#allocation2 + $0x78] sm:$0xff]
      %v926 = vld [vmem:[#allocation2 + $0x80] sm:$0xff]
      %v927 = vld [vmem:[#allocation2 + $0x88] sm:$0xff]
      %v928 = vld [vmem:[#allocation2 + $0x90] sm:$0xff]
      %v931 = vunpack.c.l.b16 %v696
      %v932 = vunpack.c.h.b16 %v696
      %v933 = vunpack.c.l.b16 %v697
      %v934 = vunpack.c.h.b16 %v697
      %v935 = vpack.c.b16 %v933, %v931
      %v936 = vpack.c.b16 %v934, %v932
      %v957 = vunpack.c.l.b16 %v910
      %v958 = vunpack.c.h.b16 %v910
      %v959 = vunpack.c.l.b16 %v911
      %v960 = vunpack.c.h.b16 %v911
      %v961 = vunpack.c.l.b16 %v912
      %v962 = vunpack.c.h.b16 %v912
      %v963 = vunpack.c.l.b16 %v913
      %v964 = vunpack.c.h.b16 %v913
      %v965 = vunpack.c.l.b16 %v914
      %v966 = vunpack.c.h.b16 %v914
      %v967 = vunpack.c.l.b16 %v915
      %v968 = vunpack.c.h.b16 %v915
      %v969 = vunpack.c.l.b16 %v916
      %v970 = vunpack.c.h.b16 %v916
      %v971 = vunpack.c.l.b16 %v917
      %v972 = vunpack.c.h.b16 %v917
      %v973 = vunpack.c.l.b16 %v918
      %v974 = vunpack.c.h.b16 %v918
      %v975 = vunpack.c.l.b16 %v919
      %v976 = vunpack.c.h.b16 %v919
      %v977 = vunpack.c.l.b16 %v920
      %v978 = vunpack.c.h.b16 %v920
      %v979 = vunpack.c.l.b16 %v921
      %v980 = vunpack.c.h.b16 %v921
      %v981 = vunpack.c.l.b16 %v922
      %v982 = vunpack.c.h.b16 %v922
      %v983 = vunpack.c.l.b16 %v923
      %v984 = vunpack.c.h.b16 %v923
      %v985 = vunpack.c.l.b16 %v924
      %v986 = vunpack.c.h.b16 %v924
      %v987 = vunpack.c.l.b16 %v925
      %v988 = vunpack.c.h.b16 %v925
      %v989 = vunpack.c.l.b16 %v926
      %v990 = vunpack.c.h.b16 %v926
      %v991 = vunpack.c.l.b16 %v927
      %v992 = vunpack.c.h.b16 %v927
      %v993 = vunpack.c.l.b16 %v928
      %v994 = vunpack.c.h.b16 %v928
      %v995 = vpack.c.b16 %v959, %v957
      %v996 = vpack.c.b16 %v960, %v958
      %v997 = vpack.c.b16 %v963, %v961
      %v998 = vpack.c.b16 %v964, %v962
      %v999 = vpack.c.b16 %v967, %v965
      %v1000 = vpack.c.b16 %v968, %v966
      %v1001 = vpack.c.b16 %v971, %v969
      %v1002 = vpack.c.b16 %v972, %v970
      %v1003 = vpack.c.b16 %v975, %v973
      %v1004 = vpack.c.b16 %v976, %v974
      %v1005 = vpack.c.b16 %v979, %v977
      %v1006 = vpack.c.b16 %v980, %v978
      %v1007 = vpack.c.b16 %v983, %v981
      %v1008 = vpack.c.b16 %v984, %v982
      %v1009 = vpack.c.b16 %v987, %v985
      %v1010 = vpack.c.b16 %v988, %v986
      %v1011 = vpack.c.b16 %v991, %v989
      %v1012 = vpack.c.b16 %v992, %v990
      %v1013 = vpack.c.b16 %v993, %v993
      %v1014 = vpack.c.b16 %v994, %v994
      %v1034 = vsel %vm616, %v936, 0
      %v1037 = vsel %vm620, %v1013, 0
      %v1040 = vsel %vm620, %v1014, 0
      %1042 = vmatpush.bf16.msra.mxu0 %v1009
      %1043 = vmatpush.bf16.msra.mxu0 %v1007
      %1044 = vmatpush.bf16.msra.mxu0 %v1005
      %1045 = vmatpush.bf16.msra.mxu0 %v1003
      %1046 = vmatpush.bf16.msra.mxu0 %v1001
      %1047 = vmatpush.bf16.msra.mxu0 %v999
      %1048 = vmatpush.bf16.msra.mxu0 %v997
      %1049 = vmatpush.bf16.msra.mxu0 %v995
      %1050 = vmatmul.bf16.gmra.mxu0 %v935
      %v1051 = vpop.f32.mrf.mxu0
      %v1052 = vadd.f32 0.0, %v1051
      %v1053 = vpop.f32.mrf.mxu0
      %v1054 = vadd.f32 0.0, %v1053
      %1055 = vdwg.mxu0
      %1056 = vmatpush.bf16.msra.mxu0 0
      %1057 = vmatpush.bf16.msra.mxu0 0
      %1058 = vmatpush.bf16.msra.mxu0 0
      %1059 = vmatpush.bf16.msra.mxu0 0
      %1060 = vmatpush.bf16.msra.mxu0 0
      %1061 = vmatpush.bf16.msra.mxu0 0
      %1062 = vmatpush.bf16.msra.mxu0 %v1037
      %1063 = vmatpush.bf16.msra.mxu0 %v1011
      %1064 = vmatmul.bf16.gmra.mxu0 %v1034
      %v1065 = vpop.f32.mrf.mxu0
      %v1066 = vadd.f32 %v1052, %v1065
      %v1067 = vpop.f32.mrf.mxu0
      %v1068 = vadd.f32 %v1054, %v1067
      %1069 = vdwg.mxu0
      %1070 = vmatpush.bf16.msra.mxu0 %v1010
      %1071 = vmatpush.bf16.msra.mxu0 %v1008
      %1072 = vmatpush.bf16.msra.mxu0 %v1006
      %1073 = vmatpush.bf16.msra.mxu0 %v1004
      %1074 = vmatpush.bf16.msra.mxu0 %v1002
      %1075 = vmatpush.bf16.msra.mxu0 %v1000
      %1076 = vmatpush.bf16.msra.mxu0 %v998
      %1077 = vmatpush.bf16.msra.mxu0 %v996
      %1078 = vmatmul.bf16.gmra.mxu0 %v935
      %v1079 = vpop.f32.mrf.mxu0
      %v1080 = vadd.f32 0.0, %v1079
      %v1081 = vpop.f32.mrf.mxu0
      %v1082 = vadd.f32 0.0, %v1081
      %1083 = vdwg.mxu0
      %1084 = vmatpush.bf16.msra.mxu0 0
      %1085 = vmatpush.bf16.msra.mxu0 0
      %1086 = vmatpush.bf16.msra.mxu0 0
      %1087 = vmatpush.bf16.msra.mxu0 0
      %1088 = vmatpush.bf16.msra.mxu0 0
      %1089 = vmatpush.bf16.msra.mxu0 0
      %1090 = vmatpush.bf16.msra.mxu0 %v1040
      %1091 = vmatpush.bf16.msra.mxu0 %v1012
      %1092 = vmatmul.bf16.gmra.mxu0 %v1034
      %v1093 = vpop.f32.mrf.mxu0
      %v1094 = vadd.f32 %v1080, %v1093
      %v1095 = vpop.f32.mrf.mxu0
      %v1096 = vadd.f32 %v1082, %v1095
      %1097 = vdwg.mxu0
      %vm1098 = vcmp.gt.f32.partialorder %v1066, 0.0
      %vm1099 = vcmp.gt.f32.partialorder %v1094, 0.0
      %vm1100 = vcmp.gt.f32.partialorder %v1068, 0.0
      %vm1101 = vcmp.gt.f32.partialorder %v1096, 0.0
      %v1102 = vmul.f32 %v1066, 0.01
      %v1103 = vmul.f32 %v1094, 0.01
      %v1104 = vmul.f32 %v1068, 0.01
      %v1105 = vmul.f32 %v1096, 0.01
      %v1106 = vsel %vm1098, %v1066, %v1102
      %v1107 = vsel %vm1099, %v1094, %v1103
      %v1108 = vsel %vm1100, %v1068, %v1104
      %v1109 = vsel %vm1101, %v1096, %v1105
      %v1110 = vld [vmem:[%s242] sm:$0xff]
      %v1111 = vld [vmem:[%s242 + $0x8] sm:$0xff]
      %vm1112 = vcmask 64512
      %v1114 = vsel %vm1112, %v1110, 0
      %v1117 = vsel %vm1112, %v1111, 0
      %1119 = vmatpush.msra.mxu0 0.0
      %1120 = vmatpush.msra.mxu0 0.0
      %1121 = vmatpush.msra.mxu0 0.0
      %1122 = vmatpush.msra.mxu0 0.0
      %1123 = vmatpush.msra.mxu0 0.0
      %1124 = vmatpush.msra.mxu0 0.0
      %1125 = vmatpush.msra.mxu0 0.0
      %1126 = vmatpush.msra.mxu0 0.0
      %1127 = vmatpush.msra.mxu0 0.0
      %1128 = vmatpush.msra.mxu0 0.0
      %1129 = vmatpush.msra.mxu0 0.0
      %1130 = vmatpush.msra.mxu0 0.0
      %1131 = vmatpush.msra.mxu0 0.0
      %1132 = vmatpush.msra.mxu0 0.0
      %1133 = vmatpush.msra.mxu0 0.0
      %1134 = vmatpush.msra.mxu0 %v256
      %1135 = vmatmul.f32.gmra.mxu0 %v1114
      %v1136 = vpop.f32.mrf.mxu0
      %v1137 = vadd.f32 0.0, %v1136
      %1138 = vmatmul.f32.gmra.mxu0 %v1117
      %v1139 = vpop.f32.mrf.mxu0
      %v1140 = vadd.f32 0.0, %v1139
      %1141 = vdwg.mxu0
      %1142 = vmatpush.msra.mxu0 0.0
      %1143 = vmatpush.msra.mxu0 0.0
      %1144 = vmatpush.msra.mxu0 0.0
      %1145 = vmatpush.msra.mxu0 0.0
      %1146 = vmatpush.msra.mxu0 0.0
      %1147 = vmatpush.msra.mxu0 0.0
      %1148 = vmatpush.msra.mxu0 0.0
      %1149 = vmatpush.msra.mxu0 0.0
      %1150 = vmatpush.msra.mxu0 0.0
      %1151 = vmatpush.msra.mxu0 0.0
      %1152 = vmatpush.msra.mxu0 0.0
      %1153 = vmatpush.msra.mxu0 0.0
      %1154 = vmatpush.msra.mxu0 0.0
      %1155 = vmatpush.msra.mxu0 0.0
      %1156 = vmatpush.msra.mxu0 0.0
      %1157 = vmatpush.msra.mxu0 %v257
      %1158 = vmatmul.f32.gmra.mxu0 %v1114
      %v1159 = vpop.f32.mrf.mxu0
      %v1160 = vadd.f32 0.0, %v1159
      %1161 = vmatmul.f32.gmra.mxu0 %v1117
      %v1162 = vpop.f32.mrf.mxu0
      %v1163 = vadd.f32 0.0, %v1162
      %1164 = vdwg.mxu0
      %s1165 = scalar_lea.vmem %s242, 16
      %v1166 = vld [vmem:[%s1165] sm:$0xff]
      %v1167 = vld [vmem:[%s1165 + $0x8] sm:$0xff]
      %v1169 = vsel %vm1112, %v1166, 0
      %v1172 = vsel %vm1112, %v1167, 0
      %1174 = vmatpush.msra.mxu0 0.0
      %1175 = vmatpush.msra.mxu0 0.0
      %1176 = vmatpush.msra.mxu0 0.0
      %1177 = vmatpush.msra.mxu0 0.0
      %1178 = vmatpush.msra.mxu0 0.0
      %1179 = vmatpush.msra.mxu0 0.0
      %1180 = vmatpush.msra.mxu0 0.0
      %1181 = vmatpush.msra.mxu0 0.0
      %1182 = vmatpush.msra.mxu0 0.0
      %1183 = vmatpush.msra.mxu0 0.0
      %1184 = vmatpush.msra.mxu0 0.0
      %1185 = vmatpush.msra.mxu0 0.0
      %1186 = vmatpush.msra.mxu0 0.0
      %1187 = vmatpush.msra.mxu0 0.0
      %1188 = vmatpush.msra.mxu0 0.0
      %1189 = vmatpush.msra.mxu0 %v256
      %1190 = vmatmul.f32.gmra.mxu0 %v1169
      %v1191 = vpop.f32.mrf.mxu0
      %v1192 = vadd.f32 0.0, %v1191
      %1193 = vmatmul.f32.gmra.mxu0 %v1172
      %v1194 = vpop.f32.mrf.mxu0
      %v1195 = vadd.f32 0.0, %v1194
      %1196 = vdwg.mxu0
      %1197 = vmatpush.msra.mxu0 0.0
      %1198 = vmatpush.msra.mxu0 0.0
      %1199 = vmatpush.msra.mxu0 0.0
      %1200 = vmatpush.msra.mxu0 0.0
      %1201 = vmatpush.msra.mxu0 0.0
      %1202 = vmatpush.msra.mxu0 0.0
      %1203 = vmatpush.msra.mxu0 0.0
      %1204 = vmatpush.msra.mxu0 0.0
      %1205 = vmatpush.msra.mxu0 0.0
      %1206 = vmatpush.msra.mxu0 0.0
      %1207 = vmatpush.msra.mxu0 0.0
      %1208 = vmatpush.msra.mxu0 0.0
      %1209 = vmatpush.msra.mxu0 0.0
      %1210 = vmatpush.msra.mxu0 0.0
      %1211 = vmatpush.msra.mxu0 0.0
      %1212 = vmatpush.msra.mxu0 %v257
      %1213 = vmatmul.f32.gmra.mxu0 %v1169
      %v1214 = vpop.f32.mrf.mxu0
      %v1215 = vadd.f32 0.0, %v1214
      %1216 = vmatmul.f32.gmra.mxu0 %v1172
      %v1217 = vpop.f32.mrf.mxu0
      %v1218 = vadd.f32 0.0, %v1217
      %1219 = vdwg.mxu0
      %v1220 = vmul.f32 %v1137, %v1106
      %v1221 = vmul.f32 %v1160, %v1107
      %v1222 = vmul.f32 %v1140, %v1108
      %v1223 = vmul.f32 %v1163, %v1109
      %v1224 = vadd.f32 %v1220, %v1192
      %v1225 = vadd.f32 %v1221, %v1215
      %v1226 = vadd.f32 %v1222, %v1195
      %v1227 = vadd.f32 %v1223, %v1218
      %v1228 = vadd.f32 %v1224, %v691
      %v1229 = vadd.f32 %v1225, %v692
      %v1230 = vadd.f32 %v1226, %v693
      %v1231 = vadd.f32 %v1227, %v694
      %s1232 = scalar_lea.vmem %s2, 32
      %v1233 = vld [vmem:[%s1232] sm:$0xff]
      %v1234 = vld [vmem:[%s1232 + $0x8] sm:$0xff]
      %1235 = vrot.lane.b32.xlu0 %v1228, 17
      %v1236 = vpop.permute.xlu0 %1235
      %1237 = vrot.lane.b32.xlu0 %v1230, 17
      %v1238 = vpop.permute.xlu0 %1237
      %1239 = vrot.lane.b32.xlu0 %v1229, 17
      %v1240 = vpop.permute.xlu0 %1239
      %1241 = vrot.lane.b32.xlu0 %v1231, 17
      %v1242 = vpop.permute.xlu0 %1241
      %v1243 = vsel %vm274, %v1236, %v1240
      %v1244 = vsel %vm274, %v1238, %v1242
      %v1245 = vsel %vm274, %v1240, %v1236
      %v1246 = vsel %vm274, %v1242, %v1238
      %v1247 = vld [vmem:[%s3] ss:$8 sm:$0x3]
      %v1249 = vperm.slane %v1247, 0
      %v1250 = vperm.slane %v1247, 1
      %v1253 = vmul.f32 %v1245, %v1249
      %v1254 = vmul.f32 %v1243, %v1250
      %v1255 = vmul.f32 %v1246, %v1249
      %v1256 = vmul.f32 %v1244, %v1250
      %v1257 = vpack.c.bf16 %v1254, %v1253
      %v1258 = vpack.c.bf16 %v1256, %v1255
      %1259 = vst [vmem:[#allocation2] sm:$0xff] %v1257
      %1260 = vst [vmem:[#allocation2 + $0x8] sm:$0xff] %v1258
      %1261 = vrot.lane.b32.xlu0 %v1228, 16
      %v1262 = vpop.permute.xlu0 %1261
      %1263 = vrot.lane.b32.xlu0 %v1230, 16
      %v1264 = vpop.permute.xlu0 %1263
      %1265 = vrot.lane.b32.xlu0 %v1229, 16
      %v1266 = vpop.permute.xlu0 %1265
      %1267 = vrot.lane.b32.xlu0 %v1231, 16
      %v1268 = vpop.permute.xlu0 %1267
      %v1269 = vsel %vm301, %v1262, %v1266
      %v1270 = vsel %vm301, %v1264, %v1268
      %v1271 = vsel %vm301, %v1266, %v1262
      %v1272 = vsel %vm301, %v1268, %v1264
      %v1273 = vld [vmem:[%s306] ss:$8 sm:$0x3]
      %v1275 = vperm.slane %v1273, 0
      %v1276 = vperm.slane %v1273, 1
      %v1279 = vmul.f32 %v1271, %v1275
      %v1280 = vmul.f32 %v1269, %v1276
      %v1281 = vmul.f32 %v1272, %v1275
      %v1282 = vmul.f32 %v1270, %v1276
      %v1283 = vpack.c.bf16 %v1280, %v1279
      %v1284 = vpack.c.bf16 %v1282, %v1281
      %1285 = vst [vmem:[#allocation2 + $0x10] sm:$0xff] %v1283
      %1286 = vst [vmem:[#allocation2 + $0x18] sm:$0xff] %v1284
      %1287 = vrot.lane.b32.xlu0 %v1228, 15
      %v1288 = vpop.permute.xlu0 %1287
      %1289 = vrot.lane.b32.xlu0 %v1230, 15
      %v1290 = vpop.permute.xlu0 %1289
      %1291 = vrot.lane.b32.xlu0 %v1229, 15
      %v1292 = vpop.permute.xlu0 %1291
      %1293 = vrot.lane.b32.xlu0 %v1231, 15
      %v1294 = vpop.permute.xlu0 %1293
      %v1295 = vsel %vm329, %v1288, %v1292
      %v1296 = vsel %vm329, %v1290, %v1294
      %v1297 = vsel %vm329, %v1292, %v1288
      %v1298 = vsel %vm329, %v1294, %v1290
      %v1299 = vld [vmem:[%s334] ss:$8 sm:$0x3]
      %v1301 = vperm.slane %v1299, 0
      %v1302 = vperm.slane %v1299, 1
      %v1305 = vmul.f32 %v1297, %v1301
      %v1306 = vmul.f32 %v1295, %v1302
      %v1307 = vmul.f32 %v1298, %v1301
      %v1308 = vmul.f32 %v1296, %v1302
      %v1309 = vpack.c.bf16 %v1306, %v1305
      %v1310 = vpack.c.bf16 %v1308, %v1307
      %1311 = vst [vmem:[#allocation2 + $0x20] sm:$0xff] %v1309
      %1312 = vst [vmem:[#allocation2 + $0x28] sm:$0xff] %v1310
      %1313 = vrot.lane.b32.xlu0 %v1228, 1
      %v1314 = vpop.permute.xlu0 %1313
      %1315 = vrot.lane.b32.xlu0 %v1230, 1
      %v1316 = vpop.permute.xlu0 %1315
      %1317 = vrot.lane.b32.xlu0 %v1229, 1
      %v1318 = vpop.permute.xlu0 %1317
      %1319 = vrot.lane.b32.xlu0 %v1231, 1
      %v1320 = vpop.permute.xlu0 %1319
      %v1321 = vsel %vm357, %v1314, %v1318
      %v1322 = vsel %vm357, %v1316, %v1320
      %v1323 = vsel %vm357, %v1318, %v1314
      %v1324 = vsel %vm357, %v1320, %v1316
      %v1325 = vld [vmem:[%s362] ss:$8 sm:$0x3]
      %v1327 = vperm.slane %v1325, 0
      %v1328 = vperm.slane %v1325, 1
      %v1331 = vmul.f32 %v1323, %v1327
      %v1332 = vmul.f32 %v1321, %v1328
      %v1333 = vmul.f32 %v1324, %v1327
      %v1334 = vmul.f32 %v1322, %v1328
      %v1335 = vpack.c.bf16 %v1332, %v1331
      %v1336 = vpack.c.bf16 %v1334, %v1333
      %1337 = vst [vmem:[#allocation2 + $0x30] sm:$0xff] %v1335
      %1338 = vst [vmem:[#allocation2 + $0x38] sm:$0xff] %v1336
      %v1339 = vpack.c.bf16 %v1229, %v1228
      %v1340 = vpack.c.bf16 %v1231, %v1230
      %1341 = vst [vmem:[#allocation2 + $0x40] sm:$0xff] %v1339
      %1342 = vst [vmem:[#allocation2 + $0x48] sm:$0xff] %v1340
      %1343 = vrot.lane.b32.xlu0 %v1228, 127
      %v1344 = vpop.permute.xlu0 %1343
      %1345 = vrot.lane.b32.xlu0 %v1230, 127
      %v1346 = vpop.permute.xlu0 %1345
      %1347 = vrot.lane.b32.xlu0 %v1229, 127
      %v1348 = vpop.permute.xlu0 %1347
      %1349 = vrot.lane.b32.xlu0 %v1231, 127
      %v1350 = vpop.permute.xlu0 %1349
      %v1351 = vsel %vm389, %v1344, %v1348
      %v1352 = vsel %vm389, %v1346, %v1350
      %v1353 = vsel %vm389, %v1348, %v1344
      %v1354 = vsel %vm389, %v1350, %v1346
      %v1355 = vld [vmem:[%s394] ss:$8 sm:$0x3]
      %v1357 = vperm.slane %v1355, 0
      %v1358 = vperm.slane %v1355, 1
      %v1361 = vmul.f32 %v1351, %v1357
      %v1362 = vmul.f32 %v1353, %v1358
      %v1363 = vmul.f32 %v1352, %v1357
      %v1364 = vmul.f32 %v1354, %v1358
      %v1365 = vpack.c.bf16 %v1362, %v1361
      %v1366 = vpack.c.bf16 %v1364, %v1363
      %1367 = vst [vmem:[#allocation2 + $0x50] sm:$0xff] %v1365
      %1368 = vst [vmem:[#allocation2 + $0x58] sm:$0xff] %v1366
      %1369 = vrot.lane.b32.xlu0 %v1228, 113
      %v1370 = vpop.permute.xlu0 %1369
      %1371 = vrot.lane.b32.xlu0 %v1230, 113
      %v1372 = vpop.permute.xlu0 %1371
      %1373 = vrot.lane.b32.xlu0 %v1229, 113
      %v1374 = vpop.permute.xlu0 %1373
      %1375 = vrot.lane.b32.xlu0 %v1231, 113
      %v1376 = vpop.permute.xlu0 %1375
      %v1377 = vsel %vm417, %v1370, %v1374
      %v1378 = vsel %vm417, %v1372, %v1376
      %v1379 = vsel %vm417, %v1374, %v1370
      %v1380 = vsel %vm417, %v1376, %v1372
      %v1381 = vld [vmem:[%s422] ss:$8 sm:$0x3]
      %v1383 = vperm.slane %v1381, 0
      %v1384 = vperm.slane %v1381, 1
      %v1387 = vmul.f32 %v1377, %v1383
      %v1388 = vmul.f32 %v1379, %v1384
      %v1389 = vmul.f32 %v1378, %v1383
      %v1390 = vmul.f32 %v1380, %v1384
      %v1391 = vpack.c.bf16 %v1388, %v1387
      %v1392 = vpack.c.bf16 %v1390, %v1389
      %1393 = vst [vmem:[#allocation2 + $0x60] sm:$0xff] %v1391
      %1394 = vst [vmem:[#allocation2 + $0x68] sm:$0xff] %v1392
      %1395 = vrot.lane.b32.xlu0 %v1228, 112
      %v1396 = vpop.permute.xlu0 %1395
      %1397 = vrot.lane.b32.xlu0 %v1230, 112
      %v1398 = vpop.permute.xlu0 %1397
      %1399 = vrot.lane.b32.xlu0 %v1229, 112
      %v1400 = vpop.permute.xlu0 %1399
      %1401 = vrot.lane.b32.xlu0 %v1231, 112
      %v1402 = vpop.permute.xlu0 %1401
      %v1403 = vsel %vm445, %v1396, %v1400
      %v1404 = vsel %vm445, %v1398, %v1402
      %v1405 = vsel %vm445, %v1400, %v1396
      %v1406 = vsel %vm445, %v1402, %v1398
      %v1407 = vld [vmem:[%s450] ss:$8 sm:$0x3]
      %v1409 = vperm.slane %v1407, 0
      %v1410 = vperm.slane %v1407, 1
      %v1413 = vmul.f32 %v1403, %v1409
      %v1414 = vmul.f32 %v1405, %v1410
      %v1415 = vmul.f32 %v1404, %v1409
      %v1416 = vmul.f32 %v1406, %v1410
      %v1417 = vpack.c.bf16 %v1414, %v1413
      %v1418 = vpack.c.bf16 %v1416, %v1415
      %1419 = vst [vmem:[#allocation2 + $0x70] sm:$0xff] %v1417
      %1420 = vst [vmem:[#allocation2 + $0x78] sm:$0xff] %v1418
      %1421 = vrot.lane.b32.xlu0 %v1228, 111
      %v1422 = vpop.permute.xlu0 %1421
      %1423 = vrot.lane.b32.xlu0 %v1230, 111
      %v1424 = vpop.permute.xlu0 %1423
      %1425 = vrot.lane.b32.xlu0 %v1229, 111
      %v1426 = vpop.permute.xlu0 %1425
      %1427 = vrot.lane.b32.xlu0 %v1231, 111
      %v1428 = vpop.permute.xlu0 %1427
      %v1429 = vsel %vm473, %v1422, %v1426
      %v1430 = vsel %vm473, %v1424, %v1428
      %v1431 = vsel %vm473, %v1426, %v1422
      %v1432 = vsel %vm473, %v1428, %v1424
      %v1433 = vld [vmem:[%s478] ss:$8 sm:$0x3]
      %v1435 = vperm.slane %v1433, 0
      %v1436 = vperm.slane %v1433, 1
      %v1439 = vmul.f32 %v1429, %v1435
      %v1440 = vmul.f32 %v1431, %v1436
      %v1441 = vmul.f32 %v1430, %v1435
      %v1442 = vmul.f32 %v1432, %v1436
      %v1443 = vpack.c.bf16 %v1440, %v1439
      %v1444 = vpack.c.bf16 %v1442, %v1441
      %1445 = vst [vmem:[#allocation2 + $0x80] sm:$0xff] %v1443
      %1446 = vst [vmem:[#allocation2 + $0x88] sm:$0xff] %v1444
      %v1447 = vld [vmem:[#allocation2] sm:$0xff]
      %v1448 = vld [vmem:[#allocation2 + $0x8] sm:$0xff]
      %v1449 = vld [vmem:[#allocation2 + $0x10] sm:$0xff]
      %v1450 = vld [vmem:[#allocation2 + $0x18] sm:$0xff]
      %v1451 = vld [vmem:[#allocation2 + $0x20] sm:$0xff]
      %v1452 = vld [vmem:[#allocation2 + $0x28] sm:$0xff]
      %v1453 = vld [vmem:[#allocation2 + $0x30] sm:$0xff]
      %v1454 = vld [vmem:[#allocation2 + $0x38] sm:$0xff]
      %v1455 = vld [vmem:[#allocation2 + $0x40] sm:$0xff]
      %v1456 = vld [vmem:[#allocation2 + $0x48] sm:$0xff]
      %v1457 = vld [vmem:[#allocation2 + $0x50] sm:$0xff]
      %v1458 = vld [vmem:[#allocation2 + $0x58] sm:$0xff]
      %v1459 = vld [vmem:[#allocation2 + $0x60] sm:$0xff]
      %v1460 = vld [vmem:[#allocation2 + $0x68] sm:$0xff]
      %v1461 = vld [vmem:[#allocation2 + $0x70] sm:$0xff]
      %v1462 = vld [vmem:[#allocation2 + $0x78] sm:$0xff]
      %v1463 = vld [vmem:[#allocation2 + $0x80] sm:$0xff]
      %v1464 = vld [vmem:[#allocation2 + $0x88] sm:$0xff]
      %v1465 = vld [vmem:[#allocation2 + $0x90] sm:$0xff]
      %v1468 = vunpack.c.l.b16 %v1233
      %v1469 = vunpack.c.h.b16 %v1233
      %v1470 = vunpack.c.l.b16 %v1234
      %v1471 = vunpack.c.h.b16 %v1234
      %v1472 = vpack.c.b16 %v1470, %v1468
      %v1473 = vpack.c.b16 %v1471, %v1469
      %v1494 = vunpack.c.l.b16 %v1447
      %v1495 = vunpack.c.h.b16 %v1447
      %v1496 = vunpack.c.l.b16 %v1448
      %v1497 = vunpack.c.h.b16 %v1448
      %v1498 = vunpack.c.l.b16 %v1449
      %v1499 = vunpack.c.h.b16 %v1449
      %v1500 = vunpack.c.l.b16 %v1450
      %v1501 = vunpack.c.h.b16 %v1450
      %v1502 = vunpack.c.l.b16 %v1451
      %v1503 = vunpack.c.h.b16 %v1451
      %v1504 = vunpack.c.l.b16 %v1452
      %v1505 = vunpack.c.h.b16 %v1452
      %v1506 = vunpack.c.l.b16 %v1453
      %v1507 = vunpack.c.h.b16 %v1453
      %v1508 = vunpack.c.l.b16 %v1454
      %v1509 = vunpack.c.h.b16 %v1454
      %v1510 = vunpack.c.l.b16 %v1455
      %v1511 = vunpack.c.h.b16 %v1455
      %v1512 = vunpack.c.l.b16 %v1456
      %v1513 = vunpack.c.h.b16 %v1456
      %v1514 = vunpack.c.l.b16 %v1457
      %v1515 = vunpack.c.h.b16 %v1457
      %v1516 = vunpack.c.l.b16 %v1458
      %v1517 = vunpack.c.h.b16 %v1458
      %v1518 = vunpack.c.l.b16 %v1459
      %v1519 = vunpack.c.h.b16 %v1459
      %v1520 = vunpack.c.l.b16 %v1460
      %v1521 = vunpack.c.h.b16 %v1460
      %v1522 = vunpack.c.l.b16 %v1461
      %v1523 = vunpack.c.h.b16 %v1461
      %v1524 = vunpack.c.l.b16 %v1462
      %v1525 = vunpack.c.h.b16 %v1462
      %v1526 = vunpack.c.l.b16 %v1463
      %v1527 = vunpack.c.h.b16 %v1463
      %v1528 = vunpack.c.l.b16 %v1464
      %v1529 = vunpack.c.h.b16 %v1464
      %v1530 = vunpack.c.l.b16 %v1465
      %v1531 = vunpack.c.h.b16 %v1465
      %v1532 = vpack.c.b16 %v1496, %v1494
      %v1533 = vpack.c.b16 %v1497, %v1495
      %v1534 = vpack.c.b16 %v1500, %v1498
      %v1535 = vpack.c.b16 %v1501, %v1499
      %v1536 = vpack.c.b16 %v1504, %v1502
      %v1537 = vpack.c.b16 %v1505, %v1503
      %v1538 = vpack.c.b16 %v1508, %v1506
      %v1539 = vpack.c.b16 %v1509, %v1507
      %v1540 = vpack.c.b16 %v1512, %v1510
      %v1541 = vpack.c.b16 %v1513, %v1511
      %v1542 = vpack.c.b16 %v1516, %v1514
      %v1543 = vpack.c.b16 %v1517, %v1515
      %v1544 = vpack.c.b16 %v1520, %v1518
      %v1545 = vpack.c.b16 %v1521, %v1519
      %v1546 = vpack.c.b16 %v1524, %v1522
      %v1547 = vpack.c.b16 %v1525, %v1523
      %v1548 = vpack.c.b16 %v1528, %v1526
      %v1549 = vpack.c.b16 %v1529, %v1527
      %v1550 = vpack.c.b16 %v1530, %v1530
      %v1551 = vpack.c.b16 %v1531, %v1531
      %v1571 = vsel %vm616, %v1473, 0
      %v1574 = vsel %vm620, %v1550, 0
      %v1577 = vsel %vm620, %v1551, 0
      %1579 = vmatpush.bf16.msra.mxu0 %v1546
      %1580 = vmatpush.bf16.msra.mxu0 %v1544
      %1581 = vmatpush.bf16.msra.mxu0 %v1542
      %1582 = vmatpush.bf16.msra.mxu0 %v1540
      %1583 = vmatpush.bf16.msra.mxu0 %v1538
      %1584 = vmatpush.bf16.msra.mxu0 %v1536
      %1585 = vmatpush.bf16.msra.mxu0 %v1534
      %1586 = vmatpush.bf16.msra.mxu0 %v1532
      %1587 = vmatmul.bf16.gmra.mxu0 %v1472
      %v1588 = vpop.f32.mrf.mxu0
      %v1589 = vadd.f32 0.0, %v1588
      %v1590 = vpop.f32.mrf.mxu0
      %v1591 = vadd.f32 0.0, %v1590
      %1592 = vdwg.mxu0
      %1593 = vmatpush.bf16.msra.mxu0 0
      %1594 = vmatpush.bf16.msra.mxu0 0
      %1595 = vmatpush.bf16.msra.mxu0 0
      %1596 = vmatpush.bf16.msra.mxu0 0
      %1597 = vmatpush.bf16.msra.mxu0 0
      %1598 = vmatpush.bf16.msra.mxu0 0
      %1599 = vmatpush.bf16.msra.mxu0 %v1574
      %1600 = vmatpush.bf16.msra.mxu0 %v1548
      %1601 = vmatmul.bf16.gmra.mxu0 %v1571
      %v1602 = vpop.f32.mrf.mxu0
      %v1603 = vadd.f32 %v1589, %v1602
      %v1604 = vpop.f32.mrf.mxu0
      %v1605 = vadd.f32 %v1591, %v1604
      %1606 = vdwg.mxu0
      %1607 = vmatpush.bf16.msra.mxu0 %v1547
      %1608 = vmatpush.bf16.msra.mxu0 %v1545
      %1609 = vmatpush.bf16.msra.mxu0 %v1543
      %1610 = vmatpush.bf16.msra.mxu0 %v1541
      %1611 = vmatpush.bf16.msra.mxu0 %v1539
      %1612 = vmatpush.bf16.msra.mxu0 %v1537
      %1613 = vmatpush.bf16.msra.mxu0 %v1535
      %1614 = vmatpush.bf16.msra.mxu0 %v1533
      %1615 = vmatmul.bf16.gmra.mxu0 %v1472
      %v1616 = vpop.f32.mrf.mxu0
      %v1617 = vadd.f32 0.0, %v1616
      %v1618 = vpop.f32.mrf.mxu0
      %v1619 = vadd.f32 0.0, %v1618
      %1620 = vdwg.mxu0
      %1621 = vmatpush.bf16.msra.mxu0 0
      %1622 = vmatpush.bf16.msra.mxu0 0
      %1623 = vmatpush.bf16.msra.mxu0 0
      %1624 = vmatpush.bf16.msra.mxu0 0
      %1625 = vmatpush.bf16.msra.mxu0 0
      %1626 = vmatpush.bf16.msra.mxu0 0
      %1627 = vmatpush.bf16.msra.mxu0 %v1577
      %1628 = vmatpush.bf16.msra.mxu0 %v1549
      %1629 = vmatmul.bf16.gmra.mxu0 %v1571
      %v1630 = vpop.f32.mrf.mxu0
      %v1631 = vadd.f32 %v1617, %v1630
      %v1632 = vpop.f32.mrf.mxu0
      %v1633 = vadd.f32 %v1619, %v1632
      %1634 = vdwg.mxu0
      %vm1635 = vcmp.gt.f32.partialorder %v1603, 0.0
      %vm1636 = vcmp.gt.f32.partialorder %v1631, 0.0
      %vm1637 = vcmp.gt.f32.partialorder %v1605, 0.0
      %vm1638 = vcmp.gt.f32.partialorder %v1633, 0.0
      %v1639 = vmul.f32 %v1603, 0.01
      %v1640 = vmul.f32 %v1631, 0.01
      %v1641 = vmul.f32 %v1605, 0.01
      %v1642 = vmul.f32 %v1633, 0.01
      %v1643 = vsel %vm1635, %v1603, %v1639
      %v1644 = vsel %vm1636, %v1631, %v1640
      %v1645 = vsel %vm1637, %v1605, %v1641
      %v1646 = vsel %vm1638, %v1633, %v1642
      %s1647 = scalar_lea.vmem %s2, 48
      %v1648 = vld [vmem:[%s1647] sm:$0xff]
      %v1649 = vld [vmem:[%s1647 + $0x8] sm:$0xff]
      %1650 = vrot.lane.b32.xlu0 %v1643, 17
      %v1651 = vpop.permute.xlu0 %1650
      %1652 = vrot.lane.b32.xlu0 %v1645, 17
      %v1653 = vpop.permute.xlu0 %1652
      %1654 = vrot.lane.b32.xlu0 %v1644, 17
      %v1655 = vpop.permute.xlu0 %1654
      %1656 = vrot.lane.b32.xlu0 %v1646, 17
      %v1657 = vpop.permute.xlu0 %1656
      %v1658 = vsel %vm274, %v1651, %v1655
      %v1659 = vsel %vm274, %v1653, %v1657
      %v1660 = vsel %vm274, %v1655, %v1651
      %v1661 = vsel %vm274, %v1657, %v1653
      %v1662 = vld [vmem:[%s3] ss:$8 sm:$0x3]
      %v1664 = vperm.slane %v1662, 0
      %v1665 = vperm.slane %v1662, 1
      %v1668 = vmul.f32 %v1660, %v1664
      %v1669 = vmul.f32 %v1658, %v1665
      %v1670 = vmul.f32 %v1661, %v1664
      %v1671 = vmul.f32 %v1659, %v1665
      %v1672 = vpack.c.bf16 %v1669, %v1668
      %v1673 = vpack.c.bf16 %v1671, %v1670
      %1674 = vst [vmem:[#allocation2] sm:$0xff] %v1672
      %1675 = vst [vmem:[#allocation2 + $0x8] sm:$0xff] %v1673
      %1676 = vrot.lane.b32.xlu0 %v1643, 16
      %v1677 = vpop.permute.xlu0 %1676
      %1678 = vrot.lane.b32.xlu0 %v1645, 16
      %v1679 = vpop.permute.xlu0 %1678
      %1680 = vrot.lane.b32.xlu0 %v1644, 16
      %v1681 = vpop.permute.xlu0 %1680
      %1682 = vrot.lane.b32.xlu0 %v1646, 16
      %v1683 = vpop.permute.xlu0 %1682
      %v1684 = vsel %vm301, %v1677, %v1681
      %v1685 = vsel %vm301, %v1679, %v1683
      %v1686 = vsel %vm301, %v1681, %v1677
      %v1687 = vsel %vm301, %v1683, %v1679
      %v1688 = vld [vmem:[%s306] ss:$8 sm:$0x3]
      %v1690 = vperm.slane %v1688, 0
      %v1691 = vperm.slane %v1688, 1
      %v1694 = vmul.f32 %v1686, %v1690
      %v1695 = vmul.f32 %v1684, %v1691
      %v1696 = vmul.f32 %v1687, %v1690
      %v1697 = vmul.f32 %v1685, %v1691
      %v1698 = vpack.c.bf16 %v1695, %v1694
      %v1699 = vpack.c.bf16 %v1697, %v1696
      %1700 = vst [vmem:[#allocation2 + $0x10] sm:$0xff] %v1698
      %1701 = vst [vmem:[#allocation2 + $0x18] sm:$0xff] %v1699
      %1702 = vrot.lane.b32.xlu0 %v1643, 15
      %v1703 = vpop.permute.xlu0 %1702
      %1704 = vrot.lane.b32.xlu0 %v1645, 15
      %v1705 = vpop.permute.xlu0 %1704
      %1706 = vrot.lane.b32.xlu0 %v1644, 15
      %v1707 = vpop.permute.xlu0 %1706
      %1708 = vrot.lane.b32.xlu0 %v1646, 15
      %v1709 = vpop.permute.xlu0 %1708
      %v1710 = vsel %vm329, %v1703, %v1707
      %v1711 = vsel %vm329, %v1705, %v1709
      %v1712 = vsel %vm329, %v1707, %v1703
      %v1713 = vsel %vm329, %v1709, %v1705
      %v1714 = vld [vmem:[%s334] ss:$8 sm:$0x3]
      %v1716 = vperm.slane %v1714, 0
      %v1717 = vperm.slane %v1714, 1
      %v1720 = vmul.f32 %v1712, %v1716
      %v1721 = vmul.f32 %v1710, %v1717
      %v1722 = vmul.f32 %v1713, %v1716
      %v1723 = vmul.f32 %v1711, %v1717
      %v1724 = vpack.c.bf16 %v1721, %v1720
      %v1725 = vpack.c.bf16 %v1723, %v1722
      %1726 = vst [vmem:[#allocation2 + $0x20] sm:$0xff] %v1724
      %1727 = vst [vmem:[#allocation2 + $0x28] sm:$0xff] %v1725
      %1728 = vrot.lane.b32.xlu0 %v1643, 1
      %v1729 = vpop.permute.xlu0 %1728
      %1730 = vrot.lane.b32.xlu0 %v1645, 1
      %v1731 = vpop.permute.xlu0 %1730
      %1732 = vrot.lane.b32.xlu0 %v1644, 1
      %v1733 = vpop.permute.xlu0 %1732
      %1734 = vrot.lane.b32.xlu0 %v1646, 1
      %v1735 = vpop.permute.xlu0 %1734
      %v1736 = vsel %vm357, %v1729, %v1733
      %v1737 = vsel %vm357, %v1731, %v1735
      %v1738 = vsel %vm357, %v1733, %v1729
      %v1739 = vsel %vm357, %v1735, %v1731
      %v1740 = vld [vmem:[%s362] ss:$8 sm:$0x3]
      %v1742 = vperm.slane %v1740, 0
      %v1743 = vperm.slane %v1740, 1
      %v1746 = vmul.f32 %v1738, %v1742
      %v1747 = vmul.f32 %v1736, %v1743
      %v1748 = vmul.f32 %v1739, %v1742
      %v1749 = vmul.f32 %v1737, %v1743
      %v1750 = vpack.c.bf16 %v1747, %v1746
      %v1751 = vpack.c.bf16 %v1749, %v1748
      %1752 = vst [vmem:[#allocation2 + $0x30] sm:$0xff] %v1750
      %1753 = vst [vmem:[#allocation2 + $0x38] sm:$0xff] %v1751
      %v1754 = vpack.c.bf16 %v1644, %v1643
      %v1755 = vpack.c.bf16 %v1646, %v1645
      %1756 = vst [vmem:[#allocation2 + $0x40] sm:$0xff] %v1754
      %1757 = vst [vmem:[#allocation2 + $0x48] sm:$0xff] %v1755
      %1758 = vrot.lane.b32.xlu0 %v1643, 127
      %v1759 = vpop.permute.xlu0 %1758
      %1760 = vrot.lane.b32.xlu0 %v1645, 127
      %v1761 = vpop.permute.xlu0 %1760
      %1762 = vrot.lane.b32.xlu0 %v1644, 127
      %v1763 = vpop.permute.xlu0 %1762
      %1764 = vrot.lane.b32.xlu0 %v1646, 127
      %v1765 = vpop.permute.xlu0 %1764
      %v1766 = vsel %vm389, %v1759, %v1763
      %v1767 = vsel %vm389, %v1761, %v1765
      %v1768 = vsel %vm389, %v1763, %v1759
      %v1769 = vsel %vm389, %v1765, %v1761
      %v1770 = vld [vmem:[%s394] ss:$8 sm:$0x3]
      %v1772 = vperm.slane %v1770, 0
      %v1773 = vperm.slane %v1770, 1
      %v1776 = vmul.f32 %v1766, %v1772
      %v1777 = vmul.f32 %v1768, %v1773
      %v1778 = vmul.f32 %v1767, %v1772
      %v1779 = vmul.f32 %v1769, %v1773
      %v1780 = vpack.c.bf16 %v1777, %v1776
      %v1781 = vpack.c.bf16 %v1779, %v1778
      %1782 = vst [vmem:[#allocation2 + $0x50] sm:$0xff] %v1780
      %1783 = vst [vmem:[#allocation2 + $0x58] sm:$0xff] %v1781
      %1784 = vrot.lane.b32.xlu0 %v1643, 113
      %v1785 = vpop.permute.xlu0 %1784
      %1786 = vrot.lane.b32.xlu0 %v1645, 113
      %v1787 = vpop.permute.xlu0 %1786
      %1788 = vrot.lane.b32.xlu0 %v1644, 113
      %v1789 = vpop.permute.xlu0 %1788
      %1790 = vrot.lane.b32.xlu0 %v1646, 113
      %v1791 = vpop.permute.xlu0 %1790
      %v1792 = vsel %vm417, %v1785, %v1789
      %v1793 = vsel %vm417, %v1787, %v1791
      %v1794 = vsel %vm417, %v1789, %v1785
      %v1795 = vsel %vm417, %v1791, %v1787
      %v1796 = vld [vmem:[%s422] ss:$8 sm:$0x3]
      %v1798 = vperm.slane %v1796, 0
      %v1799 = vperm.slane %v1796, 1
      %v1802 = vmul.f32 %v1792, %v1798
      %v1803 = vmul.f32 %v1794, %v1799
      %v1804 = vmul.f32 %v1793, %v1798
      %v1805 = vmul.f32 %v1795, %v1799
      %v1806 = vpack.c.bf16 %v1803, %v1802
      %v1807 = vpack.c.bf16 %v1805, %v1804
      %1808 = vst [vmem:[#allocation2 + $0x60] sm:$0xff] %v1806
      %1809 = vst [vmem:[#allocation2 + $0x68] sm:$0xff] %v1807
      %1810 = vrot.lane.b32.xlu0 %v1643, 112
      %v1811 = vpop.permute.xlu0 %1810
      %1812 = vrot.lane.b32.xlu0 %v1645, 112
      %v1813 = vpop.permute.xlu0 %1812
      %1814 = vrot.lane.b32.xlu0 %v1644, 112
      %v1815 = vpop.permute.xlu0 %1814
      %1816 = vrot.lane.b32.xlu0 %v1646, 112
      %v1817 = vpop.permute.xlu0 %1816
      %v1818 = vsel %vm445, %v1811, %v1815
      %v1819 = vsel %vm445, %v1813, %v1817
      %v1820 = vsel %vm445, %v1815, %v1811
      %v1821 = vsel %vm445, %v1817, %v1813
      %v1822 = vld [vmem:[%s450] ss:$8 sm:$0x3]
      %v1824 = vperm.slane %v1822, 0
      %v1825 = vperm.slane %v1822, 1
      %v1828 = vmul.f32 %v1818, %v1824
      %v1829 = vmul.f32 %v1820, %v1825
      %v1830 = vmul.f32 %v1819, %v1824
      %v1831 = vmul.f32 %v1821, %v1825
      %v1832 = vpack.c.bf16 %v1829, %v1828
      %v1833 = vpack.c.bf16 %v1831, %v1830
      %1834 = vst [vmem:[#allocation2 + $0x70] sm:$0xff] %v1832
      %1835 = vst [vmem:[#allocation2 + $0x78] sm:$0xff] %v1833
      %1836 = vrot.lane.b32.xlu0 %v1643, 111
      %v1837 = vpop.permute.xlu0 %1836
      %1838 = vrot.lane.b32.xlu0 %v1645, 111
      %v1839 = vpop.permute.xlu0 %1838
      %1840 = vrot.lane.b32.xlu0 %v1644, 111
      %v1841 = vpop.permute.xlu0 %1840
      %1842 = vrot.lane.b32.xlu0 %v1646, 111
      %v1843 = vpop.permute.xlu0 %1842
      %v1844 = vsel %vm473, %v1837, %v1841
      %v1845 = vsel %vm473, %v1839, %v1843
      %v1846 = vsel %vm473, %v1841, %v1837
      %v1847 = vsel %vm473, %v1843, %v1839
      %v1848 = vld [vmem:[%s478] ss:$8 sm:$0x3]
      %v1850 = vperm.slane %v1848, 0
      %v1851 = vperm.slane %v1848, 1
      %v1854 = vmul.f32 %v1844, %v1850
      %v1855 = vmul.f32 %v1846, %v1851
      %v1856 = vmul.f32 %v1845, %v1850
      %v1857 = vmul.f32 %v1847, %v1851
      %v1858 = vpack.c.bf16 %v1855, %v1854
      %v1859 = vpack.c.bf16 %v1857, %v1856
      %1860 = vst [vmem:[#allocation2 + $0x80] sm:$0xff] %v1858
      %1861 = vst [vmem:[#allocation2 + $0x88] sm:$0xff] %v1859
      %v1862 = vld [vmem:[#allocation2] sm:$0xff]
      %v1863 = vld [vmem:[#allocation2 + $0x8] sm:$0xff]
      %v1864 = vld [vmem:[#allocation2 + $0x10] sm:$0xff]
      %v1865 = vld [vmem:[#allocation2 + $0x18] sm:$0xff]
      %v1866 = vld [vmem:[#allocation2 + $0x20] sm:$0xff]
      %v1867 = vld [vmem:[#allocation2 + $0x28] sm:$0xff]
      %v1868 = vld [vmem:[#allocation2 + $0x30] sm:$0xff]
      %v1869 = vld [vmem:[#allocation2 + $0x38] sm:$0xff]
      %v1870 = vld [vmem:[#allocation2 + $0x40] sm:$0xff]
      %v1871 = vld [vmem:[#allocation2 + $0x48] sm:$0xff]
      %v1872 = vld [vmem:[#allocation2 + $0x50] sm:$0xff]
      %v1873 = vld [vmem:[#allocation2 + $0x58] sm:$0xff]
      %v1874 = vld [vmem:[#allocation2 + $0x60] sm:$0xff]
      %v1875 = vld [vmem:[#allocation2 + $0x68] sm:$0xff]
      %v1876 = vld [vmem:[#allocation2 + $0x70] sm:$0xff]
      %v1877 = vld [vmem:[#allocation2 + $0x78] sm:$0xff]
      %v1878 = vld [vmem:[#allocation2 + $0x80] sm:$0xff]
      %v1879 = vld [vmem:[#allocation2 + $0x88] sm:$0xff]
      %v1880 = vld [vmem:[#allocation2 + $0x90] sm:$0xff]
      %v1883 = vunpack.c.l.b16 %v1648
      %v1884 = vunpack.c.h.b16 %v1648
      %v1885 = vunpack.c.l.b16 %v1649
      %v1886 = vunpack.c.h.b16 %v1649
      %v1887 = vpack.c.b16 %v1885, %v1883
      %v1888 = vpack.c.b16 %v1886, %v1884
      %v1909 = vunpack.c.l.b16 %v1862
      %v1910 = vunpack.c.h.b16 %v1862
      %v1911 = vunpack.c.l.b16 %v1863
      %v1912 = vunpack.c.h.b16 %v1863
      %v1913 = vunpack.c.l.b16 %v1864
      %v1914 = vunpack.c.h.b16 %v1864
      %v1915 = vunpack.c.l.b16 %v1865
      %v1916 = vunpack.c.h.b16 %v1865
      %v1917 = vunpack.c.l.b16 %v1866
      %v1918 = vunpack.c.h.b16 %v1866
      %v1919 = vunpack.c.l.b16 %v1867
      %v1920 = vunpack.c.h.b16 %v1867
      %v1921 = vunpack.c.l.b16 %v1868
      %v1922 = vunpack.c.h.b16 %v1868
      %v1923 = vunpack.c.l.b16 %v1869
      %v1924 = vunpack.c.h.b16 %v1869
      %v1925 = vunpack.c.l.b16 %v1870
      %v1926 = vunpack.c.h.b16 %v1870
      %v1927 = vunpack.c.l.b16 %v1871
      %v1928 = vunpack.c.h.b16 %v1871
      %v1929 = vunpack.c.l.b16 %v1872
      %v1930 = vunpack.c.h.b16 %v1872
      %v1931 = vunpack.c.l.b16 %v1873
      %v1932 = vunpack.c.h.b16 %v1873
      %v1933 = vunpack.c.l.b16 %v1874
      %v1934 = vunpack.c.h.b16 %v1874
      %v1935 = vunpack.c.l.b16 %v1875
      %v1936 = vunpack.c.h.b16 %v1875
      %v1937 = vunpack.c.l.b16 %v1876
      %v1938 = vunpack.c.h.b16 %v1876
      %v1939 = vunpack.c.l.b16 %v1877
      %v1940 = vunpack.c.h.b16 %v1877
      %v1941 = vunpack.c.l.b16 %v1878
      %v1942 = vunpack.c.h.b16 %v1878
      %v1943 = vunpack.c.l.b16 %v1879
      %v1944 = vunpack.c.h.b16 %v1879
      %v1945 = vunpack.c.l.b16 %v1880
      %v1946 = vunpack.c.h.b16 %v1880
      %v1947 = vpack.c.b16 %v1911, %v1909
      %v1948 = vpack.c.b16 %v1912, %v1910
      %v1949 = vpack.c.b16 %v1915, %v1913
      %v1950 = vpack.c.b16 %v1916, %v1914
      %v1951 = vpack.c.b16 %v1919, %v1917
      %v1952 = vpack.c.b16 %v1920, %v1918
      %v1953 = vpack.c.b16 %v1923, %v1921
      %v1954 = vpack.c.b16 %v1924, %v1922
      %v1955 = vpack.c.b16 %v1927, %v1925
      %v1956 = vpack.c.b16 %v1928, %v1926
      %v1957 = vpack.c.b16 %v1931, %v1929
      %v1958 = vpack.c.b16 %v1932, %v1930
      %v1959 = vpack.c.b16 %v1935, %v1933
      %v1960 = vpack.c.b16 %v1936, %v1934
      %v1961 = vpack.c.b16 %v1939, %v1937
      %v1962 = vpack.c.b16 %v1940, %v1938
      %v1963 = vpack.c.b16 %v1943, %v1941
      %v1964 = vpack.c.b16 %v1944, %v1942
      %v1965 = vpack.c.b16 %v1945, %v1945
      %v1966 = vpack.c.b16 %v1946, %v1946
      %v1986 = vsel %vm616, %v1888, 0
      %v1989 = vsel %vm620, %v1965, 0
      %v1992 = vsel %vm620, %v1966, 0
      %1994 = vmatpush.bf16.msra.mxu0 %v1961
      %1995 = vmatpush.bf16.msra.mxu0 %v1959
      %1996 = vmatpush.bf16.msra.mxu0 %v1957
      %1997 = vmatpush.bf16.msra.mxu0 %v1955
      %1998 = vmatpush.bf16.msra.mxu0 %v1953
      %1999 = vmatpush.bf16.msra.mxu0 %v1951
      %2000 = vmatpush.bf16.msra.mxu0 %v1949
      %2001 = vmatpush.bf16.msra.mxu0 %v1947
      %2002 = vmatmul.bf16.gmra.mxu0 %v1887
      %v2003 = vpop.f32.mrf.mxu0
      %v2004 = vadd.f32 0.0, %v2003
      %v2005 = vpop.f32.mrf.mxu0
      %v2006 = vadd.f32 0.0, %v2005
      %2007 = vdwg.mxu0
      %2008 = vmatpush.bf16.msra.mxu0 0
      %2009 = vmatpush.bf16.msra.mxu0 0
      %2010 = vmatpush.bf16.msra.mxu0 0
      %2011 = vmatpush.bf16.msra.mxu0 0
      %2012 = vmatpush.bf16.msra.mxu0 0
      %2013 = vmatpush.bf16.msra.mxu0 0
      %2014 = vmatpush.bf16.msra.mxu0 %v1989
      %2015 = vmatpush.bf16.msra.mxu0 %v1963
      %2016 = vmatmul.bf16.gmra.mxu0 %v1986
      %v2017 = vpop.f32.mrf.mxu0
      %v2018 = vadd.f32 %v2004, %v2017
      %v2019 = vpop.f32.mrf.mxu0
      %v2020 = vadd.f32 %v2006, %v2019
      %2021 = vdwg.mxu0
      %2022 = vmatpush.bf16.msra.mxu0 %v1962
      %2023 = vmatpush.bf16.msra.mxu0 %v1960
      %2024 = vmatpush.bf16.msra.mxu0 %v1958
      %2025 = vmatpush.bf16.msra.mxu0 %v1956
      %2026 = vmatpush.bf16.msra.mxu0 %v1954
      %2027 = vmatpush.bf16.msra.mxu0 %v1952
      %2028 = vmatpush.bf16.msra.mxu0 %v1950
      %2029 = vmatpush.bf16.msra.mxu0 %v1948
      %2030 = vmatmul.bf16.gmra.mxu0 %v1887
      %v2031 = vpop.f32.mrf.mxu0
      %v2032 = vadd.f32 0.0, %v2031
      %v2033 = vpop.f32.mrf.mxu0
      %v2034 = vadd.f32 0.0, %v2033
      %2035 = vdwg.mxu0
      %2036 = vmatpush.bf16.msra.mxu0 0
      %2037 = vmatpush.bf16.msra.mxu0 0
      %2038 = vmatpush.bf16.msra.mxu0 0
      %2039 = vmatpush.bf16.msra.mxu0 0
      %2040 = vmatpush.bf16.msra.mxu0 0
      %2041 = vmatpush.bf16.msra.mxu0 0
      %2042 = vmatpush.bf16.msra.mxu0 %v1992
      %2043 = vmatpush.bf16.msra.mxu0 %v1964
      %2044 = vmatmul.bf16.gmra.mxu0 %v1986
      %v2045 = vpop.f32.mrf.mxu0
      %v2046 = vadd.f32 %v2032, %v2045
      %v2047 = vpop.f32.mrf.mxu0
      %v2048 = vadd.f32 %v2034, %v2047
      %2049 = vdwg.mxu0
      %vm2050 = vcmp.gt.f32.partialorder %v2018, 0.0
      %vm2051 = vcmp.gt.f32.partialorder %v2046, 0.0
      %vm2052 = vcmp.gt.f32.partialorder %v2020, 0.0
      %vm2053 = vcmp.gt.f32.partialorder %v2048, 0.0
      %v2054 = vmul.f32 %v2018, 0.01
      %v2055 = vmul.f32 %v2046, 0.01
      %v2056 = vmul.f32 %v2020, 0.01
      %v2057 = vmul.f32 %v2048, 0.01
      %v2058 = vsel %vm2050, %v2018, %v2054
      %v2059 = vsel %vm2051, %v2046, %v2055
      %v2060 = vsel %vm2052, %v2020, %v2056
      %v2061 = vsel %vm2053, %v2048, %v2057
      %s2062 = scalar_lea.vmem %s242, 32
      %v2063 = vld [vmem:[%s2062] sm:$0xff]
      %v2064 = vld [vmem:[%s2062 + $0x8] sm:$0xff]
      %v2066 = vsel %vm1112, %v2063, 0
      %v2069 = vsel %vm1112, %v2064, 0
      %2071 = vmatpush.msra.mxu0 0.0
      %2072 = vmatpush.msra.mxu0 0.0
      %2073 = vmatpush.msra.mxu0 0.0
      %2074 = vmatpush.msra.mxu0 0.0
      %2075 = vmatpush.msra.mxu0 0.0
      %2076 = vmatpush.msra.mxu0 0.0
      %2077 = vmatpush.msra.mxu0 0.0
      %2078 = vmatpush.msra.mxu0 0.0
      %2079 = vmatpush.msra.mxu0 0.0
      %2080 = vmatpush.msra.mxu0 0.0
      %2081 = vmatpush.msra.mxu0 0.0
      %2082 = vmatpush.msra.mxu0 0.0
      %2083 = vmatpush.msra.mxu0 0.0
      %2084 = vmatpush.msra.mxu0 0.0
      %2085 = vmatpush.msra.mxu0 0.0
      %2086 = vmatpush.msra.mxu0 %v256
      %2087 = vmatmul.f32.gmra.mxu0 %v2066
      %v2088 = vpop.f32.mrf.mxu0
      %v2089 = vadd.f32 0.0, %v2088
      %2090 = vmatmul.f32.gmra.mxu0 %v2069
      %v2091 = vpop.f32.mrf.mxu0
      %v2092 = vadd.f32 0.0, %v2091
      %2093 = vdwg.mxu0
      %2094 = vmatpush.msra.mxu0 0.0
      %2095 = vmatpush.msra.mxu0 0.0
      %2096 = vmatpush.msra.mxu0 0.0
      %2097 = vmatpush.msra.mxu0 0.0
      %2098 = vmatpush.msra.mxu0 0.0
      %2099 = vmatpush.msra.mxu0 0.0
      %2100 = vmatpush.msra.mxu0 0.0
      %2101 = vmatpush.msra.mxu0 0.0
      %2102 = vmatpush.msra.mxu0 0.0
      %2103 = vmatpush.msra.mxu0 0.0
      %2104 = vmatpush.msra.mxu0 0.0
      %2105 = vmatpush.msra.mxu0 0.0
      %2106 = vmatpush.msra.mxu0 0.0
      %2107 = vmatpush.msra.mxu0 0.0
      %2108 = vmatpush.msra.mxu0 0.0
      %2109 = vmatpush.msra.mxu0 %v257
      %2110 = vmatmul.f32.gmra.mxu0 %v2066
      %v2111 = vpop.f32.mrf.mxu0
      %v2112 = vadd.f32 0.0, %v2111
      %2113 = vmatmul.f32.gmra.mxu0 %v2069
      %v2114 = vpop.f32.mrf.mxu0
      %v2115 = vadd.f32 0.0, %v2114
      %2116 = vdwg.mxu0
      %s2117 = scalar_lea.vmem %s242, 48
      %v2118 = vld [vmem:[%s2117] sm:$0xff]
      %v2119 = vld [vmem:[%s2117 + $0x8] sm:$0xff]
      %v2121 = vsel %vm1112, %v2118, 0
      %v2124 = vsel %vm1112, %v2119, 0
      %2126 = vmatpush.msra.mxu0 0.0
      %2127 = vmatpush.msra.mxu0 0.0
      %2128 = vmatpush.msra.mxu0 0.0
      %2129 = vmatpush.msra.mxu0 0.0
      %2130 = vmatpush.msra.mxu0 0.0
      %2131 = vmatpush.msra.mxu0 0.0
      %2132 = vmatpush.msra.mxu0 0.0
      %2133 = vmatpush.msra.mxu0 0.0
      %2134 = vmatpush.msra.mxu0 0.0
      %2135 = vmatpush.msra.mxu0 0.0
      %2136 = vmatpush.msra.mxu0 0.0
      %2137 = vmatpush.msra.mxu0 0.0
      %2138 = vmatpush.msra.mxu0 0.0
      %2139 = vmatpush.msra.mxu0 0.0
      %2140 = vmatpush.msra.mxu0 0.0
      %2141 = vmatpush.msra.mxu0 %v256
      %2142 = vmatmul.f32.gmra.mxu0 %v2121
      %v2143 = vpop.f32.mrf.mxu0
      %v2144 = vadd.f32 0.0, %v2143
      %2145 = vmatmul.f32.gmra.mxu0 %v2124
      %v2146 = vpop.f32.mrf.mxu0
      %v2147 = vadd.f32 0.0, %v2146
      %2148 = vdwg.mxu0
      %2149 = vmatpush.msra.mxu0 0.0
      %2150 = vmatpush.msra.mxu0 0.0
      %2151 = vmatpush.msra.mxu0 0.0
      %2152 = vmatpush.msra.mxu0 0.0
      %2153 = vmatpush.msra.mxu0 0.0
      %2154 = vmatpush.msra.mxu0 0.0
      %2155 = vmatpush.msra.mxu0 0.0
      %2156 = vmatpush.msra.mxu0 0.0
      %2157 = vmatpush.msra.mxu0 0.0
      %2158 = vmatpush.msra.mxu0 0.0
      %2159 = vmatpush.msra.mxu0 0.0
      %2160 = vmatpush.msra.mxu0 0.0
      %2161 = vmatpush.msra.mxu0 0.0
      %2162 = vmatpush.msra.mxu0 0.0
      %2163 = vmatpush.msra.mxu0 0.0
      %2164 = vmatpush.msra.mxu0 %v257
      %2165 = vmatmul.f32.gmra.mxu0 %v2121
      %v2166 = vpop.f32.mrf.mxu0
      %v2167 = vadd.f32 0.0, %v2166
      %2168 = vmatmul.f32.gmra.mxu0 %v2124
      %v2169 = vpop.f32.mrf.mxu0
      %v2170 = vadd.f32 0.0, %v2169
      %2171 = vdwg.mxu0
      %v2172 = vmul.f32 %v2089, %v2058
      %v2173 = vmul.f32 %v2112, %v2059
      %v2174 = vmul.f32 %v2092, %v2060
      %v2175 = vmul.f32 %v2115, %v2061
      %v2176 = vadd.f32 %v2172, %v2144
      %v2177 = vadd.f32 %v2173, %v2167
      %v2178 = vadd.f32 %v2174, %v2147
      %v2179 = vadd.f32 %v2175, %v2170
      %v2180 = vadd.f32 %v2176, %v1643
      %v2181 = vadd.f32 %v2177, %v1644
      %v2182 = vadd.f32 %v2178, %v1645
      %v2183 = vadd.f32 %v2179, %v1646
      %s2184 = scalar_lea.vmem %s2, 64
      %v2185 = vld [vmem:[%s2184] sm:$0xff]
      %v2186 = vld [vmem:[%s2184 + $0x8] sm:$0xff]
      %2187 = vrot.lane.b32.xlu0 %v2180, 17
      %v2188 = vpop.permute.xlu0 %2187
      %2189 = vrot.lane.b32.xlu0 %v2182, 17
      %v2190 = vpop.permute.xlu0 %2189
      %2191 = vrot.lane.b32.xlu0 %v2181, 17
      %v2192 = vpop.permute.xlu0 %2191
      %2193 = vrot.lane.b32.xlu0 %v2183, 17
      %v2194 = vpop.permute.xlu0 %2193
      %v2195 = vsel %vm274, %v2188, %v2192
      %v2196 = vsel %vm274, %v2190, %v2194
      %v2197 = vsel %vm274, %v2192, %v2188
      %v2198 = vsel %vm274, %v2194, %v2190
      %v2199 = vld [vmem:[%s3] ss:$8 sm:$0x3]
      %v2201 = vperm.slane %v2199, 0
      %v2202 = vperm.slane %v2199, 1
      %v2205 = vmul.f32 %v2197, %v2201
      %v2206 = vmul.f32 %v2195, %v2202
      %v2207 = vmul.f32 %v2198, %v2201
      %v2208 = vmul.f32 %v2196, %v2202
      %v2209 = vpack.c.bf16 %v2206, %v2205
      %v2210 = vpack.c.bf16 %v2208, %v2207
      %2211 = vst [vmem:[#allocation2] sm:$0xff] %v2209
      %2212 = vst [vmem:[#allocation2 + $0x8] sm:$0xff] %v2210
      %2213 = vrot.lane.b32.xlu0 %v2180, 16
      %v2214 = vpop.permute.xlu0 %2213
      %2215 = vrot.lane.b32.xlu0 %v2182, 16
      %v2216 = vpop.permute.xlu0 %2215
      %2217 = vrot.lane.b32.xlu0 %v2181, 16
      %v2218 = vpop.permute.xlu0 %2217
      %2219 = vrot.lane.b32.xlu0 %v2183, 16
      %v2220 = vpop.permute.xlu0 %2219
      %v2221 = vsel %vm301, %v2214, %v2218
      %v2222 = vsel %vm301, %v2216, %v2220
      %v2223 = vsel %vm301, %v2218, %v2214
      %v2224 = vsel %vm301, %v2220, %v2216
      %v2225 = vld [vmem:[%s306] ss:$8 sm:$0x3]
      %v2227 = vperm.slane %v2225, 0
      %v2228 = vperm.slane %v2225, 1
      %v2231 = vmul.f32 %v2223, %v2227
      %v2232 = vmul.f32 %v2221, %v2228
      %v2233 = vmul.f32 %v2224, %v2227
      %v2234 = vmul.f32 %v2222, %v2228
      %v2235 = vpack.c.bf16 %v2232, %v2231
      %v2236 = vpack.c.bf16 %v2234, %v2233
      %2237 = vst [vmem:[#allocation2 + $0x10] sm:$0xff] %v2235
      %2238 = vst [vmem:[#allocation2 + $0x18] sm:$0xff] %v2236
      %2239 = vrot.lane.b32.xlu0 %v2180, 15
      %v2240 = vpop.permute.xlu0 %2239
      %2241 = vrot.lane.b32.xlu0 %v2182, 15
      %v2242 = vpop.permute.xlu0 %2241
      %2243 = vrot.lane.b32.xlu0 %v2181, 15
      %v2244 = vpop.permute.xlu0 %2243
      %2245 = vrot.lane.b32.xlu0 %v2183, 15
      %v2246 = vpop.permute.xlu0 %2245
      %v2247 = vsel %vm329, %v2240, %v2244
      %v2248 = vsel %vm329, %v2242, %v2246
      %v2249 = vsel %vm329, %v2244, %v2240
      %v2250 = vsel %vm329, %v2246, %v2242
      %v2251 = vld [vmem:[%s334] ss:$8 sm:$0x3]
      %v2253 = vperm.slane %v2251, 0
      %v2254 = vperm.slane %v2251, 1
      %v2257 = vmul.f32 %v2249, %v2253
      %v2258 = vmul.f32 %v2247, %v2254
      %v2259 = vmul.f32 %v2250, %v2253
      %v2260 = vmul.f32 %v2248, %v2254
      %v2261 = vpack.c.bf16 %v2258, %v2257
      %v2262 = vpack.c.bf16 %v2260, %v2259
      %2263 = vst [vmem:[#allocation2 + $0x20] sm:$0xff] %v2261
      %2264 = vst [vmem:[#allocation2 + $0x28] sm:$0xff] %v2262
      %2265 = vrot.lane.b32.xlu0 %v2180, 1
      %v2266 = vpop.permute.xlu0 %2265
      %2267 = vrot.lane.b32.xlu0 %v2182, 1
      %v2268 = vpop.permute.xlu0 %2267
      %2269 = vrot.lane.b32.xlu0 %v2181, 1
      %v2270 = vpop.permute.xlu0 %2269
      %2271 = vrot.lane.b32.xlu0 %v2183, 1
      %v2272 = vpop.permute.xlu0 %2271
      %v2273 = vsel %vm357, %v2266, %v2270
      %v2274 = vsel %vm357, %v2268, %v2272
      %v2275 = vsel %vm357, %v2270, %v2266
      %v2276 = vsel %vm357, %v2272, %v2268
      %v2277 = vld [vmem:[%s362] ss:$8 sm:$0x3]
      %v2279 = vperm.slane %v2277, 0
      %v2280 = vperm.slane %v2277, 1
      %v2283 = vmul.f32 %v2275, %v2279
      %v2284 = vmul.f32 %v2273, %v2280
      %v2285 = vmul.f32 %v2276, %v2279
      %v2286 = vmul.f32 %v2274, %v2280
      %v2287 = vpack.c.bf16 %v2284, %v2283
      %v2288 = vpack.c.bf16 %v2286, %v2285
      %2289 = vst [vmem:[#allocation2 + $0x30] sm:$0xff] %v2287
      %2290 = vst [vmem:[#allocation2 + $0x38] sm:$0xff] %v2288
      %v2291 = vpack.c.bf16 %v2181, %v2180
      %v2292 = vpack.c.bf16 %v2183, %v2182
      %2293 = vst [vmem:[#allocation2 + $0x40] sm:$0xff] %v2291
      %2294 = vst [vmem:[#allocation2 + $0x48] sm:$0xff] %v2292
      %2295 = vrot.lane.b32.xlu0 %v2180, 127
      %v2296 = vpop.permute.xlu0 %2295
      %2297 = vrot.lane.b32.xlu0 %v2182, 127
      %v2298 = vpop.permute.xlu0 %2297
      %2299 = vrot.lane.b32.xlu0 %v2181, 127
      %v2300 = vpop.permute.xlu0 %2299
      %2301 = vrot.lane.b32.xlu0 %v2183, 127
      %v2302 = vpop.permute.xlu0 %2301
      %v2303 = vsel %vm389, %v2296, %v2300
      %v2304 = vsel %vm389, %v2298, %v2302
      %v2305 = vsel %vm389, %v2300, %v2296
      %v2306 = vsel %vm389, %v2302, %v2298
      %v2307 = vld [vmem:[%s394] ss:$8 sm:$0x3]
      %v2309 = vperm.slane %v2307, 0
      %v2310 = vperm.slane %v2307, 1
      %v2313 = vmul.f32 %v2303, %v2309
      %v2314 = vmul.f32 %v2305, %v2310
      %v2315 = vmul.f32 %v2304, %v2309
      %v2316 = vmul.f32 %v2306, %v2310
      %v2317 = vpack.c.bf16 %v2314, %v2313
      %v2318 = vpack.c.bf16 %v2316, %v2315
      %2319 = vst [vmem:[#allocation2 + $0x50] sm:$0xff] %v2317
      %2320 = vst [vmem:[#allocation2 + $0x58] sm:$0xff] %v2318
      %2321 = vrot.lane.b32.xlu0 %v2180, 113
      %v2322 = vpop.permute.xlu0 %2321
      %2323 = vrot.lane.b32.xlu0 %v2182, 113
      %v2324 = vpop.permute.xlu0 %2323
      %2325 = vrot.lane.b32.xlu0 %v2181, 113
      %v2326 = vpop.permute.xlu0 %2325
      %2327 = vrot.lane.b32.xlu0 %v2183, 113
      %v2328 = vpop.permute.xlu0 %2327
      %v2329 = vsel %vm417, %v2322, %v2326
      %v2330 = vsel %vm417, %v2324, %v2328
      %v2331 = vsel %vm417, %v2326, %v2322
      %v2332 = vsel %vm417, %v2328, %v2324
      %v2333 = vld [vmem:[%s422] ss:$8 sm:$0x3]
      %v2335 = vperm.slane %v2333, 0
      %v2336 = vperm.slane %v2333, 1
      %v2339 = vmul.f32 %v2329, %v2335
      %v2340 = vmul.f32 %v2331, %v2336
      %v2341 = vmul.f32 %v2330, %v2335
      %v2342 = vmul.f32 %v2332, %v2336
      %v2343 = vpack.c.bf16 %v2340, %v2339
      %v2344 = vpack.c.bf16 %v2342, %v2341
      %2345 = vst [vmem:[#allocation2 + $0x60] sm:$0xff] %v2343
      %2346 = vst [vmem:[#allocation2 + $0x68] sm:$0xff] %v2344
      %2347 = vrot.lane.b32.xlu0 %v2180, 112
      %v2348 = vpop.permute.xlu0 %2347
      %2349 = vrot.lane.b32.xlu0 %v2182, 112
      %v2350 = vpop.permute.xlu0 %2349
      %2351 = vrot.lane.b32.xlu0 %v2181, 112
      %v2352 = vpop.permute.xlu0 %2351
      %2353 = vrot.lane.b32.xlu0 %v2183, 112
      %v2354 = vpop.permute.xlu0 %2353
      %v2355 = vsel %vm445, %v2348, %v2352
      %v2356 = vsel %vm445, %v2350, %v2354
      %v2357 = vsel %vm445, %v2352, %v2348
      %v2358 = vsel %vm445, %v2354, %v2350
      %v2359 = vld [vmem:[%s450] ss:$8 sm:$0x3]
      %v2361 = vperm.slane %v2359, 0
      %v2362 = vperm.slane %v2359, 1
      %v2365 = vmul.f32 %v2355, %v2361
      %v2366 = vmul.f32 %v2357, %v2362
      %v2367 = vmul.f32 %v2356, %v2361
      %v2368 = vmul.f32 %v2358, %v2362
      %v2369 = vpack.c.bf16 %v2366, %v2365
      %v2370 = vpack.c.bf16 %v2368, %v2367
      %2371 = vst [vmem:[#allocation2 + $0x70] sm:$0xff] %v2369
      %2372 = vst [vmem:[#allocation2 + $0x78] sm:$0xff] %v2370
      %2373 = vrot.lane.b32.xlu0 %v2180, 111
      %v2374 = vpop.permute.xlu0 %2373
      %2375 = vrot.lane.b32.xlu0 %v2182, 111
      %v2376 = vpop.permute.xlu0 %2375
      %2377 = vrot.lane.b32.xlu0 %v2181, 111
      %v2378 = vpop.permute.xlu0 %2377
      %2379 = vrot.lane.b32.xlu0 %v2183, 111
      %v2380 = vpop.permute.xlu0 %2379
      %v2381 = vsel %vm473, %v2374, %v2378
      %v2382 = vsel %vm473, %v2376, %v2380
      %v2383 = vsel %vm473, %v2378, %v2374
      %v2384 = vsel %vm473, %v2380, %v2376
      %v2385 = vld [vmem:[%s478] ss:$8 sm:$0x3]
      %v2387 = vperm.slane %v2385, 0
      %v2388 = vperm.slane %v2385, 1
      %v2391 = vmul.f32 %v2381, %v2387
      %v2392 = vmul.f32 %v2383, %v2388
      %v2393 = vmul.f32 %v2382, %v2387
      %v2394 = vmul.f32 %v2384, %v2388
      %v2395 = vpack.c.bf16 %v2392, %v2391
      %v2396 = vpack.c.bf16 %v2394, %v2393
      %2397 = vst [vmem:[#allocation2 + $0x80] sm:$0xff] %v2395
      %2398 = vst [vmem:[#allocation2 + $0x88] sm:$0xff] %v2396
      %v2399 = vld [vmem:[#allocation2] sm:$0xff]
      %v2400 = vld [vmem:[#allocation2 + $0x8] sm:$0xff]
      %v2401 = vld [vmem:[#allocation2 + $0x10] sm:$0xff]
      %v2402 = vld [vmem:[#allocation2 + $0x18] sm:$0xff]
      %v2403 = vld [vmem:[#allocation2 + $0x20] sm:$0xff]
      %v2404 = vld [vmem:[#allocation2 + $0x28] sm:$0xff]
      %v2405 = vld [vmem:[#allocation2 + $0x30] sm:$0xff]
      %v2406 = vld [vmem:[#allocation2 + $0x38] sm:$0xff]
      %v2407 = vld [vmem:[#allocation2 + $0x40] sm:$0xff]
      %v2408 = vld [vmem:[#allocation2 + $0x48] sm:$0xff]
      %v2409 = vld [vmem:[#allocation2 + $0x50] sm:$0xff]
      %v2410 = vld [vmem:[#allocation2 + $0x58] sm:$0xff]
      %v2411 = vld [vmem:[#allocation2 + $0x60] sm:$0xff]
      %v2412 = vld [vmem:[#allocation2 + $0x68] sm:$0xff]
      %v2413 = vld [vmem:[#allocation2 + $0x70] sm:$0xff]
      %v2414 = vld [vmem:[#allocation2 + $0x78] sm:$0xff]
      %v2415 = vld [vmem:[#allocation2 + $0x80] sm:$0xff]
      %v2416 = vld [vmem:[#allocation2 + $0x88] sm:$0xff]
      %v2417 = vld [vmem:[#allocation2 + $0x90] sm:$0xff]
      %v2420 = vunpack.c.l.b16 %v2185
      %v2421 = vunpack.c.h.b16 %v2185
      %v2422 = vunpack.c.l.b16 %v2186
      %v2423 = vunpack.c.h.b16 %v2186
      %v2424 = vpack.c.b16 %v2422, %v2420
      %v2425 = vpack.c.b16 %v2423, %v2421
      %v2446 = vunpack.c.l.b16 %v2399
      %v2447 = vunpack.c.h.b16 %v2399
      %v2448 = vunpack.c.l.b16 %v2400
      %v2449 = vunpack.c.h.b16 %v2400
      %v2450 = vunpack.c.l.b16 %v2401
      %v2451 = vunpack.c.h.b16 %v2401
      %v2452 = vunpack.c.l.b16 %v2402
      %v2453 = vunpack.c.h.b16 %v2402
      %v2454 = vunpack.c.l.b16 %v2403
      %v2455 = vunpack.c.h.b16 %v2403
      %v2456 = vunpack.c.l.b16 %v2404
      %v2457 = vunpack.c.h.b16 %v2404
      %v2458 = vunpack.c.l.b16 %v2405
      %v2459 = vunpack.c.h.b16 %v2405
      %v2460 = vunpack.c.l.b16 %v2406
      %v2461 = vunpack.c.h.b16 %v2406
      %v2462 = vunpack.c.l.b16 %v2407
      %v2463 = vunpack.c.h.b16 %v2407
      %v2464 = vunpack.c.l.b16 %v2408
      %v2465 = vunpack.c.h.b16 %v2408
      %v2466 = vunpack.c.l.b16 %v2409
      %v2467 = vunpack.c.h.b16 %v2409
      %v2468 = vunpack.c.l.b16 %v2410
      %v2469 = vunpack.c.h.b16 %v2410
      %v2470 = vunpack.c.l.b16 %v2411
      %v2471 = vunpack.c.h.b16 %v2411
      %v2472 = vunpack.c.l.b16 %v2412
      %v2473 = vunpack.c.h.b16 %v2412
      %v2474 = vunpack.c.l.b16 %v2413
      %v2475 = vunpack.c.h.b16 %v2413
      %v2476 = vunpack.c.l.b16 %v2414
      %v2477 = vunpack.c.h.b16 %v2414
      %v2478 = vunpack.c.l.b16 %v2415
      %v2479 = vunpack.c.h.b16 %v2415
      %v2480 = vunpack.c.l.b16 %v2416
      %v2481 = vunpack.c.h.b16 %v2416
      %v2482 = vunpack.c.l.b16 %v2417
      %v2483 = vunpack.c.h.b16 %v2417
      %v2484 = vpack.c.b16 %v2448, %v2446
      %v2485 = vpack.c.b16 %v2449, %v2447
      %v2486 = vpack.c.b16 %v2452, %v2450
      %v2487 = vpack.c.b16 %v2453, %v2451
      %v2488 = vpack.c.b16 %v2456, %v2454
      %v2489 = vpack.c.b16 %v2457, %v2455
      %v2490 = vpack.c.b16 %v2460, %v2458
      %v2491 = vpack.c.b16 %v2461, %v2459
      %v2492 = vpack.c.b16 %v2464, %v2462
      %v2493 = vpack.c.b16 %v2465, %v2463
      %v2494 = vpack.c.b16 %v2468, %v2466
      %v2495 = vpack.c.b16 %v2469, %v2467
      %v2496 = vpack.c.b16 %v2472, %v2470
      %v2497 = vpack.c.b16 %v2473, %v2471
      %v2498 = vpack.c.b16 %v2476, %v2474
      %v2499 = vpack.c.b16 %v2477, %v2475
      %v2500 = vpack.c.b16 %v2480, %v2478
      %v2501 = vpack.c.b16 %v2481, %v2479
      %v2502 = vpack.c.b16 %v2482, %v2482
      %v2503 = vpack.c.b16 %v2483, %v2483
      %v2523 = vsel %vm616, %v2425, 0
      %v2526 = vsel %vm620, %v2502, 0
      %v2529 = vsel %vm620, %v2503, 0
      %2531 = vmatpush.bf16.msra.mxu0 %v2498
      %2532 = vmatpush.bf16.msra.mxu0 %v2496
      %2533 = vmatpush.bf16.msra.mxu0 %v2494
      %2534 = vmatpush.bf16.msra.mxu0 %v2492
      %2535 = vmatpush.bf16.msra.mxu0 %v2490
      %2536 = vmatpush.bf16.msra.mxu0 %v2488
      %2537 = vmatpush.bf16.msra.mxu0 %v2486
      %2538 = vmatpush.bf16.msra.mxu0 %v2484
      %2539 = vmatmul.bf16.gmra.mxu0 %v2424
      %v2540 = vpop.f32.mrf.mxu0
      %v2541 = vadd.f32 0.0, %v2540
      %v2542 = vpop.f32.mrf.mxu0
      %v2543 = vadd.f32 0.0, %v2542
      %2544 = vdwg.mxu0
      %2545 = vmatpush.bf16.msra.mxu0 0
      %2546 = vmatpush.bf16.msra.mxu0 0
      %2547 = vmatpush.bf16.msra.mxu0 0
      %2548 = vmatpush.bf16.msra.mxu0 0
      %2549 = vmatpush.bf16.msra.mxu0 0
      %2550 = vmatpush.bf16.msra.mxu0 0
      %2551 = vmatpush.bf16.msra.mxu0 %v2526
      %2552 = vmatpush.bf16.msra.mxu0 %v2500
      %2553 = vmatmul.bf16.gmra.mxu0 %v2523
      %v2554 = vpop.f32.mrf.mxu0
      %v2555 = vadd.f32 %v2541, %v2554
      %v2556 = vpop.f32.mrf.mxu0
      %v2557 = vadd.f32 %v2543, %v2556
      %2558 = vdwg.mxu0
      %2559 = vmatpush.bf16.msra.mxu0 %v2499
      %2560 = vmatpush.bf16.msra.mxu0 %v2497
      %2561 = vmatpush.bf16.msra.mxu0 %v2495
      %2562 = vmatpush.bf16.msra.mxu0 %v2493
      %2563 = vmatpush.bf16.msra.mxu0 %v2491
      %2564 = vmatpush.bf16.msra.mxu0 %v2489
      %2565 = vmatpush.bf16.msra.mxu0 %v2487
      %2566 = vmatpush.bf16.msra.mxu0 %v2485
      %2567 = vmatmul.bf16.gmra.mxu0 %v2424
      %v2568 = vpop.f32.mrf.mxu0
      %v2569 = vadd.f32 0.0, %v2568
      %v2570 = vpop.f32.mrf.mxu0
      %v2571 = vadd.f32 0.0, %v2570
      %2572 = vdwg.mxu0
      %2573 = vmatpush.bf16.msra.mxu0 0
      %2574 = vmatpush.bf16.msra.mxu0 0
      %2575 = vmatpush.bf16.msra.mxu0 0
      %2576 = vmatpush.bf16.msra.mxu0 0
      %2577 = vmatpush.bf16.msra.mxu0 0
      %2578 = vmatpush.bf16.msra.mxu0 0
      %2579 = vmatpush.bf16.msra.mxu0 %v2529
      %2580 = vmatpush.bf16.msra.mxu0 %v2501
      %2581 = vmatmul.bf16.gmra.mxu0 %v2523
      %v2582 = vpop.f32.mrf.mxu0
      %v2583 = vadd.f32 %v2569, %v2582
      %v2584 = vpop.f32.mrf.mxu0
      %v2585 = vadd.f32 %v2571, %v2584
      %2586 = vdwg.mxu0
      %vm2587 = vcmp.gt.f32.partialorder %v2555, 0.0
      %vm2588 = vcmp.gt.f32.partialorder %v2583, 0.0
      %vm2589 = vcmp.gt.f32.partialorder %v2557, 0.0
      %vm2590 = vcmp.gt.f32.partialorder %v2585, 0.0
      %v2591 = vmul.f32 %v2555, 0.01
      %v2592 = vmul.f32 %v2583, 0.01
      %v2593 = vmul.f32 %v2557, 0.01
      %v2594 = vmul.f32 %v2585, 0.01
      %v2595 = vsel %vm2587, %v2555, %v2591
      %v2596 = vsel %vm2588, %v2583, %v2592
      %v2597 = vsel %vm2589, %v2557, %v2593
      %v2598 = vsel %vm2590, %v2585, %v2594
      %s2599 = scalar_lea.vmem %s2, 80
      %v2600 = vld [vmem:[%s2599] sm:$0xff]
      %v2601 = vld [vmem:[%s2599 + $0x8] sm:$0xff]
      %2602 = vrot.lane.b32.xlu0 %v2595, 17
      %v2603 = vpop.permute.xlu0 %2602
      %2604 = vrot.lane.b32.xlu0 %v2597, 17
      %v2605 = vpop.permute.xlu0 %2604
      %2606 = vrot.lane.b32.xlu0 %v2596, 17
      %v2607 = vpop.permute.xlu0 %2606
      %2608 = vrot.lane.b32.xlu0 %v2598, 17
      %v2609 = vpop.permute.xlu0 %2608
      %v2610 = vsel %vm274, %v2603, %v2607
      %v2611 = vsel %vm274, %v2605, %v2609
      %v2612 = vsel %vm274, %v2607, %v2603
      %v2613 = vsel %vm274, %v2609, %v2605
      %v2614 = vld [vmem:[%s3] ss:$8 sm:$0x3]
      %v2616 = vperm.slane %v2614, 0
      %v2617 = vperm.slane %v2614, 1
      %v2620 = vmul.f32 %v2612, %v2616
      %v2621 = vmul.f32 %v2610, %v2617
      %v2622 = vmul.f32 %v2613, %v2616
      %v2623 = vmul.f32 %v2611, %v2617
      %v2624 = vpack.c.bf16 %v2621, %v2620
      %v2625 = vpack.c.bf16 %v2623, %v2622
      %2626 = vst [vmem:[#allocation2] sm:$0xff] %v2624
      %2627 = vst [vmem:[#allocation2 + $0x8] sm:$0xff] %v2625
      %2628 = vrot.lane.b32.xlu0 %v2595, 16
      %v2629 = vpop.permute.xlu0 %2628
      %2630 = vrot.lane.b32.xlu0 %v2597, 16
      %v2631 = vpop.permute.xlu0 %2630
      %2632 = vrot.lane.b32.xlu0 %v2596, 16
      %v2633 = vpop.permute.xlu0 %2632
      %2634 = vrot.lane.b32.xlu0 %v2598, 16
      %v2635 = vpop.permute.xlu0 %2634
      %v2636 = vsel %vm301, %v2629, %v2633
      %v2637 = vsel %vm301, %v2631, %v2635
      %v2638 = vsel %vm301, %v2633, %v2629
      %v2639 = vsel %vm301, %v2635, %v2631
      %v2640 = vld [vmem:[%s306] ss:$8 sm:$0x3]
      %v2642 = vperm.slane %v2640, 0
      %v2643 = vperm.slane %v2640, 1
      %v2646 = vmul.f32 %v2638, %v2642
      %v2647 = vmul.f32 %v2636, %v2643
      %v2648 = vmul.f32 %v2639, %v2642
      %v2649 = vmul.f32 %v2637, %v2643
      %v2650 = vpack.c.bf16 %v2647, %v2646
      %v2651 = vpack.c.bf16 %v2649, %v2648
      %2652 = vst [vmem:[#allocation2 + $0x10] sm:$0xff] %v2650
      %2653 = vst [vmem:[#allocation2 + $0x18] sm:$0xff] %v2651
      %2654 = vrot.lane.b32.xlu0 %v2595, 15
      %v2655 = vpop.permute.xlu0 %2654
      %2656 = vrot.lane.b32.xlu0 %v2597, 15
      %v2657 = vpop.permute.xlu0 %2656
      %2658 = vrot.lane.b32.xlu0 %v2596, 15
      %v2659 = vpop.permute.xlu0 %2658
      %2660 = vrot.lane.b32.xlu0 %v2598, 15
      %v2661 = vpop.permute.xlu0 %2660
      %v2662 = vsel %vm329, %v2655, %v2659
      %v2663 = vsel %vm329, %v2657, %v2661
      %v2664 = vsel %vm329, %v2659, %v2655
      %v2665 = vsel %vm329, %v2661, %v2657
      %v2666 = vld [vmem:[%s334] ss:$8 sm:$0x3]
      %v2668 = vperm.slane %v2666, 0
      %v2669 = vperm.slane %v2666, 1
      %v2672 = vmul.f32 %v2664, %v2668
      %v2673 = vmul.f32 %v2662, %v2669
      %v2674 = vmul.f32 %v2665, %v2668
      %v2675 = vmul.f32 %v2663, %v2669
      %v2676 = vpack.c.bf16 %v2673, %v2672
      %v2677 = vpack.c.bf16 %v2675, %v2674
      %2678 = vst [vmem:[#allocation2 + $0x20] sm:$0xff] %v2676
      %2679 = vst [vmem:[#allocation2 + $0x28] sm:$0xff] %v2677
      %2680 = vrot.lane.b32.xlu0 %v2595, 1
      %v2681 = vpop.permute.xlu0 %2680
      %2682 = vrot.lane.b32.xlu0 %v2597, 1
      %v2683 = vpop.permute.xlu0 %2682
      %2684 = vrot.lane.b32.xlu0 %v2596, 1
      %v2685 = vpop.permute.xlu0 %2684
      %2686 = vrot.lane.b32.xlu0 %v2598, 1
      %v2687 = vpop.permute.xlu0 %2686
      %v2688 = vsel %vm357, %v2681, %v2685
      %v2689 = vsel %vm357, %v2683, %v2687
      %v2690 = vsel %vm357, %v2685, %v2681
      %v2691 = vsel %vm357, %v2687, %v2683
      %v2692 = vld [vmem:[%s362] ss:$8 sm:$0x3]
      %v2694 = vperm.slane %v2692, 0
      %v2695 = vperm.slane %v2692, 1
      %v2698 = vmul.f32 %v2690, %v2694
      %v2699 = vmul.f32 %v2688, %v2695
      %v2700 = vmul.f32 %v2691, %v2694
      %v2701 = vmul.f32 %v2689, %v2695
      %v2702 = vpack.c.bf16 %v2699, %v2698
      %v2703 = vpack.c.bf16 %v2701, %v2700
      %2704 = vst [vmem:[#allocation2 + $0x30] sm:$0xff] %v2702
      %2705 = vst [vmem:[#allocation2 + $0x38] sm:$0xff] %v2703
      %v2706 = vpack.c.bf16 %v2596, %v2595
      %v2707 = vpack.c.bf16 %v2598, %v2597
      %2708 = vst [vmem:[#allocation2 + $0x40] sm:$0xff] %v2706
      %2709 = vst [vmem:[#allocation2 + $0x48] sm:$0xff] %v2707
      %2710 = vrot.lane.b32.xlu0 %v2595, 127
      %v2711 = vpop.permute.xlu0 %2710
      %2712 = vrot.lane.b32.xlu0 %v2597, 127
      %v2713 = vpop.permute.xlu0 %2712
      %2714 = vrot.lane.b32.xlu0 %v2596, 127
      %v2715 = vpop.permute.xlu0 %2714
      %2716 = vrot.lane.b32.xlu0 %v2598, 127
      %v2717 = vpop.permute.xlu0 %2716
      %v2718 = vsel %vm389, %v2711, %v2715
      %v2719 = vsel %vm389, %v2713, %v2717
      %v2720 = vsel %vm389, %v2715, %v2711
      %v2721 = vsel %vm389, %v2717, %v2713
      %v2722 = vld [vmem:[%s394] ss:$8 sm:$0x3]
      %v2724 = vperm.slane %v2722, 0
      %v2725 = vperm.slane %v2722, 1
      %v2728 = vmul.f32 %v2718, %v2724
      %v2729 = vmul.f32 %v2720, %v2725
      %v2730 = vmul.f32 %v2719, %v2724
      %v2731 = vmul.f32 %v2721, %v2725
      %v2732 = vpack.c.bf16 %v2729, %v2728
      %v2733 = vpack.c.bf16 %v2731, %v2730
      %2734 = vst [vmem:[#allocation2 + $0x50] sm:$0xff] %v2732
      %2735 = vst [vmem:[#allocation2 + $0x58] sm:$0xff] %v2733
      %2736 = vrot.lane.b32.xlu0 %v2595, 113
      %v2737 = vpop.permute.xlu0 %2736
      %2738 = vrot.lane.b32.xlu0 %v2597, 113
      %v2739 = vpop.permute.xlu0 %2738
      %2740 = vrot.lane.b32.xlu0 %v2596, 113
      %v2741 = vpop.permute.xlu0 %2740
      %2742 = vrot.lane.b32.xlu0 %v2598, 113
      %v2743 = vpop.permute.xlu0 %2742
      %v2744 = vsel %vm417, %v2737, %v2741
      %v2745 = vsel %vm417, %v2739, %v2743
      %v2746 = vsel %vm417, %v2741, %v2737
      %v2747 = vsel %vm417, %v2743, %v2739
      %v2748 = vld [vmem:[%s422] ss:$8 sm:$0x3]
      %v2750 = vperm.slane %v2748, 0
      %v2751 = vperm.slane %v2748, 1
      %v2754 = vmul.f32 %v2744, %v2750
      %v2755 = vmul.f32 %v2746, %v2751
      %v2756 = vmul.f32 %v2745, %v2750
      %v2757 = vmul.f32 %v2747, %v2751
      %v2758 = vpack.c.bf16 %v2755, %v2754
      %v2759 = vpack.c.bf16 %v2757, %v2756
      %2760 = vst [vmem:[#allocation2 + $0x60] sm:$0xff] %v2758
      %2761 = vst [vmem:[#allocation2 + $0x68] sm:$0xff] %v2759
      %2762 = vrot.lane.b32.xlu0 %v2595, 112
      %v2763 = vpop.permute.xlu0 %2762
      %2764 = vrot.lane.b32.xlu0 %v2597, 112
      %v2765 = vpop.permute.xlu0 %2764
      %2766 = vrot.lane.b32.xlu0 %v2596, 112
      %v2767 = vpop.permute.xlu0 %2766
      %2768 = vrot.lane.b32.xlu0 %v2598, 112
      %v2769 = vpop.permute.xlu0 %2768
      %v2770 = vsel %vm445, %v2763, %v2767
      %v2771 = vsel %vm445, %v2765, %v2769
      %v2772 = vsel %vm445, %v2767, %v2763
      %v2773 = vsel %vm445, %v2769, %v2765
      %v2774 = vld [vmem:[%s450] ss:$8 sm:$0x3]
      %v2776 = vperm.slane %v2774, 0
      %v2777 = vperm.slane %v2774, 1
      %v2780 = vmul.f32 %v2770, %v2776
      %v2781 = vmul.f32 %v2772, %v2777
      %v2782 = vmul.f32 %v2771, %v2776
      %v2783 = vmul.f32 %v2773, %v2777
      %v2784 = vpack.c.bf16 %v2781, %v2780
      %v2785 = vpack.c.bf16 %v2783, %v2782
      %2786 = vst [vmem:[#allocation2 + $0x70] sm:$0xff] %v2784
      %2787 = vst [vmem:[#allocation2 + $0x78] sm:$0xff] %v2785
      %2788 = vrot.lane.b32.xlu0 %v2595, 111
      %v2789 = vpop.permute.xlu0 %2788
      %2790 = vrot.lane.b32.xlu0 %v2597, 111
      %v2791 = vpop.permute.xlu0 %2790
      %2792 = vrot.lane.b32.xlu0 %v2596, 111
      %v2793 = vpop.permute.xlu0 %2792
      %2794 = vrot.lane.b32.xlu0 %v2598, 111
      %v2795 = vpop.permute.xlu0 %2794
      %v2796 = vsel %vm473, %v2789, %v2793
      %v2797 = vsel %vm473, %v2791, %v2795
      %v2798 = vsel %vm473, %v2793, %v2789
      %v2799 = vsel %vm473, %v2795, %v2791
      %v2800 = vld [vmem:[%s478] ss:$8 sm:$0x3]
      %v2802 = vperm.slane %v2800, 0
      %v2803 = vperm.slane %v2800, 1
      %v2806 = vmul.f32 %v2796, %v2802
      %v2807 = vmul.f32 %v2798, %v2803
      %v2808 = vmul.f32 %v2797, %v2802
      %v2809 = vmul.f32 %v2799, %v2803
      %v2810 = vpack.c.bf16 %v2807, %v2806
      %v2811 = vpack.c.bf16 %v2809, %v2808
      %2812 = vst [vmem:[#allocation2 + $0x80] sm:$0xff] %v2810
      %2813 = vst [vmem:[#allocation2 + $0x88] sm:$0xff] %v2811
      %v2814 = vld [vmem:[#allocation2] sm:$0xff]
      %v2815 = vld [vmem:[#allocation2 + $0x8] sm:$0xff]
      %v2816 = vld [vmem:[#allocation2 + $0x10] sm:$0xff]
      %v2817 = vld [vmem:[#allocation2 + $0x18] sm:$0xff]
      %v2818 = vld [vmem:[#allocation2 + $0x20] sm:$0xff]
      %v2819 = vld [vmem:[#allocation2 + $0x28] sm:$0xff]
      %v2820 = vld [vmem:[#allocation2 + $0x30] sm:$0xff]
      %v2821 = vld [vmem:[#allocation2 + $0x38] sm:$0xff]
      %v2822 = vld [vmem:[#allocation2 + $0x40] sm:$0xff]
      %v2823 = vld [vmem:[#allocation2 + $0x48] sm:$0xff]
      %v2824 = vld [vmem:[#allocation2 + $0x50] sm:$0xff]
      %v2825 = vld [vmem:[#allocation2 + $0x58] sm:$0xff]
      %v2826 = vld [vmem:[#allocation2 + $0x60] sm:$0xff]
      %v2827 = vld [vmem:[#allocation2 + $0x68] sm:$0xff]
      %v2828 = vld [vmem:[#allocation2 + $0x70] sm:$0xff]
      %v2829 = vld [vmem:[#allocation2 + $0x78] sm:$0xff]
      %v2830 = vld [vmem:[#allocation2 + $0x80] sm:$0xff]
      %v2831 = vld [vmem:[#allocation2 + $0x88] sm:$0xff]
      %v2832 = vld [vmem:[#allocation2 + $0x90] sm:$0xff]
      %v2835 = vunpack.c.l.b16 %v2600
      %v2836 = vunpack.c.h.b16 %v2600
      %v2837 = vunpack.c.l.b16 %v2601
      %v2838 = vunpack.c.h.b16 %v2601
      %v2839 = vpack.c.b16 %v2837, %v2835
      %v2840 = vpack.c.b16 %v2838, %v2836
      %v2861 = vunpack.c.l.b16 %v2814
      %v2862 = vunpack.c.h.b16 %v2814
      %v2863 = vunpack.c.l.b16 %v2815
      %v2864 = vunpack.c.h.b16 %v2815
      %v2865 = vunpack.c.l.b16 %v2816
      %v2866 = vunpack.c.h.b16 %v2816
      %v2867 = vunpack.c.l.b16 %v2817
      %v2868 = vunpack.c.h.b16 %v2817
      %v2869 = vunpack.c.l.b16 %v2818
      %v2870 = vunpack.c.h.b16 %v2818
      %v2871 = vunpack.c.l.b16 %v2819
      %v2872 = vunpack.c.h.b16 %v2819
      %v2873 = vunpack.c.l.b16 %v2820
      %v2874 = vunpack.c.h.b16 %v2820
      %v2875 = vunpack.c.l.b16 %v2821
      %v2876 = vunpack.c.h.b16 %v2821
      %v2877 = vunpack.c.l.b16 %v2822
      %v2878 = vunpack.c.h.b16 %v2822
      %v2879 = vunpack.c.l.b16 %v2823
      %v2880 = vunpack.c.h.b16 %v2823
      %v2881 = vunpack.c.l.b16 %v2824
      %v2882 = vunpack.c.h.b16 %v2824
      %v2883 = vunpack.c.l.b16 %v2825
      %v2884 = vunpack.c.h.b16 %v2825
      %v2885 = vunpack.c.l.b16 %v2826
      %v2886 = vunpack.c.h.b16 %v2826
      %v2887 = vunpack.c.l.b16 %v2827
      %v2888 = vunpack.c.h.b16 %v2827
      %v2889 = vunpack.c.l.b16 %v2828
      %v2890 = vunpack.c.h.b16 %v2828
      %v2891 = vunpack.c.l.b16 %v2829
      %v2892 = vunpack.c.h.b16 %v2829
      %v2893 = vunpack.c.l.b16 %v2830
      %v2894 = vunpack.c.h.b16 %v2830
      %v2895 = vunpack.c.l.b16 %v2831
      %v2896 = vunpack.c.h.b16 %v2831
      %v2897 = vunpack.c.l.b16 %v2832
      %v2898 = vunpack.c.h.b16 %v2832
      %v2899 = vpack.c.b16 %v2863, %v2861
      %v2900 = vpack.c.b16 %v2864, %v2862
      %v2901 = vpack.c.b16 %v2867, %v2865
      %v2902 = vpack.c.b16 %v2868, %v2866
      %v2903 = vpack.c.b16 %v2871, %v2869
      %v2904 = vpack.c.b16 %v2872, %v2870
      %v2905 = vpack.c.b16 %v2875, %v2873
      %v2906 = vpack.c.b16 %v2876, %v2874
      %v2907 = vpack.c.b16 %v2879, %v2877
      %v2908 = vpack.c.b16 %v2880, %v2878
      %v2909 = vpack.c.b16 %v2883, %v2881
      %v2910 = vpack.c.b16 %v2884, %v2882
      %v2911 = vpack.c.b16 %v2887, %v2885
      %v2912 = vpack.c.b16 %v2888, %v2886
      %v2913 = vpack.c.b16 %v2891, %v2889
      %v2914 = vpack.c.b16 %v2892, %v2890
      %v2915 = vpack.c.b16 %v2895, %v2893
      %v2916 = vpack.c.b16 %v2896, %v2894
      %v2917 = vpack.c.b16 %v2897, %v2897
      %v2918 = vpack.c.b16 %v2898, %v2898
      %v2938 = vsel %vm616, %v2840, 0
      %v2941 = vsel %vm620, %v2917, 0
      %v2944 = vsel %vm620, %v2918, 0
      %2946 = vmatpush.bf16.msra.mxu0 %v2913
      %2947 = vmatpush.bf16.msra.mxu0 %v2911
      %2948 = vmatpush.bf16.msra.mxu0 %v2909
      %2949 = vmatpush.bf16.msra.mxu0 %v2907
      %2950 = vmatpush.bf16.msra.mxu0 %v2905
      %2951 = vmatpush.bf16.msra.mxu0 %v2903
      %2952 = vmatpush.bf16.msra.mxu0 %v2901
      %2953 = vmatpush.bf16.msra.mxu0 %v2899
      %2954 = vmatmul.bf16.gmra.mxu0 %v2839
      %v2955 = vpop.f32.mrf.mxu0
      %v2956 = vadd.f32 0.0, %v2955
      %v2957 = vpop.f32.mrf.mxu0
      %v2958 = vadd.f32 0.0, %v2957
      %2959 = vdwg.mxu0
      %2960 = vmatpush.bf16.msra.mxu0 0
      %2961 = vmatpush.bf16.msra.mxu0 0
      %2962 = vmatpush.bf16.msra.mxu0 0
      %2963 = vmatpush.bf16.msra.mxu0 0
      %2964 = vmatpush.bf16.msra.mxu0 0
      %2965 = vmatpush.bf16.msra.mxu0 0
      %2966 = vmatpush.bf16.msra.mxu0 %v2941
      %2967 = vmatpush.bf16.msra.mxu0 %v2915
      %2968 = vmatmul.bf16.gmra.mxu0 %v2938
      %v2969 = vpop.f32.mrf.mxu0
      %v2970 = vadd.f32 %v2956, %v2969
      %v2971 = vpop.f32.mrf.mxu0
      %v2972 = vadd.f32 %v2958, %v2971
      %2973 = vdwg.mxu0
      %2974 = vmatpush.bf16.msra.mxu0 %v2914
      %2975 = vmatpush.bf16.msra.mxu0 %v2912
      %2976 = vmatpush.bf16.msra.mxu0 %v2910
      %2977 = vmatpush.bf16.msra.mxu0 %v2908
      %2978 = vmatpush.bf16.msra.mxu0 %v2906
      %2979 = vmatpush.bf16.msra.mxu0 %v2904
      %2980 = vmatpush.bf16.msra.mxu0 %v2902
      %2981 = vmatpush.bf16.msra.mxu0 %v2900
      %2982 = vmatmul.bf16.gmra.mxu0 %v2839
      %v2983 = vpop.f32.mrf.mxu0
      %v2984 = vadd.f32 0.0, %v2983
      %v2985 = vpop.f32.mrf.mxu0
      %v2986 = vadd.f32 0.0, %v2985
      %2987 = vdwg.mxu0
      %2988 = vmatpush.bf16.msra.mxu0 0
      %2989 = vmatpush.bf16.msra.mxu0 0
      %2990 = vmatpush.bf16.msra.mxu0 0
      %2991 = vmatpush.bf16.msra.mxu0 0
      %2992 = vmatpush.bf16.msra.mxu0 0
      %2993 = vmatpush.bf16.msra.mxu0 0
      %2994 = vmatpush.bf16.msra.mxu0 %v2944
      %2995 = vmatpush.bf16.msra.mxu0 %v2916
      %2996 = vmatmul.bf16.gmra.mxu0 %v2938
      %v2997 = vpop.f32.mrf.mxu0
      %v2998 = vadd.f32 %v2984, %v2997
      %v2999 = vpop.f32.mrf.mxu0
      %v3000 = vadd.f32 %v2986, %v2999
      %3001 = vdwg.mxu0
      %vm3002 = vcmp.gt.f32.partialorder %v2970, 0.0
      %vm3003 = vcmp.gt.f32.partialorder %v2998, 0.0
      %vm3004 = vcmp.gt.f32.partialorder %v2972, 0.0
      %vm3005 = vcmp.gt.f32.partialorder %v3000, 0.0
      %v3006 = vmul.f32 %v2970, 0.01
      %v3007 = vmul.f32 %v2998, 0.01
      %v3008 = vmul.f32 %v2972, 0.01
      %v3009 = vmul.f32 %v3000, 0.01
      %v3010 = vsel %vm3002, %v2970, %v3006
      %v3011 = vsel %vm3003, %v2998, %v3007
      %v3012 = vsel %vm3004, %v2972, %v3008
      %v3013 = vsel %vm3005, %v3000, %v3009
      %s3014 = scalar_lea.vmem %s242, 64
      %v3015 = vld [vmem:[%s3014] sm:$0xff]
      %v3016 = vld [vmem:[%s3014 + $0x8] sm:$0xff]
      %v3018 = vsel %vm1112, %v3015, 0
      %v3021 = vsel %vm1112, %v3016, 0
      %3023 = vmatpush.msra.mxu0 0.0
      %3024 = vmatpush.msra.mxu0 0.0
      %3025 = vmatpush.msra.mxu0 0.0
      %3026 = vmatpush.msra.mxu0 0.0
      %3027 = vmatpush.msra.mxu0 0.0
      %3028 = vmatpush.msra.mxu0 0.0
      %3029 = vmatpush.msra.mxu0 0.0
      %3030 = vmatpush.msra.mxu0 0.0
      %3031 = vmatpush.msra.mxu0 0.0
      %3032 = vmatpush.msra.mxu0 0.0
      %3033 = vmatpush.msra.mxu0 0.0
      %3034 = vmatpush.msra.mxu0 0.0
      %3035 = vmatpush.msra.mxu0 0.0
      %3036 = vmatpush.msra.mxu0 0.0
      %3037 = vmatpush.msra.mxu0 0.0
      %3038 = vmatpush.msra.mxu0 %v256
      %3039 = vmatmul.f32.gmra.mxu0 %v3018
      %v3040 = vpop.f32.mrf.mxu0
      %v3041 = vadd.f32 0.0, %v3040
      %3042 = vmatmul.f32.gmra.mxu0 %v3021
      %v3043 = vpop.f32.mrf.mxu0
      %v3044 = vadd.f32 0.0, %v3043
      %3045 = vdwg.mxu0
      %3046 = vmatpush.msra.mxu0 0.0
      %3047 = vmatpush.msra.mxu0 0.0
      %3048 = vmatpush.msra.mxu0 0.0
      %3049 = vmatpush.msra.mxu0 0.0
      %3050 = vmatpush.msra.mxu0 0.0
      %3051 = vmatpush.msra.mxu0 0.0
      %3052 = vmatpush.msra.mxu0 0.0
      %3053 = vmatpush.msra.mxu0 0.0
      %3054 = vmatpush.msra.mxu0 0.0
      %3055 = vmatpush.msra.mxu0 0.0
      %3056 = vmatpush.msra.mxu0 0.0
      %3057 = vmatpush.msra.mxu0 0.0
      %3058 = vmatpush.msra.mxu0 0.0
      %3059 = vmatpush.msra.mxu0 0.0
      %3060 = vmatpush.msra.mxu0 0.0
      %3061 = vmatpush.msra.mxu0 %v257
      %3062 = vmatmul.f32.gmra.mxu0 %v3018
      %v3063 = vpop.f32.mrf.mxu0
      %v3064 = vadd.f32 0.0, %v3063
      %3065 = vmatmul.f32.gmra.mxu0 %v3021
      %v3066 = vpop.f32.mrf.mxu0
      %v3067 = vadd.f32 0.0, %v3066
      %3068 = vdwg.mxu0
      %s3069 = scalar_lea.vmem %s242, 80
      %v3070 = vld [vmem:[%s3069] sm:$0xff]
      %v3071 = vld [vmem:[%s3069 + $0x8] sm:$0xff]
      %v3073 = vsel %vm1112, %v3070, 0
      %v3076 = vsel %vm1112, %v3071, 0
      %3078 = vmatpush.msra.mxu0 0.0
      %3079 = vmatpush.msra.mxu0 0.0
      %3080 = vmatpush.msra.mxu0 0.0
      %3081 = vmatpush.msra.mxu0 0.0
      %3082 = vmatpush.msra.mxu0 0.0
      %3083 = vmatpush.msra.mxu0 0.0
      %3084 = vmatpush.msra.mxu0 0.0
      %3085 = vmatpush.msra.mxu0 0.0
      %3086 = vmatpush.msra.mxu0 0.0
      %3087 = vmatpush.msra.mxu0 0.0
      %3088 = vmatpush.msra.mxu0 0.0
      %3089 = vmatpush.msra.mxu0 0.0
      %3090 = vmatpush.msra.mxu0 0.0
      %3091 = vmatpush.msra.mxu0 0.0
      %3092 = vmatpush.msra.mxu0 0.0
      %3093 = vmatpush.msra.mxu0 %v256
      %3094 = vmatmul.f32.gmra.mxu0 %v3073
      %v3095 = vpop.f32.mrf.mxu0
      %v3096 = vadd.f32 0.0, %v3095
      %3097 = vmatmul.f32.gmra.mxu0 %v3076
      %v3098 = vpop.f32.mrf.mxu0
      %v3099 = vadd.f32 0.0, %v3098
      %3100 = vdwg.mxu0
      %3101 = vmatpush.msra.mxu0 0.0
      %3102 = vmatpush.msra.mxu0 0.0
      %3103 = vmatpush.msra.mxu0 0.0
      %3104 = vmatpush.msra.mxu0 0.0
      %3105 = vmatpush.msra.mxu0 0.0
      %3106 = vmatpush.msra.mxu0 0.0
      %3107 = vmatpush.msra.mxu0 0.0
      %3108 = vmatpush.msra.mxu0 0.0
      %3109 = vmatpush.msra.mxu0 0.0
      %3110 = vmatpush.msra.mxu0 0.0
      %3111 = vmatpush.msra.mxu0 0.0
      %3112 = vmatpush.msra.mxu0 0.0
      %3113 = vmatpush.msra.mxu0 0.0
      %3114 = vmatpush.msra.mxu0 0.0
      %3115 = vmatpush.msra.mxu0 0.0
      %3116 = vmatpush.msra.mxu0 %v257
      %3117 = vmatmul.f32.gmra.mxu0 %v3073
      %v3118 = vpop.f32.mrf.mxu0
      %v3119 = vadd.f32 0.0, %v3118
      %3120 = vmatmul.f32.gmra.mxu0 %v3076
      %v3121 = vpop.f32.mrf.mxu0
      %v3122 = vadd.f32 0.0, %v3121
      %3123 = vdwg.mxu0
      %v3124 = vmul.f32 %v3041, %v3010
      %v3125 = vmul.f32 %v3064, %v3011
      %v3126 = vmul.f32 %v3044, %v3012
      %v3127 = vmul.f32 %v3067, %v3013
      %v3128 = vadd.f32 %v3124, %v3096
      %v3129 = vadd.f32 %v3125, %v3119
      %v3130 = vadd.f32 %v3126, %v3099
      %v3131 = vadd.f32 %v3127, %v3122
      %v3132 = vadd.f32 %v3128, %v2595
      %v3133 = vadd.f32 %v3129, %v2596
      %v3134 = vadd.f32 %v3130, %v2597
      %v3135 = vadd.f32 %v3131, %v2598
      %s3136 = scalar_lea.vmem %s2, 96
      %v3137 = vld [vmem:[%s3136] sm:$0xff]
      %v3138 = vld [vmem:[%s3136 + $0x8] sm:$0xff]
      %3139 = vrot.lane.b32.xlu0 %v3132, 17
      %v3140 = vpop.permute.xlu0 %3139
      %3141 = vrot.lane.b32.xlu0 %v3134, 17
      %v3142 = vpop.permute.xlu0 %3141
      %3143 = vrot.lane.b32.xlu0 %v3133, 17
      %v3144 = vpop.permute.xlu0 %3143
      %3145 = vrot.lane.b32.xlu0 %v3135, 17
      %v3146 = vpop.permute.xlu0 %3145
      %v3147 = vsel %vm274, %v3140, %v3144
      %v3148 = vsel %vm274, %v3142, %v3146
      %v3149 = vsel %vm274, %v3144, %v3140
      %v3150 = vsel %vm274, %v3146, %v3142
      %v3151 = vld [vmem:[%s3] ss:$8 sm:$0x3]
      %v3153 = vperm.slane %v3151, 0
      %v3154 = vperm.slane %v3151, 1
      %v3157 = vmul.f32 %v3149, %v3153
      %v3158 = vmul.f32 %v3147, %v3154
      %v3159 = vmul.f32 %v3150, %v3153
      %v3160 = vmul.f32 %v3148, %v3154
      %v3161 = vpack.c.bf16 %v3158, %v3157
      %v3162 = vpack.c.bf16 %v3160, %v3159
      %3163 = vst [vmem:[#allocation2] sm:$0xff] %v3161
      %3164 = vst [vmem:[#allocation2 + $0x8] sm:$0xff] %v3162
      %3165 = vrot.lane.b32.xlu0 %v3132, 16
      %v3166 = vpop.permute.xlu0 %3165
      %3167 = vrot.lane.b32.xlu0 %v3134, 16
      %v3168 = vpop.permute.xlu0 %3167
      %3169 = vrot.lane.b32.xlu0 %v3133, 16
      %v3170 = vpop.permute.xlu0 %3169
      %3171 = vrot.lane.b32.xlu0 %v3135, 16
      %v3172 = vpop.permute.xlu0 %3171
      %v3173 = vsel %vm301, %v3166, %v3170
      %v3174 = vsel %vm301, %v3168, %v3172
      %v3175 = vsel %vm301, %v3170, %v3166
      %v3176 = vsel %vm301, %v3172, %v3168
      %v3177 = vld [vmem:[%s306] ss:$8 sm:$0x3]
      %v3179 = vperm.slane %v3177, 0
      %v3180 = vperm.slane %v3177, 1
      %v3183 = vmul.f32 %v3175, %v3179
      %v3184 = vmul.f32 %v3173, %v3180
      %v3185 = vmul.f32 %v3176, %v3179
      %v3186 = vmul.f32 %v3174, %v3180
      %v3187 = vpack.c.bf16 %v3184, %v3183
      %v3188 = vpack.c.bf16 %v3186, %v3185
      %3189 = vst [vmem:[#allocation2 + $0x10] sm:$0xff] %v3187
      %3190 = vst [vmem:[#allocation2 + $0x18] sm:$0xff] %v3188
      %3191 = vrot.lane.b32.xlu0 %v3132, 15
      %v3192 = vpop.permute.xlu0 %3191
      %3193 = vrot.lane.b32.xlu0 %v3134, 15
      %v3194 = vpop.permute.xlu0 %3193
      %3195 = vrot.lane.b32.xlu0 %v3133, 15
      %v3196 = vpop.permute.xlu0 %3195
      %3197 = vrot.lane.b32.xlu0 %v3135, 15
      %v3198 = vpop.permute.xlu0 %3197
      %v3199 = vsel %vm329, %v3192, %v3196
      %v3200 = vsel %vm329, %v3194, %v3198
      %v3201 = vsel %vm329, %v3196, %v3192
      %v3202 = vsel %vm329, %v3198, %v3194
      %v3203 = vld [vmem:[%s334] ss:$8 sm:$0x3]
      %v3205 = vperm.slane %v3203, 0
      %v3206 = vperm.slane %v3203, 1
      %v3209 = vmul.f32 %v3201, %v3205
      %v3210 = vmul.f32 %v3199, %v3206
      %v3211 = vmul.f32 %v3202, %v3205
      %v3212 = vmul.f32 %v3200, %v3206
      %v3213 = vpack.c.bf16 %v3210, %v3209
      %v3214 = vpack.c.bf16 %v3212, %v3211
      %3215 = vst [vmem:[#allocation2 + $0x20] sm:$0xff] %v3213
      %3216 = vst [vmem:[#allocation2 + $0x28] sm:$0xff] %v3214
      %3217 = vrot.lane.b32.xlu0 %v3132, 1
      %v3218 = vpop.permute.xlu0 %3217
      %3219 = vrot.lane.b32.xlu0 %v3134, 1
      %v3220 = vpop.permute.xlu0 %3219
      %3221 = vrot.lane.b32.xlu0 %v3133, 1
      %v3222 = vpop.permute.xlu0 %3221
      %3223 = vrot.lane.b32.xlu0 %v3135, 1
      %v3224 = vpop.permute.xlu0 %3223
      %v3225 = vsel %vm357, %v3218, %v3222
      %v3226 = vsel %vm357, %v3220, %v3224
      %v3227 = vsel %vm357, %v3222, %v3218
      %v3228 = vsel %vm357, %v3224, %v3220
      %v3229 = vld [vmem:[%s362] ss:$8 sm:$0x3]
      %v3231 = vperm.slane %v3229, 0
      %v3232 = vperm.slane %v3229, 1
      %v3235 = vmul.f32 %v3227, %v3231
      %v3236 = vmul.f32 %v3225, %v3232
      %v3237 = vmul.f32 %v3228, %v3231
      %v3238 = vmul.f32 %v3226, %v3232
      %v3239 = vpack.c.bf16 %v3236, %v3235
      %v3240 = vpack.c.bf16 %v3238, %v3237
      %3241 = vst [vmem:[#allocation2 + $0x30] sm:$0xff] %v3239
      %3242 = vst [vmem:[#allocation2 + $0x38] sm:$0xff] %v3240
      %v3243 = vpack.c.bf16 %v3133, %v3132
      %v3244 = vpack.c.bf16 %v3135, %v3134
      %3245 = vst [vmem:[#allocation2 + $0x40] sm:$0xff] %v3243
      %3246 = vst [vmem:[#allocation2 + $0x48] sm:$0xff] %v3244
      %3247 = vrot.lane.b32.xlu0 %v3132, 127
      %v3248 = vpop.permute.xlu0 %3247
      %3249 = vrot.lane.b32.xlu0 %v3134, 127
      %v3250 = vpop.permute.xlu0 %3249
      %3251 = vrot.lane.b32.xlu0 %v3133, 127
      %v3252 = vpop.permute.xlu0 %3251
      %3253 = vrot.lane.b32.xlu0 %v3135, 127
      %v3254 = vpop.permute.xlu0 %3253
      %v3255 = vsel %vm389, %v3248, %v3252
      %v3256 = vsel %vm389, %v3250, %v3254
      %v3257 = vsel %vm389, %v3252, %v3248
      %v3258 = vsel %vm389, %v3254, %v3250
      %v3259 = vld [vmem:[%s394] ss:$8 sm:$0x3]
      %v3261 = vperm.slane %v3259, 0
      %v3262 = vperm.slane %v3259, 1
      %v3265 = vmul.f32 %v3255, %v3261
      %v3266 = vmul.f32 %v3257, %v3262
      %v3267 = vmul.f32 %v3256, %v3261
      %v3268 = vmul.f32 %v3258, %v3262
      %v3269 = vpack.c.bf16 %v3266, %v3265
      %v3270 = vpack.c.bf16 %v3268, %v3267
      %3271 = vst [vmem:[#allocation2 + $0x50] sm:$0xff] %v3269
      %3272 = vst [vmem:[#allocation2 + $0x58] sm:$0xff] %v3270
      %3273 = vrot.lane.b32.xlu0 %v3132, 113
      %v3274 = vpop.permute.xlu0 %3273
      %3275 = vrot.lane.b32.xlu0 %v3134, 113
      %v3276 = vpop.permute.xlu0 %3275
      %3277 = vrot.lane.b32.xlu0 %v3133, 113
      %v3278 = vpop.permute.xlu0 %3277
      %3279 = vrot.lane.b32.xlu0 %v3135, 113
      %v3280 = vpop.permute.xlu0 %3279
      %v3281 = vsel %vm417, %v3274, %v3278
      %v3282 = vsel %vm417, %v3276, %v3280
      %v3283 = vsel %vm417, %v3278, %v3274
      %v3284 = vsel %vm417, %v3280, %v3276
      %v3285 = vld [vmem:[%s422] ss:$8 sm:$0x3]
      %v3287 = vperm.slane %v3285, 0
      %v3288 = vperm.slane %v3285, 1
      %v3291 = vmul.f32 %v3281, %v3287
      %v3292 = vmul.f32 %v3283, %v3288
      %v3293 = vmul.f32 %v3282, %v3287
      %v3294 = vmul.f32 %v3284, %v3288
      %v3295 = vpack.c.bf16 %v3292, %v3291
      %v3296 = vpack.c.bf16 %v3294, %v3293
      %3297 = vst [vmem:[#allocation2 + $0x60] sm:$0xff] %v3295
      %3298 = vst [vmem:[#allocation2 + $0x68] sm:$0xff] %v3296
      %3299 = vrot.lane.b32.xlu0 %v3132, 112
      %v3300 = vpop.permute.xlu0 %3299
      %3301 = vrot.lane.b32.xlu0 %v3134, 112
      %v3302 = vpop.permute.xlu0 %3301
      %3303 = vrot.lane.b32.xlu0 %v3133, 112
      %v3304 = vpop.permute.xlu0 %3303
      %3305 = vrot.lane.b32.xlu0 %v3135, 112
      %v3306 = vpop.permute.xlu0 %3305
      %v3307 = vsel %vm445, %v3300, %v3304
      %v3308 = vsel %vm445, %v3302, %v3306
      %v3309 = vsel %vm445, %v3304, %v3300
      %v3310 = vsel %vm445, %v3306, %v3302
      %v3311 = vld [vmem:[%s450] ss:$8 sm:$0x3]
      %v3313 = vperm.slane %v3311, 0
      %v3314 = vperm.slane %v3311, 1
      %v3317 = vmul.f32 %v3307, %v3313
      %v3318 = vmul.f32 %v3309, %v3314
      %v3319 = vmul.f32 %v3308, %v3313
      %v3320 = vmul.f32 %v3310, %v3314
      %v3321 = vpack.c.bf16 %v3318, %v3317
      %v3322 = vpack.c.bf16 %v3320, %v3319
      %3323 = vst [vmem:[#allocation2 + $0x70] sm:$0xff] %v3321
      %3324 = vst [vmem:[#allocation2 + $0x78] sm:$0xff] %v3322
      %3325 = vrot.lane.b32.xlu0 %v3132, 111
      %v3326 = vpop.permute.xlu0 %3325
      %3327 = vrot.lane.b32.xlu0 %v3134, 111
      %v3328 = vpop.permute.xlu0 %3327
      %3329 = vrot.lane.b32.xlu0 %v3133, 111
      %v3330 = vpop.permute.xlu0 %3329
      %3331 = vrot.lane.b32.xlu0 %v3135, 111
      %v3332 = vpop.permute.xlu0 %3331
      %v3333 = vsel %vm473, %v3326, %v3330
      %v3334 = vsel %vm473, %v3328, %v3332
      %v3335 = vsel %vm473, %v3330, %v3326
      %v3336 = vsel %vm473, %v3332, %v3328
      %v3337 = vld [vmem:[%s478] ss:$8 sm:$0x3]
      %v3339 = vperm.slane %v3337, 0
      %v3340 = vperm.slane %v3337, 1
      %v3343 = vmul.f32 %v3333, %v3339
      %v3344 = vmul.f32 %v3335, %v3340
      %v3345 = vmul.f32 %v3334, %v3339
      %v3346 = vmul.f32 %v3336, %v3340
      %v3347 = vpack.c.bf16 %v3344, %v3343
      %v3348 = vpack.c.bf16 %v3346, %v3345
      %3349 = vst [vmem:[#allocation2 + $0x80] sm:$0xff] %v3347
      %3350 = vst [vmem:[#allocation2 + $0x88] sm:$0xff] %v3348
      %v3351 = vld [vmem:[#allocation2] sm:$0xff]
      %v3352 = vld [vmem:[#allocation2 + $0x8] sm:$0xff]
      %v3353 = vld [vmem:[#allocation2 + $0x10] sm:$0xff]
      %v3354 = vld [vmem:[#allocation2 + $0x18] sm:$0xff]
      %v3355 = vld [vmem:[#allocation2 + $0x20] sm:$0xff]
      %v3356 = vld [vmem:[#allocation2 + $0x28] sm:$0xff]
      %v3357 = vld [vmem:[#allocation2 + $0x30] sm:$0xff]
      %v3358 = vld [vmem:[#allocation2 + $0x38] sm:$0xff]
      %v3359 = vld [vmem:[#allocation2 + $0x40] sm:$0xff]
      %v3360 = vld [vmem:[#allocation2 + $0x48] sm:$0xff]
      %v3361 = vld [vmem:[#allocation2 + $0x50] sm:$0xff]
      %v3362 = vld [vmem:[#allocation2 + $0x58] sm:$0xff]
      %v3363 = vld [vmem:[#allocation2 + $0x60] sm:$0xff]
      %v3364 = vld [vmem:[#allocation2 + $0x68] sm:$0xff]
      %v3365 = vld [vmem:[#allocation2 + $0x70] sm:$0xff]
      %v3366 = vld [vmem:[#allocation2 + $0x78] sm:$0xff]
      %v3367 = vld [vmem:[#allocation2 + $0x80] sm:$0xff]
      %v3368 = vld [vmem:[#allocation2 + $0x88] sm:$0xff]
      %v3369 = vld [vmem:[#allocation2 + $0x90] sm:$0xff]
      %v3372 = vunpack.c.l.b16 %v3137
      %v3373 = vunpack.c.h.b16 %v3137
      %v3374 = vunpack.c.l.b16 %v3138
      %v3375 = vunpack.c.h.b16 %v3138
      %v3376 = vpack.c.b16 %v3374, %v3372
      %v3377 = vpack.c.b16 %v3375, %v3373
      %v3398 = vunpack.c.l.b16 %v3351
      %v3399 = vunpack.c.h.b16 %v3351
      %v3400 = vunpack.c.l.b16 %v3352
      %v3401 = vunpack.c.h.b16 %v3352
      %v3402 = vunpack.c.l.b16 %v3353
      %v3403 = vunpack.c.h.b16 %v3353
      %v3404 = vunpack.c.l.b16 %v3354
      %v3405 = vunpack.c.h.b16 %v3354
      %v3406 = vunpack.c.l.b16 %v3355
      %v3407 = vunpack.c.h.b16 %v3355
      %v3408 = vunpack.c.l.b16 %v3356
      %v3409 = vunpack.c.h.b16 %v3356
      %v3410 = vunpack.c.l.b16 %v3357
      %v3411 = vunpack.c.h.b16 %v3357
      %v3412 = vunpack.c.l.b16 %v3358
      %v3413 = vunpack.c.h.b16 %v3358
      %v3414 = vunpack.c.l.b16 %v3359
      %v3415 = vunpack.c.h.b16 %v3359
      %v3416 = vunpack.c.l.b16 %v3360
      %v3417 = vunpack.c.h.b16 %v3360
      %v3418 = vunpack.c.l.b16 %v3361
      %v3419 = vunpack.c.h.b16 %v3361
      %v3420 = vunpack.c.l.b16 %v3362
      %v3421 = vunpack.c.h.b16 %v3362
      %v3422 = vunpack.c.l.b16 %v3363
      %v3423 = vunpack.c.h.b16 %v3363
      %v3424 = vunpack.c.l.b16 %v3364
      %v3425 = vunpack.c.h.b16 %v3364
      %v3426 = vunpack.c.l.b16 %v3365
      %v3427 = vunpack.c.h.b16 %v3365
      %v3428 = vunpack.c.l.b16 %v3366
      %v3429 = vunpack.c.h.b16 %v3366
      %v3430 = vunpack.c.l.b16 %v3367
      %v3431 = vunpack.c.h.b16 %v3367
      %v3432 = vunpack.c.l.b16 %v3368
      %v3433 = vunpack.c.h.b16 %v3368
      %v3434 = vunpack.c.l.b16 %v3369
      %v3435 = vunpack.c.h.b16 %v3369
      %v3436 = vpack.c.b16 %v3400, %v3398
      %v3437 = vpack.c.b16 %v3401, %v3399
      %v3438 = vpack.c.b16 %v3404, %v3402
      %v3439 = vpack.c.b16 %v3405, %v3403
      %v3440 = vpack.c.b16 %v3408, %v3406
      %v3441 = vpack.c.b16 %v3409, %v3407
      %v3442 = vpack.c.b16 %v3412, %v3410
      %v3443 = vpack.c.b16 %v3413, %v3411
      %v3444 = vpack.c.b16 %v3416, %v3414
      %v3445 = vpack.c.b16 %v3417, %v3415
      %v3446 = vpack.c.b16 %v3420, %v3418
      %v3447 = vpack.c.b16 %v3421, %v3419
      %v3448 = vpack.c.b16 %v3424, %v3422
      %v3449 = vpack.c.b16 %v3425, %v3423
      %v3450 = vpack.c.b16 %v3428, %v3426
      %v3451 = vpack.c.b16 %v3429, %v3427
      %v3452 = vpack.c.b16 %v3432, %v3430
      %v3453 = vpack.c.b16 %v3433, %v3431
      %v3454 = vpack.c.b16 %v3434, %v3434
      %v3455 = vpack.c.b16 %v3435, %v3435
      %v3475 = vsel %vm616, %v3377, 0
      %v3478 = vsel %vm620, %v3454, 0
      %v3481 = vsel %vm620, %v3455, 0
      %3483 = vmatpush.bf16.msra.mxu0 %v3450
      %3484 = vmatpush.bf16.msra.mxu0 %v3448
      %3485 = vmatpush.bf16.msra.mxu0 %v3446
      %3486 = vmatpush.bf16.msra.mxu0 %v3444
      %3487 = vmatpush.bf16.msra.mxu0 %v3442
      %3488 = vmatpush.bf16.msra.mxu0 %v3440
      %3489 = vmatpush.bf16.msra.mxu0 %v3438
      %3490 = vmatpush.bf16.msra.mxu0 %v3436
      %3491 = vmatmul.bf16.gmra.mxu0 %v3376
      %v3492 = vpop.f32.mrf.mxu0
      %v3493 = vadd.f32 0.0, %v3492
      %v3494 = vpop.f32.mrf.mxu0
      %v3495 = vadd.f32 0.0, %v3494
      %3496 = vdwg.mxu0
      %3497 = vmatpush.bf16.msra.mxu0 0
      %3498 = vmatpush.bf16.msra.mxu0 0
      %3499 = vmatpush.bf16.msra.mxu0 0
      %3500 = vmatpush.bf16.msra.mxu0 0
      %3501 = vmatpush.bf16.msra.mxu0 0
      %3502 = vmatpush.bf16.msra.mxu0 0
      %3503 = vmatpush.bf16.msra.mxu0 %v3478
      %3504 = vmatpush.bf16.msra.mxu0 %v3452
      %3505 = vmatmul.bf16.gmra.mxu0 %v3475
      %v3506 = vpop.f32.mrf.mxu0
      %v3507 = vadd.f32 %v3493, %v3506
      %v3508 = vpop.f32.mrf.mxu0
      %v3509 = vadd.f32 %v3495, %v3508
      %3510 = vdwg.mxu0
      %3511 = vmatpush.bf16.msra.mxu0 %v3451
      %3512 = vmatpush.bf16.msra.mxu0 %v3449
      %3513 = vmatpush.bf16.msra.mxu0 %v3447
      %3514 = vmatpush.bf16.msra.mxu0 %v3445
      %3515 = vmatpush.bf16.msra.mxu0 %v3443
      %3516 = vmatpush.bf16.msra.mxu0 %v3441
      %3517 = vmatpush.bf16.msra.mxu0 %v3439
      %3518 = vmatpush.bf16.msra.mxu0 %v3437
      %3519 = vmatmul.bf16.gmra.mxu0 %v3376
      %v3520 = vpop.f32.mrf.mxu0
      %v3521 = vadd.f32 0.0, %v3520
      %v3522 = vpop.f32.mrf.mxu0
      %v3523 = vadd.f32 0.0, %v3522
      %3524 = vdwg.mxu0
      %3525 = vmatpush.bf16.msra.mxu0 0
      %3526 = vmatpush.bf16.msra.mxu0 0
      %3527 = vmatpush.bf16.msra.mxu0 0
      %3528 = vmatpush.bf16.msra.mxu0 0
      %3529 = vmatpush.bf16.msra.mxu0 0
      %3530 = vmatpush.bf16.msra.mxu0 0
      %3531 = vmatpush.bf16.msra.mxu0 %v3481
      %3532 = vmatpush.bf16.msra.mxu0 %v3453
      %3533 = vmatmul.bf16.gmra.mxu0 %v3475
      %v3534 = vpop.f32.mrf.mxu0
      %v3535 = vadd.f32 %v3521, %v3534
      %v3536 = vpop.f32.mrf.mxu0
      %v3537 = vadd.f32 %v3523, %v3536
      %3538 = vdwg.mxu0
      %vm3539 = vcmp.gt.f32.partialorder %v3507, 0.0
      %vm3540 = vcmp.gt.f32.partialorder %v3535, 0.0
      %vm3541 = vcmp.gt.f32.partialorder %v3509, 0.0
      %vm3542 = vcmp.gt.f32.partialorder %v3537, 0.0
      %v3543 = vmul.f32 %v3507, 0.01
      %v3544 = vmul.f32 %v3535, 0.01
      %v3545 = vmul.f32 %v3509, 0.01
      %v3546 = vmul.f32 %v3537, 0.01
      %v3547 = vsel %vm3539, %v3507, %v3543
      %v3548 = vsel %vm3540, %v3535, %v3544
      %v3549 = vsel %vm3541, %v3509, %v3545
      %v3550 = vsel %vm3542, %v3537, %v3546
      %s3551 = scalar_lea.vmem %s2, 112
      %v3552 = vld [vmem:[%s3551] sm:$0xff]
      %v3553 = vld [vmem:[%s3551 + $0x8] sm:$0xff]
      %3554 = vrot.lane.b32.xlu0 %v3547, 17
      %v3555 = vpop.permute.xlu0 %3554
      %3556 = vrot.lane.b32.xlu0 %v3549, 17
      %v3557 = vpop.permute.xlu0 %3556
      %3558 = vrot.lane.b32.xlu0 %v3548, 17
      %v3559 = vpop.permute.xlu0 %3558
      %3560 = vrot.lane.b32.xlu0 %v3550, 17
      %v3561 = vpop.permute.xlu0 %3560
      %v3562 = vsel %vm274, %v3555, %v3559
      %v3563 = vsel %vm274, %v3557, %v3561
      %v3564 = vsel %vm274, %v3559, %v3555
      %v3565 = vsel %vm274, %v3561, %v3557
      %v3566 = vld [vmem:[%s3] ss:$8 sm:$0x3]
      %v3568 = vperm.slane %v3566, 0
      %v3569 = vperm.slane %v3566, 1
      %v3572 = vmul.f32 %v3564, %v3568
      %v3573 = vmul.f32 %v3562, %v3569
      %v3574 = vmul.f32 %v3565, %v3568
      %v3575 = vmul.f32 %v3563, %v3569
      %v3576 = vpack.c.bf16 %v3573, %v3572
      %v3577 = vpack.c.bf16 %v3575, %v3574
      %3578 = vst [vmem:[#allocation2] sm:$0xff] %v3576
      %3579 = vst [vmem:[#allocation2 + $0x8] sm:$0xff] %v3577
      %3580 = vrot.lane.b32.xlu0 %v3547, 16
      %v3581 = vpop.permute.xlu0 %3580
      %3582 = vrot.lane.b32.xlu0 %v3549, 16
      %v3583 = vpop.permute.xlu0 %3582
      %3584 = vrot.lane.b32.xlu0 %v3548, 16
      %v3585 = vpop.permute.xlu0 %3584
      %3586 = vrot.lane.b32.xlu0 %v3550, 16
      %v3587 = vpop.permute.xlu0 %3586
      %v3588 = vsel %vm301, %v3581, %v3585
      %v3589 = vsel %vm301, %v3583, %v3587
      %v3590 = vsel %vm301, %v3585, %v3581
      %v3591 = vsel %vm301, %v3587, %v3583
      %v3592 = vld [vmem:[%s306] ss:$8 sm:$0x3]
      %v3594 = vperm.slane %v3592, 0
      %v3595 = vperm.slane %v3592, 1
      %v3598 = vmul.f32 %v3590, %v3594
      %v3599 = vmul.f32 %v3588, %v3595
      %v3600 = vmul.f32 %v3591, %v3594
      %v3601 = vmul.f32 %v3589, %v3595
      %v3602 = vpack.c.bf16 %v3599, %v3598
      %v3603 = vpack.c.bf16 %v3601, %v3600
      %3604 = vst [vmem:[#allocation2 + $0x10] sm:$0xff] %v3602
      %3605 = vst [vmem:[#allocation2 + $0x18] sm:$0xff] %v3603
      %3606 = vrot.lane.b32.xlu0 %v3547, 15
      %v3607 = vpop.permute.xlu0 %3606
      %3608 = vrot.lane.b32.xlu0 %v3549, 15
      %v3609 = vpop.permute.xlu0 %3608
      %3610 = vrot.lane.b32.xlu0 %v3548, 15
      %v3611 = vpop.permute.xlu0 %3610
      %3612 = vrot.lane.b32.xlu0 %v3550, 15
      %v3613 = vpop.permute.xlu0 %3612
      %v3614 = vsel %vm329, %v3607, %v3611
      %v3615 = vsel %vm329, %v3609, %v3613
      %v3616 = vsel %vm329, %v3611, %v3607
      %v3617 = vsel %vm329, %v3613, %v3609
      %v3618 = vld [vmem:[%s334] ss:$8 sm:$0x3]
      %v3620 = vperm.slane %v3618, 0
      %v3621 = vperm.slane %v3618, 1
      %v3624 = vmul.f32 %v3616, %v3620
      %v3625 = vmul.f32 %v3614, %v3621
      %v3626 = vmul.f32 %v3617, %v3620
      %v3627 = vmul.f32 %v3615, %v3621
      %v3628 = vpack.c.bf16 %v3625, %v3624
      %v3629 = vpack.c.bf16 %v3627, %v3626
      %3630 = vst [vmem:[#allocation2 + $0x20] sm:$0xff] %v3628
      %3631 = vst [vmem:[#allocation2 + $0x28] sm:$0xff] %v3629
      %3632 = vrot.lane.b32.xlu0 %v3547, 1
      %v3633 = vpop.permute.xlu0 %3632
      %3634 = vrot.lane.b32.xlu0 %v3549, 1
      %v3635 = vpop.permute.xlu0 %3634
      %3636 = vrot.lane.b32.xlu0 %v3548, 1
      %v3637 = vpop.permute.xlu0 %3636
      %3638 = vrot.lane.b32.xlu0 %v3550, 1
      %v3639 = vpop.permute.xlu0 %3638
      %v3640 = vsel %vm357, %v3633, %v3637
      %v3641 = vsel %vm357, %v3635, %v3639
      %v3642 = vsel %vm357, %v3637, %v3633
      %v3643 = vsel %vm357, %v3639, %v3635
      %v3644 = vld [vmem:[%s362] ss:$8 sm:$0x3]
      %v3646 = vperm.slane %v3644, 0
      %v3647 = vperm.slane %v3644, 1
      %v3650 = vmul.f32 %v3642, %v3646
      %v3651 = vmul.f32 %v3640, %v3647
      %v3652 = vmul.f32 %v3643, %v3646
      %v3653 = vmul.f32 %v3641, %v3647
      %v3654 = vpack.c.bf16 %v3651, %v3650
      %v3655 = vpack.c.bf16 %v3653, %v3652
      %3656 = vst [vmem:[#allocation2 + $0x30] sm:$0xff] %v3654
      %3657 = vst [vmem:[#allocation2 + $0x38] sm:$0xff] %v3655
      %v3658 = vpack.c.bf16 %v3548, %v3547
      %v3659 = vpack.c.bf16 %v3550, %v3549
      %3660 = vst [vmem:[#allocation2 + $0x40] sm:$0xff] %v3658
      %3661 = vst [vmem:[#allocation2 + $0x48] sm:$0xff] %v3659
      %3662 = vrot.lane.b32.xlu0 %v3547, 127
      %v3663 = vpop.permute.xlu0 %3662
      %3664 = vrot.lane.b32.xlu0 %v3549, 127
      %v3665 = vpop.permute.xlu0 %3664
      %3666 = vrot.lane.b32.xlu0 %v3548, 127
      %v3667 = vpop.permute.xlu0 %3666
      %3668 = vrot.lane.b32.xlu0 %v3550, 127
      %v3669 = vpop.permute.xlu0 %3668
      %v3670 = vsel %vm389, %v3663, %v3667
      %v3671 = vsel %vm389, %v3665, %v3669
      %v3672 = vsel %vm389, %v3667, %v3663
      %v3673 = vsel %vm389, %v3669, %v3665
      %v3674 = vld [vmem:[%s394] ss:$8 sm:$0x3]
      %v3676 = vperm.slane %v3674, 0
      %v3677 = vperm.slane %v3674, 1
      %v3680 = vmul.f32 %v3670, %v3676
      %v3681 = vmul.f32 %v3672, %v3677
      %v3682 = vmul.f32 %v3671, %v3676
      %v3683 = vmul.f32 %v3673, %v3677
      %v3684 = vpack.c.bf16 %v3681, %v3680
      %v3685 = vpack.c.bf16 %v3683, %v3682
      %3686 = vst [vmem:[#allocation2 + $0x50] sm:$0xff] %v3684
      %3687 = vst [vmem:[#allocation2 + $0x58] sm:$0xff] %v3685
      %3688 = vrot.lane.b32.xlu0 %v3547, 113
      %v3689 = vpop.permute.xlu0 %3688
      %3690 = vrot.lane.b32.xlu0 %v3549, 113
      %v3691 = vpop.permute.xlu0 %3690
      %3692 = vrot.lane.b32.xlu0 %v3548, 113
      %v3693 = vpop.permute.xlu0 %3692
      %3694 = vrot.lane.b32.xlu0 %v3550, 113
      %v3695 = vpop.permute.xlu0 %3694
      %v3696 = vsel %vm417, %v3689, %v3693
      %v3697 = vsel %vm417, %v3691, %v3695
      %v3698 = vsel %vm417, %v3693, %v3689
      %v3699 = vsel %vm417, %v3695, %v3691
      %v3700 = vld [vmem:[%s422] ss:$8 sm:$0x3]
      %v3702 = vperm.slane %v3700, 0
      %v3703 = vperm.slane %v3700, 1
      %v3706 = vmul.f32 %v3696, %v3702
      %v3707 = vmul.f32 %v3698, %v3703
      %v3708 = vmul.f32 %v3697, %v3702
      %v3709 = vmul.f32 %v3699, %v3703
      %v3710 = vpack.c.bf16 %v3707, %v3706
      %v3711 = vpack.c.bf16 %v3709, %v3708
      %3712 = vst [vmem:[#allocation2 + $0x60] sm:$0xff] %v3710
      %3713 = vst [vmem:[#allocation2 + $0x68] sm:$0xff] %v3711
      %3714 = vrot.lane.b32.xlu0 %v3547, 112
      %v3715 = vpop.permute.xlu0 %3714
      %3716 = vrot.lane.b32.xlu0 %v3549, 112
      %v3717 = vpop.permute.xlu0 %3716
      %3718 = vrot.lane.b32.xlu0 %v3548, 112
      %v3719 = vpop.permute.xlu0 %3718
      %3720 = vrot.lane.b32.xlu0 %v3550, 112
      %v3721 = vpop.permute.xlu0 %3720
      %v3722 = vsel %vm445, %v3715, %v3719
      %v3723 = vsel %vm445, %v3717, %v3721
      %v3724 = vsel %vm445, %v3719, %v3715
      %v3725 = vsel %vm445, %v3721, %v3717
      %v3726 = vld [vmem:[%s450] ss:$8 sm:$0x3]
      %v3728 = vperm.slane %v3726, 0
      %v3729 = vperm.slane %v3726, 1
      %v3732 = vmul.f32 %v3722, %v3728
      %v3733 = vmul.f32 %v3724, %v3729
      %v3734 = vmul.f32 %v3723, %v3728
      %v3735 = vmul.f32 %v3725, %v3729
      %v3736 = vpack.c.bf16 %v3733, %v3732
      %v3737 = vpack.c.bf16 %v3735, %v3734
      %3738 = vst [vmem:[#allocation2 + $0x70] sm:$0xff] %v3736
      %3739 = vst [vmem:[#allocation2 + $0x78] sm:$0xff] %v3737
      %3740 = vrot.lane.b32.xlu0 %v3547, 111
      %v3741 = vpop.permute.xlu0 %3740
      %3742 = vrot.lane.b32.xlu0 %v3549, 111
      %v3743 = vpop.permute.xlu0 %3742
      %3744 = vrot.lane.b32.xlu0 %v3548, 111
      %v3745 = vpop.permute.xlu0 %3744
      %3746 = vrot.lane.b32.xlu0 %v3550, 111
      %v3747 = vpop.permute.xlu0 %3746
      %v3748 = vsel %vm473, %v3741, %v3745
      %v3749 = vsel %vm473, %v3743, %v3747
      %v3750 = vsel %vm473, %v3745, %v3741
      %v3751 = vsel %vm473, %v3747, %v3743
      %v3752 = vld [vmem:[%s478] ss:$8 sm:$0x3]
      %v3754 = vperm.slane %v3752, 0
      %v3755 = vperm.slane %v3752, 1
      %v3758 = vmul.f32 %v3748, %v3754
      %v3759 = vmul.f32 %v3750, %v3755
      %v3760 = vmul.f32 %v3749, %v3754
      %v3761 = vmul.f32 %v3751, %v3755
      %v3762 = vpack.c.bf16 %v3759, %v3758
      %v3763 = vpack.c.bf16 %v3761, %v3760
      %3764 = vst [vmem:[#allocation2 + $0x80] sm:$0xff] %v3762
      %3765 = vst [vmem:[#allocation2 + $0x88] sm:$0xff] %v3763
      %v3766 = vld [vmem:[#allocation2] sm:$0xff]
      %v3767 = vld [vmem:[#allocation2 + $0x8] sm:$0xff]
      %v3768 = vld [vmem:[#allocation2 + $0x10] sm:$0xff]
      %v3769 = vld [vmem:[#allocation2 + $0x18] sm:$0xff]
      %v3770 = vld [vmem:[#allocation2 + $0x20] sm:$0xff]
      %v3771 = vld [vmem:[#allocation2 + $0x28] sm:$0xff]
      %v3772 = vld [vmem:[#allocation2 + $0x30] sm:$0xff]
      %v3773 = vld [vmem:[#allocation2 + $0x38] sm:$0xff]
      %v3774 = vld [vmem:[#allocation2 + $0x40] sm:$0xff]
      %v3775 = vld [vmem:[#allocation2 + $0x48] sm:$0xff]
      %v3776 = vld [vmem:[#allocation2 + $0x50] sm:$0xff]
      %v3777 = vld [vmem:[#allocation2 + $0x58] sm:$0xff]
      %v3778 = vld [vmem:[#allocation2 + $0x60] sm:$0xff]
      %v3779 = vld [vmem:[#allocation2 + $0x68] sm:$0xff]
      %v3780 = vld [vmem:[#allocation2 + $0x70] sm:$0xff]
      %v3781 = vld [vmem:[#allocation2 + $0x78] sm:$0xff]
      %v3782 = vld [vmem:[#allocation2 + $0x80] sm:$0xff]
      %v3783 = vld [vmem:[#allocation2 + $0x88] sm:$0xff]
      %v3784 = vld [vmem:[#allocation2 + $0x90] sm:$0xff]
      %v3787 = vunpack.c.l.b16 %v3552
      %v3788 = vunpack.c.h.b16 %v3552
      %v3789 = vunpack.c.l.b16 %v3553
      %v3790 = vunpack.c.h.b16 %v3553
      %v3791 = vpack.c.b16 %v3789, %v3787
      %v3792 = vpack.c.b16 %v3790, %v3788
      %v3813 = vunpack.c.l.b16 %v3766
      %v3814 = vunpack.c.h.b16 %v3766
      %v3815 = vunpack.c.l.b16 %v3767
      %v3816 = vunpack.c.h.b16 %v3767
      %v3817 = vunpack.c.l.b16 %v3768
      %v3818 = vunpack.c.h.b16 %v3768
      %v3819 = vunpack.c.l.b16 %v3769
      %v3820 = vunpack.c.h.b16 %v3769
      %v3821 = vunpack.c.l.b16 %v3770
      %v3822 = vunpack.c.h.b16 %v3770
      %v3823 = vunpack.c.l.b16 %v3771
      %v3824 = vunpack.c.h.b16 %v3771
      %v3825 = vunpack.c.l.b16 %v3772
      %v3826 = vunpack.c.h.b16 %v3772
      %v3827 = vunpack.c.l.b16 %v3773
      %v3828 = vunpack.c.h.b16 %v3773
      %v3829 = vunpack.c.l.b16 %v3774
      %v3830 = vunpack.c.h.b16 %v3774
      %v3831 = vunpack.c.l.b16 %v3775
      %v3832 = vunpack.c.h.b16 %v3775
      %v3833 = vunpack.c.l.b16 %v3776
      %v3834 = vunpack.c.h.b16 %v3776
      %v3835 = vunpack.c.l.b16 %v3777
      %v3836 = vunpack.c.h.b16 %v3777
      %v3837 = vunpack.c.l.b16 %v3778
      %v3838 = vunpack.c.h.b16 %v3778
      %v3839 = vunpack.c.l.b16 %v3779
      %v3840 = vunpack.c.h.b16 %v3779
      %v3841 = vunpack.c.l.b16 %v3780
      %v3842 = vunpack.c.h.b16 %v3780
      %v3843 = vunpack.c.l.b16 %v3781
      %v3844 = vunpack.c.h.b16 %v3781
      %v3845 = vunpack.c.l.b16 %v3782
      %v3846 = vunpack.c.h.b16 %v3782
      %v3847 = vunpack.c.l.b16 %v3783
      %v3848 = vunpack.c.h.b16 %v3783
      %v3849 = vunpack.c.l.b16 %v3784
      %v3850 = vunpack.c.h.b16 %v3784
      %v3851 = vpack.c.b16 %v3815, %v3813
      %v3852 = vpack.c.b16 %v3816, %v3814
      %v3853 = vpack.c.b16 %v3819, %v3817
      %v3854 = vpack.c.b16 %v3820, %v3818
      %v3855 = vpack.c.b16 %v3823, %v3821
      %v3856 = vpack.c.b16 %v3824, %v3822
      %v3857 = vpack.c.b16 %v3827, %v3825
      %v3858 = vpack.c.b16 %v3828, %v3826
      %v3859 = vpack.c.b16 %v3831, %v3829
      %v3860 = vpack.c.b16 %v3832, %v3830
      %v3861 = vpack.c.b16 %v3835, %v3833
      %v3862 = vpack.c.b16 %v3836, %v3834
      %v3863 = vpack.c.b16 %v3839, %v3837
      %v3864 = vpack.c.b16 %v3840, %v3838
      %v3865 = vpack.c.b16 %v3843, %v3841
      %v3866 = vpack.c.b16 %v3844, %v3842
      %v3867 = vpack.c.b16 %v3847, %v3845
      %v3868 = vpack.c.b16 %v3848, %v3846
      %v3869 = vpack.c.b16 %v3849, %v3849
      %v3870 = vpack.c.b16 %v3850, %v3850
      %v3890 = vsel %vm616, %v3792, 0
      %v3893 = vsel %vm620, %v3869, 0
      %v3896 = vsel %vm620, %v3870, 0
      %3898 = vmatpush.bf16.msra.mxu0 %v3865
      %3899 = vmatpush.bf16.msra.mxu0 %v3863
      %3900 = vmatpush.bf16.msra.mxu0 %v3861
      %3901 = vmatpush.bf16.msra.mxu0 %v3859
      %3902 = vmatpush.bf16.msra.mxu0 %v3857
      %3903 = vmatpush.bf16.msra.mxu0 %v3855
      %3904 = vmatpush.bf16.msra.mxu0 %v3853
      %3905 = vmatpush.bf16.msra.mxu0 %v3851
      %3906 = vmatmul.bf16.gmra.mxu0 %v3791
      %v3907 = vpop.f32.mrf.mxu0
      %v3908 = vadd.f32 0.0, %v3907
      %v3909 = vpop.f32.mrf.mxu0
      %v3910 = vadd.f32 0.0, %v3909
      %3911 = vdwg.mxu0
      %3912 = vmatpush.bf16.msra.mxu0 0
      %3913 = vmatpush.bf16.msra.mxu0 0
      %3914 = vmatpush.bf16.msra.mxu0 0
      %3915 = vmatpush.bf16.msra.mxu0 0
      %3916 = vmatpush.bf16.msra.mxu0 0
      %3917 = vmatpush.bf16.msra.mxu0 0
      %3918 = vmatpush.bf16.msra.mxu0 %v3893
      %3919 = vmatpush.bf16.msra.mxu0 %v3867
      %3920 = vmatmul.bf16.gmra.mxu0 %v3890
      %v3921 = vpop.f32.mrf.mxu0
      %v3922 = vadd.f32 %v3908, %v3921
      %v3923 = vpop.f32.mrf.mxu0
      %v3924 = vadd.f32 %v3910, %v3923
      %3925 = vdwg.mxu0
      %3926 = vmatpush.bf16.msra.mxu0 %v3866
      %3927 = vmatpush.bf16.msra.mxu0 %v3864
      %3928 = vmatpush.bf16.msra.mxu0 %v3862
      %3929 = vmatpush.bf16.msra.mxu0 %v3860
      %3930 = vmatpush.bf16.msra.mxu0 %v3858
      %3931 = vmatpush.bf16.msra.mxu0 %v3856
      %3932 = vmatpush.bf16.msra.mxu0 %v3854
      %3933 = vmatpush.bf16.msra.mxu0 %v3852
      %3934 = vmatmul.bf16.gmra.mxu0 %v3791
      %v3935 = vpop.f32.mrf.mxu0
      %v3936 = vadd.f32 0.0, %v3935
      %v3937 = vpop.f32.mrf.mxu0
      %v3938 = vadd.f32 0.0, %v3937
      %3939 = vdwg.mxu0
      %3940 = vmatpush.bf16.msra.mxu0 0
      %3941 = vmatpush.bf16.msra.mxu0 0
      %3942 = vmatpush.bf16.msra.mxu0 0
      %3943 = vmatpush.bf16.msra.mxu0 0
      %3944 = vmatpush.bf16.msra.mxu0 0
      %3945 = vmatpush.bf16.msra.mxu0 0
      %3946 = vmatpush.bf16.msra.mxu0 %v3896
      %3947 = vmatpush.bf16.msra.mxu0 %v3868
      %3948 = vmatmul.bf16.gmra.mxu0 %v3890
      %v3949 = vpop.f32.mrf.mxu0
      %v3950 = vadd.f32 %v3936, %v3949
      %v3951 = vpop.f32.mrf.mxu0
      %v3952 = vadd.f32 %v3938, %v3951
      %3953 = vdwg.mxu0
      %vm3954 = vcmp.gt.f32.partialorder %v3922, 0.0
      %vm3955 = vcmp.gt.f32.partialorder %v3950, 0.0
      %vm3956 = vcmp.gt.f32.partialorder %v3924, 0.0
      %vm3957 = vcmp.gt.f32.partialorder %v3952, 0.0
      %v3958 = vmul.f32 %v3922, 0.01
      %v3959 = vmul.f32 %v3950, 0.01
      %v3960 = vmul.f32 %v3924, 0.01
      %v3961 = vmul.f32 %v3952, 0.01
      %v3962 = vsel %vm3954, %v3922, %v3958
      %v3963 = vsel %vm3955, %v3950, %v3959
      %v3964 = vsel %vm3956, %v3924, %v3960
      %v3965 = vsel %vm3957, %v3952, %v3961
      %s3966 = scalar_lea.vmem %s242, 96
      %v3967 = vld [vmem:[%s3966] sm:$0xff]
      %v3968 = vld [vmem:[%s3966 + $0x8] sm:$0xff]
      %v3970 = vsel %vm1112, %v3967, 0
      %v3973 = vsel %vm1112, %v3968, 0
      %3975 = vmatpush.msra.mxu0 0.0
      %3976 = vmatpush.msra.mxu0 0.0
      %3977 = vmatpush.msra.mxu0 0.0
      %3978 = vmatpush.msra.mxu0 0.0
      %3979 = vmatpush.msra.mxu0 0.0
      %3980 = vmatpush.msra.mxu0 0.0
      %3981 = vmatpush.msra.mxu0 0.0
      %3982 = vmatpush.msra.mxu0 0.0
      %3983 = vmatpush.msra.mxu0 0.0
      %3984 = vmatpush.msra.mxu0 0.0
      %3985 = vmatpush.msra.mxu0 0.0
      %3986 = vmatpush.msra.mxu0 0.0
      %3987 = vmatpush.msra.mxu0 0.0
      %3988 = vmatpush.msra.mxu0 0.0
      %3989 = vmatpush.msra.mxu0 0.0
      %3990 = vmatpush.msra.mxu0 %v256
      %3991 = vmatmul.f32.gmra.mxu0 %v3970
      %v3992 = vpop.f32.mrf.mxu0
      %v3993 = vadd.f32 0.0, %v3992
      %3994 = vmatmul.f32.gmra.mxu0 %v3973
      %v3995 = vpop.f32.mrf.mxu0
      %v3996 = vadd.f32 0.0, %v3995
      %3997 = vdwg.mxu0
      %3998 = vmatpush.msra.mxu0 0.0
      %3999 = vmatpush.msra.mxu0 0.0
      %4000 = vmatpush.msra.mxu0 0.0
      %4001 = vmatpush.msra.mxu0 0.0
      %4002 = vmatpush.msra.mxu0 0.0
      %4003 = vmatpush.msra.mxu0 0.0
      %4004 = vmatpush.msra.mxu0 0.0
      %4005 = vmatpush.msra.mxu0 0.0
      %4006 = vmatpush.msra.mxu0 0.0
      %4007 = vmatpush.msra.mxu0 0.0
      %4008 = vmatpush.msra.mxu0 0.0
      %4009 = vmatpush.msra.mxu0 0.0
      %4010 = vmatpush.msra.mxu0 0.0
      %4011 = vmatpush.msra.mxu0 0.0
      %4012 = vmatpush.msra.mxu0 0.0
      %4013 = vmatpush.msra.mxu0 %v257
      %4014 = vmatmul.f32.gmra.mxu0 %v3970
      %v4015 = vpop.f32.mrf.mxu0
      %v4016 = vadd.f32 0.0, %v4015
      %4017 = vmatmul.f32.gmra.mxu0 %v3973
      %v4018 = vpop.f32.mrf.mxu0
      %v4019 = vadd.f32 0.0, %v4018
      %4020 = vdwg.mxu0
      %s4021 = scalar_lea.vmem %s242, 112
      %v4022 = vld [vmem:[%s4021] sm:$0xff]
      %v4023 = vld [vmem:[%s4021 + $0x8] sm:$0xff]
      %v4025 = vsel %vm1112, %v4022, 0
      %v4028 = vsel %vm1112, %v4023, 0
      %4030 = vmatpush.msra.mxu0 0.0
      %4031 = vmatpush.msra.mxu0 0.0
      %4032 = vmatpush.msra.mxu0 0.0
      %4033 = vmatpush.msra.mxu0 0.0
      %4034 = vmatpush.msra.mxu0 0.0
      %4035 = vmatpush.msra.mxu0 0.0
      %4036 = vmatpush.msra.mxu0 0.0
      %4037 = vmatpush.msra.mxu0 0.0
      %4038 = vmatpush.msra.mxu0 0.0
      %4039 = vmatpush.msra.mxu0 0.0
      %4040 = vmatpush.msra.mxu0 0.0
      %4041 = vmatpush.msra.mxu0 0.0
      %4042 = vmatpush.msra.mxu0 0.0
      %4043 = vmatpush.msra.mxu0 0.0
      %4044 = vmatpush.msra.mxu0 0.0
      %4045 = vmatpush.msra.mxu0 %v256
      %4046 = vmatmul.f32.gmra.mxu0 %v4025
      %v4047 = vpop.f32.mrf.mxu0
      %v4048 = vadd.f32 0.0, %v4047
      %4049 = vmatmul.f32.gmra.mxu0 %v4028
      %v4050 = vpop.f32.mrf.mxu0
      %v4051 = vadd.f32 0.0, %v4050
      %4052 = vdwg.mxu0
      %4053 = vmatpush.msra.mxu0 0.0
      %4054 = vmatpush.msra.mxu0 0.0
      %4055 = vmatpush.msra.mxu0 0.0
      %4056 = vmatpush.msra.mxu0 0.0
      %4057 = vmatpush.msra.mxu0 0.0
      %4058 = vmatpush.msra.mxu0 0.0
      %4059 = vmatpush.msra.mxu0 0.0
      %4060 = vmatpush.msra.mxu0 0.0
      %4061 = vmatpush.msra.mxu0 0.0
      %4062 = vmatpush.msra.mxu0 0.0
      %4063 = vmatpush.msra.mxu0 0.0
      %4064 = vmatpush.msra.mxu0 0.0
      %4065 = vmatpush.msra.mxu0 0.0
      %4066 = vmatpush.msra.mxu0 0.0
      %4067 = vmatpush.msra.mxu0 0.0
      %4068 = vmatpush.msra.mxu0 %v257
      %4069 = vmatmul.f32.gmra.mxu0 %v4025
      %v4070 = vpop.f32.mrf.mxu0
      %v4071 = vadd.f32 0.0, %v4070
      %4072 = vmatmul.f32.gmra.mxu0 %v4028
      %v4073 = vpop.f32.mrf.mxu0
      %v4074 = vadd.f32 0.0, %v4073
      %4075 = vdwg.mxu0
      %v4076 = vmul.f32 %v3993, %v3962
      %v4077 = vmul.f32 %v4016, %v3963
      %v4078 = vmul.f32 %v3996, %v3964
      %v4079 = vmul.f32 %v4019, %v3965
      %v4080 = vadd.f32 %v4076, %v4048
      %v4081 = vadd.f32 %v4077, %v4071
      %v4082 = vadd.f32 %v4078, %v4051
      %v4083 = vadd.f32 %v4079, %v4074
      %v4084 = vadd.f32 %v4080, %v3547
      %v4085 = vadd.f32 %v4081, %v3548
      %v4086 = vadd.f32 %v4082, %v3549
      %v4087 = vadd.f32 %v4083, %v3550
      %s4088 = scalar_lea.vmem %s2, 128
      %v4089 = vld [vmem:[%s4088] sm:$0xff]
      %v4090 = vld [vmem:[%s4088 + $0x8] sm:$0xff]
      %4091 = vrot.lane.b32.xlu0 %v4084, 17
      %v4092 = vpop.permute.xlu0 %4091
      %4093 = vrot.lane.b32.xlu0 %v4086, 17
      %v4094 = vpop.permute.xlu0 %4093
      %4095 = vrot.lane.b32.xlu0 %v4085, 17
      %v4096 = vpop.permute.xlu0 %4095
      %4097 = vrot.lane.b32.xlu0 %v4087, 17
      %v4098 = vpop.permute.xlu0 %4097
      %v4099 = vsel %vm274, %v4092, %v4096
      %v4100 = vsel %vm274, %v4094, %v4098
      %v4101 = vsel %vm274, %v4096, %v4092
      %v4102 = vsel %vm274, %v4098, %v4094
      %v4103 = vld [vmem:[%s3] ss:$8 sm:$0x3]
      %v4105 = vperm.slane %v4103, 0
      %v4106 = vperm.slane %v4103, 1
      %v4109 = vmul.f32 %v4101, %v4105
      %v4110 = vmul.f32 %v4099, %v4106
      %v4111 = vmul.f32 %v4102, %v4105
      %v4112 = vmul.f32 %v4100, %v4106
      %v4113 = vpack.c.bf16 %v4110, %v4109
      %v4114 = vpack.c.bf16 %v4112, %v4111
      %4115 = vst [vmem:[#allocation2] sm:$0xff] %v4113
      %4116 = vst [vmem:[#allocation2 + $0x8] sm:$0xff] %v4114
      %4117 = vrot.lane.b32.xlu0 %v4084, 16
      %v4118 = vpop.permute.xlu0 %4117
      %4119 = vrot.lane.b32.xlu0 %v4086, 16
      %v4120 = vpop.permute.xlu0 %4119
      %4121 = vrot.lane.b32.xlu0 %v4085, 16
      %v4122 = vpop.permute.xlu0 %4121
      %4123 = vrot.lane.b32.xlu0 %v4087, 16
      %v4124 = vpop.permute.xlu0 %4123
      %v4125 = vsel %vm301, %v4118, %v4122
      %v4126 = vsel %vm301, %v4120, %v4124
      %v4127 = vsel %vm301, %v4122, %v4118
      %v4128 = vsel %vm301, %v4124, %v4120
      %v4129 = vld [vmem:[%s306] ss:$8 sm:$0x3]
      %v4131 = vperm.slane %v4129, 0
      %v4132 = vperm.slane %v4129, 1
      %v4135 = vmul.f32 %v4127, %v4131
      %v4136 = vmul.f32 %v4125, %v4132
      %v4137 = vmul.f32 %v4128, %v4131
      %v4138 = vmul.f32 %v4126, %v4132
      %v4139 = vpack.c.bf16 %v4136, %v4135
      %v4140 = vpack.c.bf16 %v4138, %v4137
      %4141 = vst [vmem:[#allocation2 + $0x10] sm:$0xff] %v4139
      %4142 = vst [vmem:[#allocation2 + $0x18] sm:$0xff] %v4140
      %4143 = vrot.lane.b32.xlu0 %v4084, 15
      %v4144 = vpop.permute.xlu0 %4143
      %4145 = vrot.lane.b32.xlu0 %v4086, 15
      %v4146 = vpop.permute.xlu0 %4145
      %4147 = vrot.lane.b32.xlu0 %v4085, 15
      %v4148 = vpop.permute.xlu0 %4147
      %4149 = vrot.lane.b32.xlu0 %v4087, 15
      %v4150 = vpop.permute.xlu0 %4149
      %v4151 = vsel %vm329, %v4144, %v4148
      %v4152 = vsel %vm329, %v4146, %v4150
      %v4153 = vsel %vm329, %v4148, %v4144
      %v4154 = vsel %vm329, %v4150, %v4146
      %v4155 = vld [vmem:[%s334] ss:$8 sm:$0x3]
      %v4157 = vperm.slane %v4155, 0
      %v4158 = vperm.slane %v4155, 1
      %v4161 = vmul.f32 %v4153, %v4157
      %v4162 = vmul.f32 %v4151, %v4158
      %v4163 = vmul.f32 %v4154, %v4157
      %v4164 = vmul.f32 %v4152, %v4158
      %v4165 = vpack.c.bf16 %v4162, %v4161
      %v4166 = vpack.c.bf16 %v4164, %v4163
      %4167 = vst [vmem:[#allocation2 + $0x20] sm:$0xff] %v4165
      %4168 = vst [vmem:[#allocation2 + $0x28] sm:$0xff] %v4166
      %4169 = vrot.lane.b32.xlu0 %v4084, 1
      %v4170 = vpop.permute.xlu0 %4169
      %4171 = vrot.lane.b32.xlu0 %v4086, 1
      %v4172 = vpop.permute.xlu0 %4171
      %4173 = vrot.lane.b32.xlu0 %v4085, 1
      %v4174 = vpop.permute.xlu0 %4173
      %4175 = vrot.lane.b32.xlu0 %v4087, 1
      %v4176 = vpop.permute.xlu0 %4175
      %v4177 = vsel %vm357, %v4170, %v4174
      %v4178 = vsel %vm357, %v4172, %v4176
      %v4179 = vsel %vm357, %v4174, %v4170
      %v4180 = vsel %vm357, %v4176, %v4172
      %v4181 = vld [vmem:[%s362] ss:$8 sm:$0x3]
      %v4183 = vperm.slane %v4181, 0
      %v4184 = vperm.slane %v4181, 1
      %v4187 = vmul.f32 %v4179, %v4183
      %v4188 = vmul.f32 %v4177, %v4184
      %v4189 = vmul.f32 %v4180, %v4183
      %v4190 = vmul.f32 %v4178, %v4184
      %v4191 = vpack.c.bf16 %v4188, %v4187
      %v4192 = vpack.c.bf16 %v4190, %v4189
      %4193 = vst [vmem:[#allocation2 + $0x30] sm:$0xff] %v4191
      %4194 = vst [vmem:[#allocation2 + $0x38] sm:$0xff] %v4192
      %v4195 = vpack.c.bf16 %v4085, %v4084
      %v4196 = vpack.c.bf16 %v4087, %v4086
      %4197 = vst [vmem:[#allocation2 + $0x40] sm:$0xff] %v4195
      %4198 = vst [vmem:[#allocation2 + $0x48] sm:$0xff] %v4196
      %4199 = vrot.lane.b32.xlu0 %v4084, 127
      %v4200 = vpop.permute.xlu0 %4199
      %4201 = vrot.lane.b32.xlu0 %v4086, 127
      %v4202 = vpop.permute.xlu0 %4201
      %4203 = vrot.lane.b32.xlu0 %v4085, 127
      %v4204 = vpop.permute.xlu0 %4203
      %4205 = vrot.lane.b32.xlu0 %v4087, 127
      %v4206 = vpop.permute.xlu0 %4205
      %v4207 = vsel %vm389, %v4200, %v4204
      %v4208 = vsel %vm389, %v4202, %v4206
      %v4209 = vsel %vm389, %v4204, %v4200
      %v4210 = vsel %vm389, %v4206, %v4202
      %v4211 = vld [vmem:[%s394] ss:$8 sm:$0x3]
      %v4213 = vperm.slane %v4211, 0
      %v4214 = vperm.slane %v4211, 1
      %v4217 = vmul.f32 %v4207, %v4213
      %v4218 = vmul.f32 %v4209, %v4214
      %v4219 = vmul.f32 %v4208, %v4213
      %v4220 = vmul.f32 %v4210, %v4214
      %v4221 = vpack.c.bf16 %v4218, %v4217
      %v4222 = vpack.c.bf16 %v4220, %v4219
      %4223 = vst [vmem:[#allocation2 + $0x50] sm:$0xff] %v4221
      %4224 = vst [vmem:[#allocation2 + $0x58] sm:$0xff] %v4222
      %4225 = vrot.lane.b32.xlu0 %v4084, 113
      %v4226 = vpop.permute.xlu0 %4225
      %4227 = vrot.lane.b32.xlu0 %v4086, 113
      %v4228 = vpop.permute.xlu0 %4227
      %4229 = vrot.lane.b32.xlu0 %v4085, 113
      %v4230 = vpop.permute.xlu0 %4229
      %4231 = vrot.lane.b32.xlu0 %v4087, 113
      %v4232 = vpop.permute.xlu0 %4231
      %v4233 = vsel %vm417, %v4226, %v4230
      %v4234 = vsel %vm417, %v4228, %v4232
      %v4235 = vsel %vm417, %v4230, %v4226
      %v4236 = vsel %vm417, %v4232, %v4228
      %v4237 = vld [vmem:[%s422] ss:$8 sm:$0x3]
      %v4239 = vperm.slane %v4237, 0
      %v4240 = vperm.slane %v4237, 1
      %v4243 = vmul.f32 %v4233, %v4239
      %v4244 = vmul.f32 %v4235, %v4240
      %v4245 = vmul.f32 %v4234, %v4239
      %v4246 = vmul.f32 %v4236, %v4240
      %v4247 = vpack.c.bf16 %v4244, %v4243
      %v4248 = vpack.c.bf16 %v4246, %v4245
      %4249 = vst [vmem:[#allocation2 + $0x60] sm:$0xff] %v4247
      %4250 = vst [vmem:[#allocation2 + $0x68] sm:$0xff] %v4248
      %4251 = vrot.lane.b32.xlu0 %v4084, 112
      %v4252 = vpop.permute.xlu0 %4251
      %4253 = vrot.lane.b32.xlu0 %v4086, 112
      %v4254 = vpop.permute.xlu0 %4253
      %4255 = vrot.lane.b32.xlu0 %v4085, 112
      %v4256 = vpop.permute.xlu0 %4255
      %4257 = vrot.lane.b32.xlu0 %v4087, 112
      %v4258 = vpop.permute.xlu0 %4257
      %v4259 = vsel %vm445, %v4252, %v4256
      %v4260 = vsel %vm445, %v4254, %v4258
      %v4261 = vsel %vm445, %v4256, %v4252
      %v4262 = vsel %vm445, %v4258, %v4254
      %v4263 = vld [vmem:[%s450] ss:$8 sm:$0x3]
      %v4265 = vperm.slane %v4263, 0
      %v4266 = vperm.slane %v4263, 1
      %v4269 = vmul.f32 %v4259, %v4265
      %v4270 = vmul.f32 %v4261, %v4266
      %v4271 = vmul.f32 %v4260, %v4265
      %v4272 = vmul.f32 %v4262, %v4266
      %v4273 = vpack.c.bf16 %v4270, %v4269
      %v4274 = vpack.c.bf16 %v4272, %v4271
      %4275 = vst [vmem:[#allocation2 + $0x70] sm:$0xff] %v4273
      %4276 = vst [vmem:[#allocation2 + $0x78] sm:$0xff] %v4274
      %4277 = vrot.lane.b32.xlu0 %v4084, 111
      %v4278 = vpop.permute.xlu0 %4277
      %4279 = vrot.lane.b32.xlu0 %v4086, 111
      %v4280 = vpop.permute.xlu0 %4279
      %4281 = vrot.lane.b32.xlu0 %v4085, 111
      %v4282 = vpop.permute.xlu0 %4281
      %4283 = vrot.lane.b32.xlu0 %v4087, 111
      %v4284 = vpop.permute.xlu0 %4283
      %v4285 = vsel %vm473, %v4278, %v4282
      %v4286 = vsel %vm473, %v4280, %v4284
      %v4287 = vsel %vm473, %v4282, %v4278
      %v4288 = vsel %vm473, %v4284, %v4280
      %v4289 = vld [vmem:[%s478] ss:$8 sm:$0x3]
      %v4291 = vperm.slane %v4289, 0
      %v4292 = vperm.slane %v4289, 1
      %v4295 = vmul.f32 %v4285, %v4291
      %v4296 = vmul.f32 %v4287, %v4292
      %v4297 = vmul.f32 %v4286, %v4291
      %v4298 = vmul.f32 %v4288, %v4292
      %v4299 = vpack.c.bf16 %v4296, %v4295
      %v4300 = vpack.c.bf16 %v4298, %v4297
      %4301 = vst [vmem:[#allocation2 + $0x80] sm:$0xff] %v4299
      %4302 = vst [vmem:[#allocation2 + $0x88] sm:$0xff] %v4300
      %v4303 = vld [vmem:[#allocation2] sm:$0xff]
      %v4304 = vld [vmem:[#allocation2 + $0x8] sm:$0xff]
      %v4305 = vld [vmem:[#allocation2 + $0x10] sm:$0xff]
      %v4306 = vld [vmem:[#allocation2 + $0x18] sm:$0xff]
      %v4307 = vld [vmem:[#allocation2 + $0x20] sm:$0xff]
      %v4308 = vld [vmem:[#allocation2 + $0x28] sm:$0xff]
      %v4309 = vld [vmem:[#allocation2 + $0x30] sm:$0xff]
      %v4310 = vld [vmem:[#allocation2 + $0x38] sm:$0xff]
      %v4311 = vld [vmem:[#allocation2 + $0x40] sm:$0xff]
      %v4312 = vld [vmem:[#allocation2 + $0x48] sm:$0xff]
      %v4313 = vld [vmem:[#allocation2 + $0x50] sm:$0xff]
      %v4314 = vld [vmem:[#allocation2 + $0x58] sm:$0xff]
      %v4315 = vld [vmem:[#allocation2 + $0x60] sm:$0xff]
      %v4316 = vld [vmem:[#allocation2 + $0x68] sm:$0xff]
      %v4317 = vld [vmem:[#allocation2 + $0x70] sm:$0xff]
      %v4318 = vld [vmem:[#allocation2 + $0x78] sm:$0xff]
      %v4319 = vld [vmem:[#allocation2 + $0x80] sm:$0xff]
      %v4320 = vld [vmem:[#allocation2 + $0x88] sm:$0xff]
      %v4321 = vld [vmem:[#allocation2 + $0x90] sm:$0xff]
      %v4324 = vunpack.c.l.b16 %v4089
      %v4325 = vunpack.c.h.b16 %v4089
      %v4326 = vunpack.c.l.b16 %v4090
      %v4327 = vunpack.c.h.b16 %v4090
      %v4328 = vpack.c.b16 %v4326, %v4324
      %v4329 = vpack.c.b16 %v4327, %v4325
      %v4350 = vunpack.c.l.b16 %v4303
      %v4351 = vunpack.c.h.b16 %v4303
      %v4352 = vunpack.c.l.b16 %v4304
      %v4353 = vunpack.c.h.b16 %v4304
      %v4354 = vunpack.c.l.b16 %v4305
      %v4355 = vunpack.c.h.b16 %v4305
      %v4356 = vunpack.c.l.b16 %v4306
      %v4357 = vunpack.c.h.b16 %v4306
      %v4358 = vunpack.c.l.b16 %v4307
      %v4359 = vunpack.c.h.b16 %v4307
      %v4360 = vunpack.c.l.b16 %v4308
      %v4361 = vunpack.c.h.b16 %v4308
      %v4362 = vunpack.c.l.b16 %v4309
      %v4363 = vunpack.c.h.b16 %v4309
      %v4364 = vunpack.c.l.b16 %v4310
      %v4365 = vunpack.c.h.b16 %v4310
      %v4366 = vunpack.c.l.b16 %v4311
      %v4367 = vunpack.c.h.b16 %v4311
      %v4368 = vunpack.c.l.b16 %v4312
      %v4369 = vunpack.c.h.b16 %v4312
      %v4370 = vunpack.c.l.b16 %v4313
      %v4371 = vunpack.c.h.b16 %v4313
      %v4372 = vunpack.c.l.b16 %v4314
      %v4373 = vunpack.c.h.b16 %v4314
      %v4374 = vunpack.c.l.b16 %v4315
      %v4375 = vunpack.c.h.b16 %v4315
      %v4376 = vunpack.c.l.b16 %v4316
      %v4377 = vunpack.c.h.b16 %v4316
      %v4378 = vunpack.c.l.b16 %v4317
      %v4379 = vunpack.c.h.b16 %v4317
      %v4380 = vunpack.c.l.b16 %v4318
      %v4381 = vunpack.c.h.b16 %v4318
      %v4382 = vunpack.c.l.b16 %v4319
      %v4383 = vunpack.c.h.b16 %v4319
      %v4384 = vunpack.c.l.b16 %v4320
      %v4385 = vunpack.c.h.b16 %v4320
      %v4386 = vunpack.c.l.b16 %v4321
      %v4387 = vunpack.c.h.b16 %v4321
      %v4388 = vpack.c.b16 %v4352, %v4350
      %v4389 = vpack.c.b16 %v4353, %v4351
      %v4390 = vpack.c.b16 %v4356, %v4354
      %v4391 = vpack.c.b16 %v4357, %v4355
      %v4392 = vpack.c.b16 %v4360, %v4358
      %v4393 = vpack.c.b16 %v4361, %v4359
      %v4394 = vpack.c.b16 %v4364, %v4362
      %v4395 = vpack.c.b16 %v4365, %v4363
      %v4396 = vpack.c.b16 %v4368, %v4366
      %v4397 = vpack.c.b16 %v4369, %v4367
      %v4398 = vpack.c.b16 %v4372, %v4370
      %v4399 = vpack.c.b16 %v4373, %v4371
      %v4400 = vpack.c.b16 %v4376, %v4374
      %v4401 = vpack.c.b16 %v4377, %v4375
      %v4402 = vpack.c.b16 %v4380, %v4378
      %v4403 = vpack.c.b16 %v4381, %v4379
      %v4404 = vpack.c.b16 %v4384, %v4382
      %v4405 = vpack.c.b16 %v4385, %v4383
      %v4406 = vpack.c.b16 %v4386, %v4386
      %v4407 = vpack.c.b16 %v4387, %v4387
      %v4427 = vsel %vm616, %v4329, 0
      %v4430 = vsel %vm620, %v4406, 0
      %v4433 = vsel %vm620, %v4407, 0
      %4435 = vmatpush.bf16.msra.mxu0 %v4402
      %4436 = vmatpush.bf16.msra.mxu0 %v4400
      %4437 = vmatpush.bf16.msra.mxu0 %v4398
      %4438 = vmatpush.bf16.msra.mxu0 %v4396
      %4439 = vmatpush.bf16.msra.mxu0 %v4394
      %4440 = vmatpush.bf16.msra.mxu0 %v4392
      %4441 = vmatpush.bf16.msra.mxu0 %v4390
      %4442 = vmatpush.bf16.msra.mxu0 %v4388
      %4443 = vmatmul.bf16.gmra.mxu0 %v4328
      %v4444 = vpop.f32.mrf.mxu0
      %v4445 = vadd.f32 0.0, %v4444
      %v4446 = vpop.f32.mrf.mxu0
      %4447 = vdwg.mxu0
      %4448 = vmatpush.bf16.msra.mxu0 0
      %4449 = vmatpush.bf16.msra.mxu0 0
      %4450 = vmatpush.bf16.msra.mxu0 0
      %4451 = vmatpush.bf16.msra.mxu0 0
      %4452 = vmatpush.bf16.msra.mxu0 0
      %4453 = vmatpush.bf16.msra.mxu0 0
      %4454 = vmatpush.bf16.msra.mxu0 %v4430
      %4455 = vmatpush.bf16.msra.mxu0 %v4404
      %4456 = vmatmul.bf16.gmra.mxu0 %v4427
      %v4457 = vpop.f32.mrf.mxu0
      %v4458 = vadd.f32 %v4445, %v4457
      %v4459 = vpop.f32.mrf.mxu0
      %4460 = vdwg.mxu0
      %4461 = vmatpush.bf16.msra.mxu0 %v4403
      %4462 = vmatpush.bf16.msra.mxu0 %v4401
      %4463 = vmatpush.bf16.msra.mxu0 %v4399
      %4464 = vmatpush.bf16.msra.mxu0 %v4397
      %4465 = vmatpush.bf16.msra.mxu0 %v4395
      %4466 = vmatpush.bf16.msra.mxu0 %v4393
      %4467 = vmatpush.bf16.msra.mxu0 %v4391
      %4468 = vmatpush.bf16.msra.mxu0 %v4389
      %4469 = vmatmul.bf16.gmra.mxu0 %v4328
      %v4470 = vpop.f32.mrf.mxu0
      %v4471 = vadd.f32 0.0, %v4470
      %v4472 = vpop.f32.mrf.mxu0
      %4473 = vdwg.mxu0
      %4474 = vmatpush.bf16.msra.mxu0 0
      %4475 = vmatpush.bf16.msra.mxu0 0
      %4476 = vmatpush.bf16.msra.mxu0 0
      %4477 = vmatpush.bf16.msra.mxu0 0
      %4478 = vmatpush.bf16.msra.mxu0 0
      %4479 = vmatpush.bf16.msra.mxu0 0
      %4480 = vmatpush.bf16.msra.mxu0 %v4433
      %4481 = vmatpush.bf16.msra.mxu0 %v4405
      %4482 = vmatmul.bf16.gmra.mxu0 %v4427
      %v4483 = vpop.f32.mrf.mxu0
      %v4484 = vadd.f32 %v4471, %v4483
      %v4485 = vpop.f32.mrf.mxu0
      %4486 = vdwg.mxu0
      %v4487 = vtanh.pop %v4458
      %v4488 = vtanh.pop %v4484
      %v4491 = vrot.slane %v4488, 7
      %vm4492 = vcmask 1040384
      %v4493 = vsel %vm4492, %v4487, %v4491
      %v4495 = vlaneseq
      %vm4496 = vcmp.ge.s32.totalorder %v4495, 0
      %vm4497 = vcmp.lt.s32.totalorder %v4495, 256
      %vm4498 = vmand %vm4496, %vm4497
      %4499 = vst.msk [vmem:[%s247] sm:$0x3] %vm4498, %v4493
      %p4500 = scmp.lt.s32.totalorder %s16, 1
      %s4501 = scalar_select %p4500, %s16, 1
      %s4502 = smul.addr %s4501, 2
      %s4503 = scalar_lea.vmem %s5, %s4502
      // Predicated region
      $region41: #{decoder_forward.1} parent=39 // pred_check
        %p4504 = pneg %p149
      $region42: #{decoder_forward.1} parent=39 // pred_check_branch
        %4506 = sbr.rel (%p4504) target = $region44
      $region43: #{decoder_forward.1} parent=39 // pred_region
        _
      $region44: #{decoder_forward.1} parent=39 // pred_fallthru
        _
    $region40: #{decoder_forward.1} parent=5 // pred_fallthru
      _
    %p4507 = scmp.le.s32.totalorder 2, %s11
    // Predicated region
    $region45: #{decoder_forward.1} parent=5 // pred_check
      %p4508 = pneg %p4507
    $region46: #{decoder_forward.1} parent=5 // pred_check_branch
      %4510 = sbr.rel (%p4508) target = $region48
    $region47: #{decoder_forward.1} parent=5 // pred_region
      %s4511 = ssub.s32 %s11, 2
      // Predicated region
      $region49: #{decoder_forward.1} parent=47 // pred_check
        %p4512 = pneg %p155
      $region50: #{decoder_forward.1} parent=47 // pred_check_branch
        %4514 = sbr.rel (%p4512) target = $region52
      $region51: #{decoder_forward.1} parent=47 // pred_region
        %p4515 = scmp.lt.s32.totalorder %s17, 1
        %s4516 = scalar_select %p4515, %s17, 1
        %s4517 = smul.addr %s4516, 2
        %s4518 = scalar_lea.vmem %s5, %s4517
      $region52: #{decoder_forward.1} parent=47 // pred_fallthru
        _
    $region48: #{decoder_forward.1} parent=5 // pred_fallthru
      _
  $region6: #{decoder_forward.1} parent=0 // loop_footer
    %s15 = sadd.s32 1, %s11
  $region7: #{decoder_forward.1} parent=0 // loop_footer_branch
    %10 = sbr.rel target = $region3
  $region8: #{decoder_forward.1} parent=0 // loop_exit
    _

</llo_original>
